<compile_context>
chip_gen: v7x
topology: tpu7x:2x2x1
jax: 0.10.0
libtpu: 0.0.40
codegen_flags: <defaults>
</compile_context>

<pallas_src>
import functools

import jax
import jax.numpy as jnp
from jax.experimental import pallas as pl
from jax.experimental.pallas import tpu as pltpu


def _round_up(x, m):
    return (x + m - 1) // m * m


# ----------------------------------------------------------------------------
# Pallas kernel: (tm, K) x (K, Npad) matmul + bias + optional LeakyReLU
# ----------------------------------------------------------------------------
def _mm_bias_act_kernel(x_ref, w_ref, b_ref, o_ref, *, negative_slope):
    acc = jnp.dot(x_ref[...], w_ref[...], preferred_element_type=jnp.float32)
    acc = acc + b_ref[...]                       # (1, Npad) f32, broadcasts
    if negative_slope is not None:
        acc = jnp.where(acc >= 0.0, acc, acc * negative_slope)
    o_ref[...] = acc.astype(o_ref.dtype)


def matmul_bias_act(x, w, b, *, negative_slope=None, out_dtype=jnp.float32):
    """x: [M, K], w: [K, N], b: [N] -> [M, N] with fused bias + LeakyReLU."""
    m, k = x.shape
    k2, n = w.shape
    assert k == k2 and b.shape == (n,)

    # Lane-dense stores: pad output channels up to a multiple of 128.
    n_pad = _round_up(n, 128)

    # M tiling: big tiles amortize per-grid-step overhead; always keep >= 2
    # parallel grid steps so both v7x TensorCores are used (free on v5e/v6e).
    m_pad8 = _round_up(m, 8)
    tm = min(512, m_pad8)
    if tm == m_pad8 and m_pad8 >= 16:
        tm = _round_up(pl.cdiv(m_pad8, 2), 8)
    m_pad = _round_up(m, tm)

    if m_pad != m:
        x = jnp.pad(x, ((0, m_pad - m), (0, 0)))
    if n_pad != n:
        w = jnp.pad(w, ((0, 0), (0, n_pad - n)))
        b = jnp.pad(b, (0, n_pad - n))
    b2 = b.reshape(1, n_pad).astype(jnp.float32)

    kernel = functools.partial(_mm_bias_act_kernel, negative_slope=negative_slope)
    out = pl.pallas_call(
        kernel,
        out_shape=jax.ShapeDtypeStruct((m_pad, n_pad), out_dtype),
        grid_spec=pltpu.PrefetchScalarGridSpec(
            num_scalar_prefetch=0,
            grid=(m_pad // tm,),
            in_specs=[
                pl.BlockSpec((tm, k), lambda i: (i, 0)),
                pl.BlockSpec((k, n_pad), lambda i: (0, 0)),   # grid-invariant
                pl.BlockSpec((1, n_pad), lambda i: (0, 0)),   # grid-invariant
            ],
            out_specs=pl.BlockSpec((tm, n_pad), lambda i: (i, 0)),
        ),
        compiler_params=pltpu.CompilerParams(
            dimension_semantics=("parallel",)),
    )(x, w, b2)
    return out[:m, :n]


# ----------------------------------------------------------------------------
# Conv2d(k=3, stride=2, padding=1) in NHWC via im2col + Pallas matmul
# ----------------------------------------------------------------------------
def conv3x3_s2p1_nhwc(x, w, b, *, negative_slope=None,
                      compute_dtype=jnp.bfloat16, out_dtype=None):
    """x: [N, H, W, Cin] NHWC; w: [Cout, Cin, 3, 3] OIHW; b: [Cout].

    Returns [N, H/2, W/2, Cout] in `out_dtype` (defaults to compute_dtype).
    """
    n, h, wdt, cin = x.shape
    assert h % 2 == 0 and wdt % 2 == 0, "stride-2 conv path assumes even H/W"
    cout = w.shape[0]
    ho, wo = h // 2, wdt // 2
    if out_dtype is None:
        out_dtype = compute_dtype

    xc = x.astype(compute_dtype)
    xp = jnp.pad(xc, ((0, 0), (1, 1), (1, 1), (0, 0)))
    # im2col with K-order (kh, kw, ci): strided slices + channel concat,
    # no transpose, K is contiguous in the last (lane) dim.
    cols = [xp[:, kh:kh + 2 * ho:2, kw:kw + 2 * wo:2, :]
            for kh in range(3) for kw in range(3)]
    patches = jnp.concatenate(cols, axis=-1).reshape(n * ho * wo, cin * 9)

    # OIHW -> (kh, kw, ci, co) -> [9*Cin, Cout]; matches patch K-order.
    wmat = w.transpose(2, 3, 1, 0).reshape(cin * 9, cout).astype(compute_dtype)
    out = matmul_bias_act(patches, wmat, b.astype(jnp.float32),
                          negative_slope=negative_slope, out_dtype=out_dtype)
    return out.reshape(n, ho, wo, cout)


# ----------------------------------------------------------------------------
# ConvTower / Encoder
# ----------------------------------------------------------------------------
def init_conv_params(key, cout, cin, k=3):
    kw_, kb_ = jax.random.split(key)
    fan_in = cin * k * k
    bound = 1.0 / jnp.sqrt(fan_in)
    w = jax.random.uniform(kw_, (cout, cin, k, k), jnp.float32, -bound, bound)
    b = jax.random.uniform(kb_, (cout,), jnp.float32, -bound, bound)
    return w, b


def init_encoder_params(key, in_channels=3, out_channels=64):
    k1, k2, k3 = jax.random.split(key, 3)
    return {
        "conv1": init_conv_params(k1, 64, in_channels),
        "conv2": init_conv_params(k2, 128, 64),
        "conv3": init_conv_params(k3, out_channels, 128),
    }


def conv_tower(params, x_nhwc, *, compute_dtype=jnp.bfloat16):
    # TODO(synk): fuse the whole 3-conv tower into a single pallas_call
    # (intermediates in VMEM scratch, in-kernel strided im2col) for the small
    # spatial regime; kept as 3 matmul launches here to avoid strided-gather
    # lowering risk inside the kernel.
    slope = 0.01  # nn.LeakyReLU default negative_slope
    w1, b1 = params["conv1"]
    w2, b2 = params["conv2"]
    w3, b3 = params["conv3"]
    h = conv3x3_s2p1_nhwc(x_nhwc, w1, b1, negative_slope=slope,
                          compute_dtype=compute_dtype)
    h = conv3x3_s2p1_nhwc(h, w2, b2, negative_slope=slope,
                          compute_dtype=compute_dtype)
    h = conv3x3_s2p1_nhwc(h, w3, b3, negative_slope=None,
                          compute_dtype=compute_dtype, out_dtype=jnp.float32)
    return h


def encoder_forward(params, x, *, compute_dtype=jnp.bfloat16):
    """x: [B, 8, Cin, H, W] -> [B, 8*Cout, H/8, W/8] (concat over the 8 patches)."""
    b, npatch, cin, h, w = x.shape
    assert npatch == 8
    assert h % 8 == 0 and w % 8 == 0, "encoder assumes spatial dims divisible by 8"
    # Shared tower weights -> fold the patch dim into batch; single NCHW->NHWC.
    xr = x.reshape(b * npatch, cin, h, w).transpose(0, 2, 3, 1)
    out = conv_tower(params, xr, compute_dtype=compute_dtype)   # [B*8, H/8, W/8, Cout]
    ho, wo, cout = out.shape[1:]
    out = out.transpose(0, 3, 1, 2)                             # single NHWC->NCHW
    return out.reshape(b, npatch * cout, ho, wo)


# ----------------------------------------------------------------------------
# Pure-JAX reference (for correctness sanity check)
# ----------------------------------------------------------------------------
def _conv_ref(x, w, b, negative_slope=None):
    out = jax.lax.conv_general_dilated(
        x, w, window_strides=(2, 2), padding=((1, 1), (1, 1)),
        dimension_numbers=("NCHW", "OIHW", "NCHW"))
    out = out + b[None, :, None, None]
    if negative_slope is not None:
        out = jnp.where(out >= 0.0, out, out * negative_slope)
    return out


def encoder_ref(params, x):
    b, npatch, cin, h, w = x.shape
    xr = x.reshape(b * npatch, cin, h, w)
    h1 = _conv_ref(xr, *params["conv1"], negative_slope=0.01)
    h2 = _conv_ref(h1, *params["conv2"], negative_slope=0.01)
    h3 = _conv_ref(h2, *params["conv3"], negative_slope=None)
    cout, ho, wo = h3.shape[1:]
    return h3.reshape(b, npatch * cout, ho, wo)


if __name__ == "__main__":
    key = jax.random.PRNGKey(0)
    kp, kx = jax.random.split(key)

    B, NPATCH, CIN, H, W = 2, 8, 3, 16, 16       # output: [2, 8*64, 2, 2]
    params = init_encoder_params(kp, in_channels=CIN, out_channels=64)
    x = jax.random.normal(kx, (B, NPATCH, CIN, H, W), dtype=jnp.float32)

    ref = encoder_ref(params, x)

    # Fast bf16 MXU path (default).
    fwd_bf16 = jax.jit(functools.partial(encoder_forward,
                                         compute_dtype=jnp.bfloat16))
    out = jax.block_until_ready(fwd_bf16(params, x))
    assert out.shape == (B, NPATCH * 64, H // 8, W // 8), out.shape
    max_err = float(jnp.max(jnp.abs(out - ref)))
    assert max_err < 5e-2, f"bf16 path mismatch vs reference: {max_err}"

    # Strict f32 path (exactness check of the kernel itself).
    fwd_f32 = jax.jit(functools.partial(encoder_forward,
                                        compute_dtype=jnp.float32))
    out32 = jax.block_until_ready(fwd_f32(params, x))
    assert jnp.allclose(out32, ref, atol=1e-3, rtol=1e-3), \
        "f32 path mismatch vs reference"

    print("KERNEL_OK")
</pallas_src>

<mosaic_0001>
module attributes {stable_mosaic.version = 11 : i64} {
  func.func @_mm_bias_act_kernel(%arg0: i32, %arg1: memref<512x27xbf16, #tpu.memory_space<vmem>>, %arg2: memref<27x128xbf16, #tpu.memory_space<vmem>>, %arg3: memref<1x128xf32, #tpu.memory_space<vmem>>, %arg4: memref<512x128xbf16, #tpu.memory_space<vmem>>) attributes {dimension_semantics = [#tpu.dimension_semantics<parallel>], iteration_bounds = array<i64: 2>, scalar_prefetch = 0 : i64, scratch_operands = 0 : i64, tpu.core_type = #tpu.core_type<tc>, window_params = [{transform_indices = @transform_0, window_bounds = array<i64: 512, 27>}, {pipeline_mode = #tpu.pipeline_mode<synchronous>, transform_indices = @transform_1, window_bounds = array<i64: 27, 128>}, {pipeline_mode = #tpu.pipeline_mode<synchronous>, transform_indices = @transform_2, window_bounds = array<i64: 1, 128>}, {transform_indices = @transform_3, window_bounds = array<i64: 512, 128>}]} {
    %c0 = arith.constant 0 : index
    %c0_0 = arith.constant 0 : index
    %0 = vector.load %arg1[%c0, %c0_0] : memref<512x27xbf16, #tpu.memory_space<vmem>>, vector<512x27xbf16>
    %c0_1 = arith.constant 0 : index
    %c0_2 = arith.constant 0 : index
    %1 = vector.load %arg2[%c0_1, %c0_2] : memref<27x128xbf16, #tpu.memory_space<vmem>>, vector<27x128xbf16>
    %cst = arith.constant dense<0.000000e+00> : vector<512x128xf32>
    %2 = tpu.matmul %0, %1, %cst {dimension_numbers = #tpu.dot_dimension_numbers<[1], [0], [0], [1], [0, 0, 1, 1], [], []>} : vector<512x27xbf16>, vector<27x128xbf16>, vector<512x128xf32> -> vector<512x128xf32>
    %c0_3 = arith.constant 0 : index
    %c0_4 = arith.constant 0 : index
    %3 = vector.load %arg3[%c0_3, %c0_4] : memref<1x128xf32, #tpu.memory_space<vmem>>, vector<1x128xf32>
    %4 = vector.broadcast %3 : vector<1x128xf32> to vector<512x128xf32>
    %5 = arith.addf %2, %4 : vector<512x128xf32>
    %cst_5 = arith.constant 0.000000e+00 : f32
    %6 = vector.broadcast %cst_5 : f32 to vector<512x128xf32>
    %7 = arith.cmpf oge, %5, %6 : vector<512x128xf32>
    %cst_6 = arith.constant 0.00999999977 : f32
    %8 = vector.broadcast %cst_6 : f32 to vector<512x128xf32>
    %9 = arith.mulf %5, %8 : vector<512x128xf32>
    %10 = arith.select %7, %5, %9 : vector<512x128xi1>, vector<512x128xf32>
    %11 = arith.truncf %10 : vector<512x128xf32> to vector<512x128xbf16>
    %c0_7 = arith.constant 0 : index
    %c0_8 = arith.constant 0 : index
    %12 = vector.load %arg4[%c0_7, %c0_8] : memref<512x128xbf16, #tpu.memory_space<vmem>>, vector<512x128xbf16>
    tpu.vector_store %arg4[%c0_7, %c0_8], %11 {strides = array<i32>} : memref<512x128xbf16, #tpu.memory_space<vmem>>, vector<512x128xbf16>,
    return
  }
  func.func @transform_0(%arg0: i32) -> (i32, i32) {
    %c0_i32 = arith.constant 0 : i32
    %c0_i32_0 = arith.constant 0 : i32
    return %arg0, %c0_i32 : i32, i32
  }
  func.func @transform_1(%arg0: i32) -> (i32, i32) {
    %c0_i32 = arith.constant 0 : i32
    %c0_i32_0 = arith.constant 0 : i32
    %c0_i32_1 = arith.constant 0 : i32
    return %c0_i32, %c0_i32_0 : i32, i32
  }
  func.func @transform_2(%arg0: i32) -> (i32, i32) {
    %c0_i32 = arith.constant 0 : i32
    %c0_i32_0 = arith.constant 0 : i32
    %c0_i32_1 = arith.constant 0 : i32
    return %c0_i32, %c0_i32_0 : i32, i32
  }
  func.func @transform_3(%arg0: i32) -> (i32, i32) {
    %c0_i32 = arith.constant 0 : i32
    %c0_i32_0 = arith.constant 0 : i32
    return %arg0, %c0_i32 : i32, i32
  }
}

module attributes {stable_mosaic.version = 11 : i64} {
  func.func @_mm_bias_act_kernel(%arg0: i32, %arg1: memref<128x576xbf16, #tpu.memory_space<vmem>>, %arg2: memref<576x128xbf16, #tpu.memory_space<vmem>>, %arg3: memref<1x128xf32, #tpu.memory_space<vmem>>, %arg4: memref<128x128xbf16, #tpu.memory_space<vmem>>) attributes {dimension_semantics = [#tpu.dimension_semantics<parallel>], iteration_bounds = array<i64: 2>, scalar_prefetch = 0 : i64, scratch_operands = 0 : i64, tpu.core_type = #tpu.core_type<tc>, window_params = [{transform_indices = @transform_0, window_bounds = array<i64: 128, 576>}, {pipeline_mode = #tpu.pipeline_mode<synchronous>, transform_indices = @transform_1, window_bounds = array<i64: 576, 128>}, {pipeline_mode = #tpu.pipeline_mode<synchronous>, transform_indices = @transform_2, window_bounds = array<i64: 1, 128>}, {transform_indices = @transform_3, window_bounds = array<i64: 128, 128>}]} {
    %c0 = arith.constant 0 : index
    %c0_0 = arith.constant 0 : index
    %0 = vector.load %arg1[%c0, %c0_0] : memref<128x576xbf16, #tpu.memory_space<vmem>>, vector<128x576xbf16>
    %c0_1 = arith.constant 0 : index
    %c0_2 = arith.constant 0 : index
    %1 = vector.load %arg2[%c0_1, %c0_2] : memref<576x128xbf16, #tpu.memory_space<vmem>>, vector<576x128xbf16>
    %cst = arith.constant dense<0.000000e+00> : vector<128x128xf32>
    %2 = tpu.matmul %0, %1, %cst {dimension_numbers = #tpu.dot_dimension_numbers<[1], [0], [0], [1], [0, 0, 1, 1], [], []>} : vector<128x576xbf16>, vector<576x128xbf16>, vector<128x128xf32> -> vector<128x128xf32>
    %c0_3 = arith.constant 0 : index
    %c0_4 = arith.constant 0 : index
    %3 = vector.load %arg3[%c0_3, %c0_4] : memref<1x128xf32, #tpu.memory_space<vmem>>, vector<1x128xf32>
    %4 = vector.broadcast %3 : vector<1x128xf32> to vector<128x128xf32>
    %5 = arith.addf %2, %4 : vector<128x128xf32>
    %cst_5 = arith.constant 0.000000e+00 : f32
    %6 = vector.broadcast %cst_5 : f32 to vector<128x128xf32>
    %7 = arith.cmpf oge, %5, %6 : vector<128x128xf32>
    %cst_6 = arith.constant 0.00999999977 : f32
    %8 = vector.broadcast %cst_6 : f32 to vector<128x128xf32>
    %9 = arith.mulf %5, %8 : vector<128x128xf32>
    %10 = arith.select %7, %5, %9 : vector<128x128xi1>, vector<128x128xf32>
    %11 = arith.truncf %10 : vector<128x128xf32> to vector<128x128xbf16>
    %c0_7 = arith.constant 0 : index
    %c0_8 = arith.constant 0 : index
    %12 = vector.load %arg4[%c0_7, %c0_8] : memref<128x128xbf16, #tpu.memory_space<vmem>>, vector<128x128xbf16>
    tpu.vector_store %arg4[%c0_7, %c0_8], %11 {strides = array<i32>} : memref<128x128xbf16, #tpu.memory_space<vmem>>, vector<128x128xbf16>,
    return
  }
  func.func @transform_0(%arg0: i32) -> (i32, i32) {
    %c0_i32 = arith.constant 0 : i32
    %c0_i32_0 = arith.constant 0 : i32
    return %arg0, %c0_i32 : i32, i32
  }
  func.func @transform_1(%arg0: i32) -> (i32, i32) {
    %c0_i32 = arith.constant 0 : i32
    %c0_i32_0 = arith.constant 0 : i32
    %c0_i32_1 = arith.constant 0 : i32
    return %c0_i32, %c0_i32_0 : i32, i32
  }
  func.func @transform_2(%arg0: i32) -> (i32, i32) {
    %c0_i32 = arith.constant 0 : i32
    %c0_i32_0 = arith.constant 0 : i32
    %c0_i32_1 = arith.constant 0 : i32
    return %c0_i32, %c0_i32_0 : i32, i32
  }
  func.func @transform_3(%arg0: i32) -> (i32, i32) {
    %c0_i32 = arith.constant 0 : i32
    %c0_i32_0 = arith.constant 0 : i32
    return %arg0, %c0_i32 : i32, i32
  }
}

module attributes {stable_mosaic.version = 11 : i64} {
  func.func @_mm_bias_act_kernel(%arg0: i32, %arg1: memref<32x1152xbf16, #tpu.memory_space<vmem>>, %arg2: memref<1152x128xbf16, #tpu.memory_space<vmem>>, %arg3: memref<1x128xf32, #tpu.memory_space<vmem>>, %arg4: memref<32x128xf32, #tpu.memory_space<vmem>>) attributes {dimension_semantics = [#tpu.dimension_semantics<parallel>], iteration_bounds = array<i64: 2>, scalar_prefetch = 0 : i64, scratch_operands = 0 : i64, tpu.core_type = #tpu.core_type<tc>, window_params = [{transform_indices = @transform_0, window_bounds = array<i64: 32, 1152>}, {pipeline_mode = #tpu.pipeline_mode<synchronous>, transform_indices = @transform_1, window_bounds = array<i64: 1152, 128>}, {pipeline_mode = #tpu.pipeline_mode<synchronous>, transform_indices = @transform_2, window_bounds = array<i64: 1, 128>}, {transform_indices = @transform_3, window_bounds = array<i64: 32, 128>}]} {
    %c0 = arith.constant 0 : index
    %c0_0 = arith.constant 0 : index
    %0 = vector.load %arg1[%c0, %c0_0] : memref<32x1152xbf16, #tpu.memory_space<vmem>>, vector<32x1152xbf16>
    %c0_1 = arith.constant 0 : index
    %c0_2 = arith.constant 0 : index
    %1 = vector.load %arg2[%c0_1, %c0_2] : memref<1152x128xbf16, #tpu.memory_space<vmem>>, vector<1152x128xbf16>
    %cst = arith.constant dense<0.000000e+00> : vector<32x128xf32>
    %2 = tpu.matmul %0, %1, %cst {dimension_numbers = #tpu.dot_dimension_numbers<[1], [0], [0], [1], [0, 0, 1, 1], [], []>} : vector<32x1152xbf16>, vector<1152x128xbf16>, vector<32x128xf32> -> vector<32x128xf32>
    %c0_3 = arith.constant 0 : index
    %c0_4 = arith.constant 0 : index
    %3 = vector.load %arg3[%c0_3, %c0_4] : memref<1x128xf32, #tpu.memory_space<vmem>>, vector<1x128xf32>
    %4 = vector.broadcast %3 : vector<1x128xf32> to vector<32x128xf32>
    %5 = arith.addf %2, %4 : vector<32x128xf32>
    %c0_5 = arith.constant 0 : index
    %c0_6 = arith.constant 0 : index
    %6 = vector.load %arg4[%c0_5, %c0_6] : memref<32x128xf32, #tpu.memory_space<vmem>>, vector<32x128xf32>
    tpu.vector_store %arg4[%c0_5, %c0_6], %5 {strides = array<i32>} : memref<32x128xf32, #tpu.memory_space<vmem>>, vector<32x128xf32>,
    return
  }
  func.func @transform_0(%arg0: i32) -> (i32, i32) {
    %c0_i32 = arith.constant 0 : i32
    %c0_i32_0 = arith.constant 0 : i32
    return %arg0, %c0_i32 : i32, i32
  }
  func.func @transform_1(%arg0: i32) -> (i32, i32) {
    %c0_i32 = arith.constant 0 : i32
    %c0_i32_0 = arith.constant 0 : i32
    %c0_i32_1 = arith.constant 0 : i32
    return %c0_i32, %c0_i32_0 : i32, i32
  }
  func.func @transform_2(%arg0: i32) -> (i32, i32) {
    %c0_i32 = arith.constant 0 : i32
    %c0_i32_0 = arith.constant 0 : i32
    %c0_i32_1 = arith.constant 0 : i32
    return %c0_i32, %c0_i32_0 : i32, i32
  }
  func.func @transform_3(%arg0: i32) -> (i32, i32) {
    %c0_i32 = arith.constant 0 : i32
    %c0_i32_0 = arith.constant 0 : i32
    return %arg0, %c0_i32 : i32, i32
  }
}

</mosaic_0001>

<llo_original>
// kernel: encoder_forward.3
$region0: #{encoder_forward.3}
  #allocation0 [shape = 'u32[]', space=smem, size = 0x4, offset = 0x4, fixed_abs, tag = 'smem constant byte address 0x4 - core index']
  #allocation1 [shape = 'u32[144,128]{1,0:T(1,128)}', space=vmem, size = 0x12000, scoped, tag = 'internal scratch']
  %s0 = inlined_call_operand.vmem [shape: bf16[1024,27], index: 0, kind: input, shape index: {}]
  %s1 = inlined_call_operand.vmem [shape: bf16[27,128], index: 1, kind: input, shape index: {}]
  %s2 = inlined_call_operand.vmem [shape: f32[1,128], index: 2, kind: input, shape index: {}]
  %s3 = inlined_call_operand.vmem [shape: bf16[1024,128], index: 3, kind: output, shape index: {}]
  %s4 = sld [smem:[#allocation0]]
  $region45: #{encoder_forward.3} parent=0
    _
  %s6 = ssub.s32 1, %s4
  %s7 = scalar_select 0, %s6, %s4
  loop: start=0, step=1, limit=4
  $region2: #{encoder_forward.3} parent=0 // loop_pre_header
    _
  $region3: #{encoder_forward.3} parent=0 // loop_header
    %s9 = sphi 0, %s13
    %p10 = scmp.ge.s32.totalorder %s9, 4
    %s19 = sphi 0, %s21
    %s22 = sphi 0, %s19
    %s23 = sphi 0, %s22
    %s39 = sphi 0, %s23
    %s43 = sphi 0, %s43
    %s45 = sphi 0, %s43
    %s46 = sphi 0, %s45
    %s60 = sphi 0, %s46
    %s64 = sphi 0, %s64
    %s66 = sphi 0, %s64
    %s67 = sphi 0, %s66
    %s81 = sphi 0, %s67
    %s87 = sphi 0, %s89
    %s90 = sphi 0, %s87
    %s91 = sphi 0, %s90
    %s107 = sphi 0, %s91
  $region4: #{encoder_forward.3} parent=0 // loop_header_branch
    %12 = sbr.rel (%p10) target = $region8
  $region5: #{encoder_forward.3} parent=0 // loop_body
    %s14 = ssub.s32 %s9, 1
    %s15 = ssub.s32 %s9, 2
    %s16 = sadd.s32 %s9, 1
    %s17 = ssub.s32 %s9, %s16
    %p18 = scmp.eq.s32.totalorder %s17, 0
    %s20 = sadd.s32 %s19, 1
    %s21 = scalar_select %p18, %s19, %s20
    %p24 = pneg %p18
    %p25 = scmp.eq.s32.totalorder %s9, 1
    %p26 = por %p24, %p25
    %p27 = scmp.ne.s32.totalorder %s19, %s22
    %p28 = scmp.eq.s32.totalorder %s9, 0
    %p29 = por %p27, %p28
    %p30 = scmp.ne.s32.totalorder %s19, %s22
    %p31 = scmp.eq.s32.totalorder %s14, 1
    %p32 = por %p30, %p31
    %p33 = scmp.ne.s32.totalorder %s22, %s23
    %p34 = scmp.eq.s32.totalorder %s14, 0
    %p35 = por %p33, %p34
    %p36 = scmp.ne.s32.totalorder %s22, %s23
    %p37 = scmp.eq.s32.totalorder %s15, 1
    %p38 = por %p36, %p37
    %p40 = scmp.ne.s32.totalorder %s23, %s39
    %p41 = scmp.eq.s32.totalorder %s15, 0
    %p42 = por %p40, %p41
    %s44 = sadd.s32 %s43, 1
    %p47 = scmp.eq.s32.totalorder %s9, 1
    %p48 = scmp.ne.s32.totalorder %s43, %s45
    %p49 = scmp.eq.s32.totalorder %s9, 0
    %p50 = por %p48, %p49
    %p51 = scmp.ne.s32.totalorder %s43, %s45
    %p52 = scmp.eq.s32.totalorder %s14, 1
    %p53 = por %p51, %p52
    %p54 = scmp.ne.s32.totalorder %s45, %s46
    %p55 = scmp.eq.s32.totalorder %s14, 0
    %p56 = por %p54, %p55
    %p57 = scmp.ne.s32.totalorder %s45, %s46
    %p58 = scmp.eq.s32.totalorder %s15, 1
    %p59 = por %p57, %p58
    %p61 = scmp.ne.s32.totalorder %s46, %s60
    %p62 = scmp.eq.s32.totalorder %s15, 0
    %p63 = por %p61, %p62
    %s65 = sadd.s32 %s64, 1
    %p68 = scmp.eq.s32.totalorder %s9, 1
    %p69 = scmp.ne.s32.totalorder %s64, %s66
    %p70 = scmp.eq.s32.totalorder %s9, 0
    %p71 = por %p69, %p70
    %p72 = scmp.ne.s32.totalorder %s64, %s66
    %p73 = scmp.eq.s32.totalorder %s14, 1
    %p74 = por %p72, %p73
    %p75 = scmp.ne.s32.totalorder %s66, %s67
    %p76 = scmp.eq.s32.totalorder %s14, 0
    %p77 = por %p75, %p76
    %p78 = scmp.ne.s32.totalorder %s66, %s67
    %p79 = scmp.eq.s32.totalorder %s15, 1
    %p80 = por %p78, %p79
    %p82 = scmp.ne.s32.totalorder %s67, %s81
    %p83 = scmp.eq.s32.totalorder %s15, 0
    %p84 = por %p82, %p83
    %s85 = ssub.s32 %s9, %s16
    %p86 = scmp.eq.s32.totalorder %s85, 0
    %s88 = sadd.s32 %s87, 1
    %s89 = scalar_select %p86, %s87, %s88
    %p92 = pneg %p86
    %p93 = scmp.eq.s32.totalorder %s9, 1
    %p94 = por %p92, %p93
    %p95 = scmp.ne.s32.totalorder %s87, %s90
    %p96 = scmp.eq.s32.totalorder %s9, 0
    %p97 = por %p95, %p96
    %p98 = scmp.ne.s32.totalorder %s87, %s90
    %p99 = scmp.eq.s32.totalorder %s14, 1
    %p100 = por %p98, %p99
    %p101 = scmp.ne.s32.totalorder %s90, %s91
    %p102 = scmp.eq.s32.totalorder %s14, 0
    %p103 = por %p101, %p102
    %p104 = scmp.ne.s32.totalorder %s90, %s91
    %p105 = scmp.eq.s32.totalorder %s15, 1
    %p106 = por %p104, %p105
    %p108 = scmp.ne.s32.totalorder %s91, %s107
    %p109 = scmp.eq.s32.totalorder %s15, 0
    %p110 = por %p108, %p109
    %p111 = scmp.le.s32.totalorder 1, %s9
    %p112 = scmp.lt.s32.totalorder %s9, 3
    %p113 = pnand %p111, %p112
    %p114 = pneg %p113
    // Predicated region
    $region9: #{encoder_forward.3} parent=5 // pred_check
      _
    $region10: #{encoder_forward.3} parent=5 // pred_check_branch
      %116 = sbr.rel (%p113) target = $region12
    $region11: #{encoder_forward.3} parent=5 // pred_region
      %s117 = ssub.s32 %s9, 1
      // Predicated region
      $region13: #{encoder_forward.3} parent=11 // pred_check
        %p118 = pneg %p56
      $region14: #{encoder_forward.3} parent=11 // pred_check_branch
        %120 = sbr.rel (%p118) target = $region16
      $region15: #{encoder_forward.3} parent=11 // pred_region
        _
      $region16: #{encoder_forward.3} parent=11 // pred_fallthru
        _
      // Predicated region
      $region17: #{encoder_forward.3} parent=11 // pred_check
        %p121 = pneg %p77
      $region18: #{encoder_forward.3} parent=11 // pred_check_branch
        %123 = sbr.rel (%p121) target = $region20
      $region19: #{encoder_forward.3} parent=11 // pred_region
        _
      $region20: #{encoder_forward.3} parent=11 // pred_fallthru
        _
    $region12: #{encoder_forward.3} parent=5 // pred_fallthru
      _
    %p124 = scmp.lt.s32.totalorder %s9, 2
    // Predicated region
    $region21: #{encoder_forward.3} parent=5 // pred_check
      %p125 = pneg %p124
    $region22: #{encoder_forward.3} parent=5 // pred_check_branch
      %127 = sbr.rel (%p125) target = $region24
    $region23: #{encoder_forward.3} parent=5 // pred_region
      // Predicated region
      $region25: #{encoder_forward.3} parent=23 // pred_check
        %p128 = pneg %p29
      $region26: #{encoder_forward.3} parent=23 // pred_check_branch
        %130 = sbr.rel (%p128) target = $region28
      $region27: #{encoder_forward.3} parent=23 // pred_region
        %s131 = smul.u32 64, %s9
        %p132 = scmp.lt.s32.totalorder %s131, 127
        %s133 = scalar_select %p132, %s131, 127
        %s134 = smul.addr %s133, 4
        %s135 = scalar_lea.vmem %s0, %s134
        %s136 = smul.u32 64, %s9
      $region28: #{encoder_forward.3} parent=23 // pred_fallthru
        _
    $region24: #{encoder_forward.3} parent=5 // pred_fallthru
      _
    %p137 = scmp.le.s32.totalorder 1, %s9
    %p138 = scmp.lt.s32.totalorder %s9, 3
    %p139 = pnand %p137, %p138
    %p140 = pneg %p139
    // Predicated region
    $region29: #{encoder_forward.3} parent=5 // pred_check
      _
    $region30: #{encoder_forward.3} parent=5 // pred_check_branch
      %142 = sbr.rel (%p139) target = $region32
    $region31: #{encoder_forward.3} parent=5 // pred_region
      %s143 = ssub.s32 %s9, 1
      %s144 = smul.u32 64, %s14
      %p145 = scmp.lt.s32.totalorder %s144, 127
      %s146 = scalar_select %p145, %s144, 127
      %s147 = smul.addr %s146, 4
      %s148 = scalar_lea.vmem %s0, %s147
      %p149 = pneg %p35
      %p150 = pneg %p32
      %p151 = pneg %p56
      %p152 = pneg %p53
      %p153 = pneg %p77
      %p154 = pneg %p74
      %p155 = pneg %p103
      %p156 = pneg %p100
      %s157 = smul.u32 64, %s14
      %p158 = scmp.lt.s32.totalorder %s157, 127
      %s159 = scalar_select %p158, %s157, 127
      %s160 = smul.addr %s159, 4
      %s161 = scalar_lea.vmem %s3, %s160
      %s162 = smul.u32 64, %s14
      %p163 = scmp.lt.s32.totalorder %s162, 127
      %s164 = scalar_select %p163, %s162, 127
      %s165 = smul.addr %s164, 4
      %s166 = scalar_lea.vmem %s0, %s165
      %s167 = smul.u32 64, %s14
      %s168 = smul.u32 64, %s14
      %p169 = scmp.lt.s32.totalorder %s168, 127
      %s170 = scalar_select %p169, %s168, 127
      %s171 = smul.addr %s170, 4
      %s172 = scalar_lea.vmem %s3, %s171
      %s173 = smul.u32 64, %s14
      %v175 = vld [vmem:[%s166] sm:$0xf]
      %v176 = vld [vmem:[%s166 + $0x4] sm:$0xf]
      %v177 = vld [vmem:[%s166 + $0x8] sm:$0xf]
      %v178 = vld [vmem:[%s166 + $0xc] sm:$0xf]
      %v179 = vld [vmem:[%s166 + $0x10] sm:$0xf]
      %v180 = vld [vmem:[%s166 + $0x14] sm:$0xf]
      %v181 = vld [vmem:[%s166 + $0x18] sm:$0xf]
      %v182 = vld [vmem:[%s166 + $0x1c] sm:$0xf]
      %v183 = vld [vmem:[%s166 + $0x20] sm:$0xf]
      %v184 = vld [vmem:[%s166 + $0x24] sm:$0xf]
      %v185 = vld [vmem:[%s166 + $0x28] sm:$0xf]
      %v186 = vld [vmem:[%s166 + $0x2c] sm:$0xf]
      %v187 = vld [vmem:[%s166 + $0x30] sm:$0xf]
      %v188 = vld [vmem:[%s166 + $0x34] sm:$0xf]
      %v189 = vld [vmem:[%s166 + $0x38] sm:$0xf]
      %v190 = vld [vmem:[%s166 + $0x3c] sm:$0xf]
      %v191 = vld [vmem:[%s166 + $0x40] sm:$0xf]
      %v192 = vld [vmem:[%s166 + $0x44] sm:$0xf]
      %v193 = vld [vmem:[%s166 + $0x48] sm:$0xf]
      %v194 = vld [vmem:[%s166 + $0x4c] sm:$0xf]
      %v195 = vld [vmem:[%s166 + $0x50] sm:$0xf]
      %v196 = vld [vmem:[%s166 + $0x54] sm:$0xf]
      %v197 = vld [vmem:[%s166 + $0x58] sm:$0xf]
      %v198 = vld [vmem:[%s166 + $0x5c] sm:$0xf]
      %v199 = vld [vmem:[%s166 + $0x60] sm:$0xf]
      %v200 = vld [vmem:[%s166 + $0x64] sm:$0xf]
      %v201 = vld [vmem:[%s166 + $0x68] sm:$0xf]
      %v202 = vld [vmem:[%s166 + $0x6c] sm:$0xf]
      %v203 = vld [vmem:[%s166 + $0x70] sm:$0xf]
      %v204 = vld [vmem:[%s166 + $0x74] sm:$0xf]
      %v205 = vld [vmem:[%s166 + $0x78] sm:$0xf]
      %v206 = vld [vmem:[%s166 + $0x7c] sm:$0xf]
      %v207 = vld [vmem:[%s166 + $0x80] sm:$0xf]
      %v208 = vld [vmem:[%s166 + $0x84] sm:$0xf]
      %v209 = vld [vmem:[%s166 + $0x88] sm:$0xf]
      %v210 = vld [vmem:[%s166 + $0x8c] sm:$0xf]
      %v211 = vld [vmem:[%s166 + $0x90] sm:$0xf]
      %v212 = vld [vmem:[%s166 + $0x94] sm:$0xf]
      %v213 = vld [vmem:[%s166 + $0x98] sm:$0xf]
      %v214 = vld [vmem:[%s166 + $0x9c] sm:$0xf]
      %v215 = vld [vmem:[%s166 + $0xa0] sm:$0xf]
      %v216 = vld [vmem:[%s166 + $0xa4] sm:$0xf]
      %v217 = vld [vmem:[%s166 + $0xa8] sm:$0xf]
      %v218 = vld [vmem:[%s166 + $0xac] sm:$0xf]
      %v219 = vld [vmem:[%s166 + $0xb0] sm:$0xf]
      %v220 = vld [vmem:[%s166 + $0xb4] sm:$0xf]
      %v221 = vld [vmem:[%s166 + $0xb8] sm:$0xf]
      %v222 = vld [vmem:[%s166 + $0xbc] sm:$0xf]
      %v223 = vld [vmem:[%s166 + $0xc0] sm:$0xf]
      %v224 = vld [vmem:[%s166 + $0xc4] sm:$0xf]
      %v225 = vld [vmem:[%s166 + $0xc8] sm:$0xf]
      %v226 = vld [vmem:[%s166 + $0xcc] sm:$0xf]
      %v227 = vld [vmem:[%s166 + $0xd0] sm:$0xf]
      %v228 = vld [vmem:[%s166 + $0xd4] sm:$0xf]
      %v229 = vld [vmem:[%s166 + $0xd8] sm:$0xf]
      %v230 = vld [vmem:[%s166 + $0xdc] sm:$0xf]
      %v231 = vld [vmem:[%s166 + $0xe0] sm:$0xf]
      %v232 = vld [vmem:[%s166 + $0xe4] sm:$0xf]
      %v233 = vld [vmem:[%s166 + $0xe8] sm:$0xf]
      %v234 = vld [vmem:[%s166 + $0xec] sm:$0xf]
      %v235 = vld [vmem:[%s166 + $0xf0] sm:$0xf]
      %v236 = vld [vmem:[%s166 + $0xf4] sm:$0xf]
      %v237 = vld [vmem:[%s166 + $0xf8] sm:$0xf]
      %v238 = vld [vmem:[%s166 + $0xfc] sm:$0xf]
      %v239 = vld [vmem:[%s1] sm:$0xf]
      %v240 = vld [vmem:[%s1 + $0x4] sm:$0xf]
      %v241 = vld [vmem:[%s1 + $0x8] sm:$0xf]
      %v242 = vld [vmem:[%s1 + $0xc] sm:$0x3]
      %v243 = vld [vmem:[%s2] sm:$0x1]
      %v245 = vlaneseq
      %v246 = vshrl.u32 %v245, 7
      %v247 = vsub.s32 0, %v246
      %v248 = vrot.slane %v243, %v247
      %v314 = vunpack.c.l.b16 %v175
      %v315 = vunpack.c.l.b16 %v176
      %v316 = vunpack.c.l.b16 %v177
      %v317 = vunpack.c.l.b16 %v178
      %v318 = vunpack.c.l.b16 %v179
      %v319 = vunpack.c.l.b16 %v180
      %v320 = vunpack.c.l.b16 %v181
      %v321 = vunpack.c.l.b16 %v182
      %v322 = vunpack.c.l.b16 %v183
      %v323 = vunpack.c.l.b16 %v184
      %v324 = vunpack.c.l.b16 %v185
      %v325 = vunpack.c.l.b16 %v186
      %v326 = vunpack.c.l.b16 %v187
      %v327 = vunpack.c.l.b16 %v188
      %v328 = vunpack.c.l.b16 %v189
      %v329 = vunpack.c.l.b16 %v190
      %v330 = vunpack.c.l.b16 %v191
      %v331 = vunpack.c.l.b16 %v192
      %v332 = vunpack.c.l.b16 %v193
      %v333 = vunpack.c.l.b16 %v194
      %v334 = vunpack.c.l.b16 %v195
      %v335 = vunpack.c.l.b16 %v196
      %v336 = vunpack.c.l.b16 %v197
      %v337 = vunpack.c.l.b16 %v198
      %v338 = vunpack.c.l.b16 %v199
      %v339 = vunpack.c.l.b16 %v200
      %v340 = vunpack.c.l.b16 %v201
      %v341 = vunpack.c.l.b16 %v202
      %v342 = vunpack.c.l.b16 %v203
      %v343 = vunpack.c.l.b16 %v204
      %v344 = vunpack.c.l.b16 %v205
      %v345 = vunpack.c.l.b16 %v206
      %v346 = vunpack.c.l.b16 %v207
      %v347 = vunpack.c.l.b16 %v208
      %v348 = vunpack.c.l.b16 %v209
      %v349 = vunpack.c.l.b16 %v210
      %v350 = vunpack.c.l.b16 %v211
      %v351 = vunpack.c.l.b16 %v212
      %v352 = vunpack.c.l.b16 %v213
      %v353 = vunpack.c.l.b16 %v214
      %v354 = vunpack.c.l.b16 %v215
      %v355 = vunpack.c.l.b16 %v216
      %v356 = vunpack.c.l.b16 %v217
      %v357 = vunpack.c.l.b16 %v218
      %v358 = vunpack.c.l.b16 %v219
      %v359 = vunpack.c.l.b16 %v220
      %v360 = vunpack.c.l.b16 %v221
      %v361 = vunpack.c.l.b16 %v222
      %v362 = vunpack.c.l.b16 %v223
      %v363 = vunpack.c.l.b16 %v224
      %v364 = vunpack.c.l.b16 %v225
      %v365 = vunpack.c.l.b16 %v226
      %v366 = vunpack.c.l.b16 %v227
      %v367 = vunpack.c.l.b16 %v228
      %v368 = vunpack.c.l.b16 %v229
      %v369 = vunpack.c.l.b16 %v230
      %v370 = vunpack.c.l.b16 %v231
      %v371 = vunpack.c.l.b16 %v232
      %v372 = vunpack.c.l.b16 %v233
      %v373 = vunpack.c.l.b16 %v234
      %v374 = vunpack.c.l.b16 %v235
      %v375 = vunpack.c.l.b16 %v236
      %v376 = vunpack.c.l.b16 %v237
      %v377 = vunpack.c.l.b16 %v238
      %v378 = vpack.c.b16 %v315, %v314
      %v379 = vpack.c.b16 %v317, %v316
      %v380 = vpack.c.b16 %v319, %v318
      %v381 = vpack.c.b16 %v321, %v320
      %v382 = vpack.c.b16 %v323, %v322
      %v383 = vpack.c.b16 %v325, %v324
      %v384 = vpack.c.b16 %v327, %v326
      %v385 = vpack.c.b16 %v329, %v328
      %v386 = vpack.c.b16 %v331, %v330
      %v387 = vpack.c.b16 %v333, %v332
      %v388 = vpack.c.b16 %v335, %v334
      %v389 = vpack.c.b16 %v337, %v336
      %v390 = vpack.c.b16 %v339, %v338
      %v391 = vpack.c.b16 %v341, %v340
      %v392 = vpack.c.b16 %v343, %v342
      %v393 = vpack.c.b16 %v345, %v344
      %v394 = vpack.c.b16 %v347, %v346
      %v395 = vpack.c.b16 %v349, %v348
      %v396 = vpack.c.b16 %v351, %v350
      %v397 = vpack.c.b16 %v353, %v352
      %v398 = vpack.c.b16 %v355, %v354
      %v399 = vpack.c.b16 %v357, %v356
      %v400 = vpack.c.b16 %v359, %v358
      %v401 = vpack.c.b16 %v361, %v360
      %v402 = vpack.c.b16 %v363, %v362
      %v403 = vpack.c.b16 %v365, %v364
      %v404 = vpack.c.b16 %v367, %v366
      %v405 = vpack.c.b16 %v369, %v368
      %v406 = vpack.c.b16 %v371, %v370
      %v407 = vpack.c.b16 %v373, %v372
      %v408 = vpack.c.b16 %v375, %v374
      %v409 = vpack.c.b16 %v377, %v376
      %v414 = vunpack.c.l.b16 %v239
      %v415 = vunpack.c.l.b16 %v240
      %v416 = vunpack.c.l.b16 %v241
      %v417 = vunpack.c.l.b16 %v242
      %v418 = vpack.c.b16 %v415, %v414
      %v419 = vpack.c.b16 %v417, %v416
      %vm421 = vcmask 220160
      %v423 = vsel %vm421, %v378, 0
      %v426 = vsel %vm421, %v379, 0
      %v429 = vsel %vm421, %v380, 0
      %v432 = vsel %vm421, %v381, 0
      %v435 = vsel %vm421, %v382, 0
      %v438 = vsel %vm421, %v383, 0
      %v441 = vsel %vm421, %v384, 0
      %v444 = vsel %vm421, %v385, 0
      %v447 = vsel %vm421, %v386, 0
      %v450 = vsel %vm421, %v387, 0
      %v453 = vsel %vm421, %v388, 0
      %v456 = vsel %vm421, %v389, 0
      %v459 = vsel %vm421, %v390, 0
      %v462 = vsel %vm421, %v391, 0
      %v465 = vsel %vm421, %v392, 0
      %v468 = vsel %vm421, %v393, 0
      %v471 = vsel %vm421, %v394, 0
      %v474 = vsel %vm421, %v395, 0
      %v477 = vsel %vm421, %v396, 0
      %v480 = vsel %vm421, %v397, 0
      %v483 = vsel %vm421, %v398, 0
      %v486 = vsel %vm421, %v399, 0
      %v489 = vsel %vm421, %v400, 0
      %v492 = vsel %vm421, %v401, 0
      %v495 = vsel %vm421, %v402, 0
      %v498 = vsel %vm421, %v403, 0
      %v501 = vsel %vm421, %v404, 0
      %v504 = vsel %vm421, %v405, 0
      %v507 = vsel %vm421, %v406, 0
      %v510 = vsel %vm421, %v407, 0
      %v513 = vsel %vm421, %v408, 0
      %v516 = vsel %vm421, %v409, 0
      %vm518 = vcmask 1044480
      %vm519 = vcmask 1045504
      %v520 = vsel %vm518, 4294967295, 65535
      %v521 = vsel %vm519, %v520, 0
      %v523 = vand.u32 %v419, %v521
      %525 = vmatprep.subr.bf16.mxu0 0
      %526 = vmatpush1.bf16.msra.mxu0 %v418
      %527 = vmatprep.subr.bf16.mxu0 0
      %528 = vmatpush1.bf16.msra.mxu0 %v523
      %529 = vmatprep.subr.bf16.mxu0 0
      %530 = vmatpush1.bf16.msra.mxu0 0
      %531 = vmatprep.subr.bf16.mxu0 0
      %532 = vmatpush1.bf16.msra.mxu0 0
      %533 = vmatprep.subr.bf16.mxu0 0
      %534 = vmatpush1.bf16.msra.mxu0 0
      %535 = vmatprep.subr.bf16.mxu0 0
      %536 = vmatpush1.bf16.msra.mxu0 0
      %537 = vmatprep.subr.bf16.mxu0 0
      %538 = vmatpush1.bf16.msra.mxu0 0
      %539 = vmatprep.subr.bf16.mxu0 0
      %540 = vmatpush1.bf16.msra.mxu0 0
      %541 = vmatprep.subr.bf16.mxu0 0
      %542 = vmatpush1.bf16.msra.mxu0 0
      %543 = vmatprep.subr.bf16.mxu0 0
      %544 = vmatpush1.bf16.msra.mxu0 0
      %545 = vmatprep.subr.bf16.mxu0 0
      %546 = vmatpush1.bf16.msra.mxu0 0
      %547 = vmatprep.subr.bf16.mxu0 0
      %548 = vmatpush1.bf16.msra.mxu0 0
      %549 = vmatprep.subr.bf16.mxu0 0
      %550 = vmatpush1.bf16.msra.mxu0 0
      %551 = vmatprep.subr.bf16.mxu0 0
      %552 = vmatpush1.bf16.msra.mxu0 0
      %553 = vmatprep.subr.bf16.mxu0 0
      %554 = vmatpush1.bf16.msra.mxu0 0
      %555 = vmatprep.subr.bf16.mxu0 0
      %556 = vmatpush1.bf16.msra.mxu0 0
      %557 = vmatprep.mubr.bf16.mxu0 0
      %558 = vmatmul.mubr.bf16.gmra.mrb[0].mxu0 %v423
      %v559 = vpop.f32.mrb[0].mxu0
      %v560 = vadd.f32 %v248, %v559
      %v561 = vpop.f32.mrb[0].mxu0
      %v562 = vpop.f32.mrb[0].mxu0
      %v563 = vadd.f32 %v248, %v562
      %v564 = vpop.f32.mrb[0].mxu0
      %565 = vmatprep.mubr.bf16.mxu0 0
      %566 = vmatmul.mubr.bf16.gmra.mrb[0].mxu0 %v426
      %v567 = vpop.f32.mrb[0].mxu0
      %v568 = vadd.f32 %v248, %v567
      %v569 = vpop.f32.mrb[0].mxu0
      %v570 = vpop.f32.mrb[0].mxu0
      %v571 = vadd.f32 %v248, %v570
      %v572 = vpop.f32.mrb[0].mxu0
      %573 = vmatprep.mubr.bf16.mxu0 0
      %574 = vmatmul.mubr.bf16.gmra.mrb[0].mxu0 %v429
      %v575 = vpop.f32.mrb[0].mxu0
      %v576 = vadd.f32 %v248, %v575
      %v577 = vpop.f32.mrb[0].mxu0
      %v578 = vpop.f32.mrb[0].mxu0
      %v579 = vadd.f32 %v248, %v578
      %v580 = vpop.f32.mrb[0].mxu0
      %581 = vmatprep.mubr.bf16.mxu0 0
      %582 = vmatmul.mubr.bf16.gmra.mrb[0].mxu0 %v432
      %v583 = vpop.f32.mrb[0].mxu0
      %v584 = vadd.f32 %v248, %v583
      %v585 = vpop.f32.mrb[0].mxu0
      %v586 = vpop.f32.mrb[0].mxu0
      %v587 = vadd.f32 %v248, %v586
      %v588 = vpop.f32.mrb[0].mxu0
      %589 = vmatprep.mubr.bf16.mxu0 0
      %590 = vmatmul.mubr.bf16.gmra.mrb[0].mxu0 %v435
      %v591 = vpop.f32.mrb[0].mxu0
      %v592 = vadd.f32 %v248, %v591
      %v593 = vpop.f32.mrb[0].mxu0
      %v594 = vpop.f32.mrb[0].mxu0
      %v595 = vadd.f32 %v248, %v594
      %v596 = vpop.f32.mrb[0].mxu0
      %597 = vmatprep.mubr.bf16.mxu0 0
      %598 = vmatmul.mubr.bf16.gmra.mrb[0].mxu0 %v438
      %v599 = vpop.f32.mrb[0].mxu0
      %v600 = vadd.f32 %v248, %v599
      %v601 = vpop.f32.mrb[0].mxu0
      %v602 = vpop.f32.mrb[0].mxu0
      %v603 = vadd.f32 %v248, %v602
      %v604 = vpop.f32.mrb[0].mxu0
      %605 = vmatprep.mubr.bf16.mxu0 0
      %606 = vmatmul.mubr.bf16.gmra.mrb[0].mxu0 %v441
      %v607 = vpop.f32.mrb[0].mxu0
      %v608 = vadd.f32 %v248, %v607
      %v609 = vpop.f32.mrb[0].mxu0
      %v610 = vpop.f32.mrb[0].mxu0
      %v611 = vadd.f32 %v248, %v610
      %v612 = vpop.f32.mrb[0].mxu0
      %613 = vmatprep.mubr.bf16.mxu0 0
      %614 = vmatmul.mubr.bf16.gmra.mrb[0].mxu0 %v444
      %v615 = vpop.f32.mrb[0].mxu0
      %v616 = vadd.f32 %v248, %v615
      %v617 = vpop.f32.mrb[0].mxu0
      %v618 = vpop.f32.mrb[0].mxu0
      %v619 = vadd.f32 %v248, %v618
      %v620 = vpop.f32.mrb[0].mxu0
      %621 = vmatprep.mubr.bf16.mxu0 0
      %622 = vmatmul.mubr.bf16.gmra.mrb[0].mxu0 %v447
      %v623 = vpop.f32.mrb[0].mxu0
      %v624 = vadd.f32 %v248, %v623
      %v625 = vpop.f32.mrb[0].mxu0
      %v626 = vpop.f32.mrb[0].mxu0
      %v627 = vadd.f32 %v248, %v626
      %v628 = vpop.f32.mrb[0].mxu0
      %629 = vmatprep.mubr.bf16.mxu0 0
      %630 = vmatmul.mubr.bf16.gmra.mrb[0].mxu0 %v450
      %v631 = vpop.f32.mrb[0].mxu0
      %v632 = vadd.f32 %v248, %v631
      %v633 = vpop.f32.mrb[0].mxu0
      %v634 = vpop.f32.mrb[0].mxu0
      %v635 = vadd.f32 %v248, %v634
      %v636 = vpop.f32.mrb[0].mxu0
      %637 = vmatprep.mubr.bf16.mxu0 0
      %638 = vmatmul.mubr.bf16.gmra.mrb[0].mxu0 %v453
      %v639 = vpop.f32.mrb[0].mxu0
      %v640 = vadd.f32 %v248, %v639
      %v641 = vpop.f32.mrb[0].mxu0
      %v642 = vpop.f32.mrb[0].mxu0
      %v643 = vadd.f32 %v248, %v642
      %v644 = vpop.f32.mrb[0].mxu0
      %645 = vmatprep.mubr.bf16.mxu0 0
      %646 = vmatmul.mubr.bf16.gmra.mrb[0].mxu0 %v456
      %v647 = vpop.f32.mrb[0].mxu0
      %v648 = vadd.f32 %v248, %v647
      %v649 = vpop.f32.mrb[0].mxu0
      %v650 = vpop.f32.mrb[0].mxu0
      %v651 = vadd.f32 %v248, %v650
      %v652 = vpop.f32.mrb[0].mxu0
      %653 = vmatprep.mubr.bf16.mxu0 0
      %654 = vmatmul.mubr.bf16.gmra.mrb[0].mxu0 %v459
      %v655 = vpop.f32.mrb[0].mxu0
      %v656 = vadd.f32 %v248, %v655
      %v657 = vpop.f32.mrb[0].mxu0
      %v658 = vpop.f32.mrb[0].mxu0
      %v659 = vadd.f32 %v248, %v658
      %v660 = vpop.f32.mrb[0].mxu0
      %661 = vmatprep.mubr.bf16.mxu0 0
      %662 = vmatmul.mubr.bf16.gmra.mrb[0].mxu0 %v462
      %v663 = vpop.f32.mrb[0].mxu0
      %v664 = vadd.f32 %v248, %v663
      %v665 = vpop.f32.mrb[0].mxu0
      %v666 = vpop.f32.mrb[0].mxu0
      %v667 = vadd.f32 %v248, %v666
      %v668 = vpop.f32.mrb[0].mxu0
      %669 = vmatprep.mubr.bf16.mxu0 0
      %670 = vmatmul.mubr.bf16.gmra.mrb[0].mxu0 %v465
      %v671 = vpop.f32.mrb[0].mxu0
      %v672 = vadd.f32 %v248, %v671
      %v673 = vpop.f32.mrb[0].mxu0
      %v674 = vpop.f32.mrb[0].mxu0
      %v675 = vadd.f32 %v248, %v674
      %v676 = vpop.f32.mrb[0].mxu0
      %677 = vmatprep.mubr.bf16.mxu0 0
      %678 = vmatmul.mubr.bf16.gmra.mrb[0].mxu0 %v468
      %v679 = vpop.f32.mrb[0].mxu0
      %v680 = vadd.f32 %v248, %v679
      %v681 = vpop.f32.mrb[0].mxu0
      %v682 = vpop.f32.mrb[0].mxu0
      %v683 = vadd.f32 %v248, %v682
      %v684 = vpop.f32.mrb[0].mxu0
      %685 = vmatprep.mubr.bf16.mxu0 0
      %686 = vmatmul.mubr.bf16.gmra.mrb[0].mxu0 %v471
      %v687 = vpop.f32.mrb[0].mxu0
      %v688 = vadd.f32 %v248, %v687
      %v689 = vpop.f32.mrb[0].mxu0
      %v690 = vpop.f32.mrb[0].mxu0
      %v691 = vadd.f32 %v248, %v690
      %v692 = vpop.f32.mrb[0].mxu0
      %693 = vmatprep.mubr.bf16.mxu0 0
      %694 = vmatmul.mubr.bf16.gmra.mrb[0].mxu0 %v474
      %v695 = vpop.f32.mrb[0].mxu0
      %v696 = vadd.f32 %v248, %v695
      %v697 = vpop.f32.mrb[0].mxu0
      %v698 = vpop.f32.mrb[0].mxu0
      %v699 = vadd.f32 %v248, %v698
      %v700 = vpop.f32.mrb[0].mxu0
      %701 = vmatprep.mubr.bf16.mxu0 0
      %702 = vmatmul.mubr.bf16.gmra.mrb[0].mxu0 %v477
      %v703 = vpop.f32.mrb[0].mxu0
      %v704 = vadd.f32 %v248, %v703
      %v705 = vpop.f32.mrb[0].mxu0
      %v706 = vpop.f32.mrb[0].mxu0
      %v707 = vadd.f32 %v248, %v706
      %v708 = vpop.f32.mrb[0].mxu0
      %709 = vmatprep.mubr.bf16.mxu0 0
      %710 = vmatmul.mubr.bf16.gmra.mrb[0].mxu0 %v480
      %v711 = vpop.f32.mrb[0].mxu0
      %v712 = vadd.f32 %v248, %v711
      %v713 = vpop.f32.mrb[0].mxu0
      %v714 = vpop.f32.mrb[0].mxu0
      %v715 = vadd.f32 %v248, %v714
      %v716 = vpop.f32.mrb[0].mxu0
      %717 = vmatprep.mubr.bf16.mxu0 0
      %718 = vmatmul.mubr.bf16.gmra.mrb[0].mxu0 %v483
      %v719 = vpop.f32.mrb[0].mxu0
      %v720 = vadd.f32 %v248, %v719
      %v721 = vpop.f32.mrb[0].mxu0
      %v722 = vpop.f32.mrb[0].mxu0
      %v723 = vadd.f32 %v248, %v722
      %v724 = vpop.f32.mrb[0].mxu0
      %725 = vmatprep.mubr.bf16.mxu0 0
      %726 = vmatmul.mubr.bf16.gmra.mrb[0].mxu0 %v486
      %v727 = vpop.f32.mrb[0].mxu0
      %v728 = vadd.f32 %v248, %v727
      %v729 = vpop.f32.mrb[0].mxu0
      %v730 = vpop.f32.mrb[0].mxu0
      %v731 = vadd.f32 %v248, %v730
      %v732 = vpop.f32.mrb[0].mxu0
      %733 = vmatprep.mubr.bf16.mxu0 0
      %734 = vmatmul.mubr.bf16.gmra.mrb[0].mxu0 %v489
      %v735 = vpop.f32.mrb[0].mxu0
      %v736 = vadd.f32 %v248, %v735
      %v737 = vpop.f32.mrb[0].mxu0
      %v738 = vpop.f32.mrb[0].mxu0
      %v739 = vadd.f32 %v248, %v738
      %v740 = vpop.f32.mrb[0].mxu0
      %741 = vmatprep.mubr.bf16.mxu0 0
      %742 = vmatmul.mubr.bf16.gmra.mrb[0].mxu0 %v492
      %v743 = vpop.f32.mrb[0].mxu0
      %v744 = vadd.f32 %v248, %v743
      %v745 = vpop.f32.mrb[0].mxu0
      %v746 = vpop.f32.mrb[0].mxu0
      %v747 = vadd.f32 %v248, %v746
      %v748 = vpop.f32.mrb[0].mxu0
      %749 = vmatprep.mubr.bf16.mxu0 0
      %750 = vmatmul.mubr.bf16.gmra.mrb[0].mxu0 %v495
      %v751 = vpop.f32.mrb[0].mxu0
      %v752 = vadd.f32 %v248, %v751
      %v753 = vpop.f32.mrb[0].mxu0
      %v754 = vpop.f32.mrb[0].mxu0
      %v755 = vadd.f32 %v248, %v754
      %v756 = vpop.f32.mrb[0].mxu0
      %757 = vmatprep.mubr.bf16.mxu0 0
      %758 = vmatmul.mubr.bf16.gmra.mrb[0].mxu0 %v498
      %v759 = vpop.f32.mrb[0].mxu0
      %v760 = vadd.f32 %v248, %v759
      %v761 = vpop.f32.mrb[0].mxu0
      %v762 = vpop.f32.mrb[0].mxu0
      %v763 = vadd.f32 %v248, %v762
      %v764 = vpop.f32.mrb[0].mxu0
      %765 = vmatprep.mubr.bf16.mxu0 0
      %766 = vmatmul.mubr.bf16.gmra.mrb[0].mxu0 %v501
      %v767 = vpop.f32.mrb[0].mxu0
      %v768 = vadd.f32 %v248, %v767
      %v769 = vpop.f32.mrb[0].mxu0
      %v770 = vpop.f32.mrb[0].mxu0
      %v771 = vadd.f32 %v248, %v770
      %v772 = vpop.f32.mrb[0].mxu0
      %773 = vmatprep.mubr.bf16.mxu0 0
      %774 = vmatmul.mubr.bf16.gmra.mrb[0].mxu0 %v504
      %v775 = vpop.f32.mrb[0].mxu0
      %v776 = vadd.f32 %v248, %v775
      %v777 = vpop.f32.mrb[0].mxu0
      %v778 = vpop.f32.mrb[0].mxu0
      %v779 = vadd.f32 %v248, %v778
      %v780 = vpop.f32.mrb[0].mxu0
      %781 = vmatprep.mubr.bf16.mxu0 0
      %782 = vmatmul.mubr.bf16.gmra.mrb[0].mxu0 %v507
      %v783 = vpop.f32.mrb[0].mxu0
      %v784 = vadd.f32 %v248, %v783
      %v785 = vpop.f32.mrb[0].mxu0
      %v786 = vpop.f32.mrb[0].mxu0
      %v787 = vadd.f32 %v248, %v786
      %v788 = vpop.f32.mrb[0].mxu0
      %789 = vmatprep.mubr.bf16.mxu0 0
      %790 = vmatmul.mubr.bf16.gmra.mrb[0].mxu0 %v510
      %v791 = vpop.f32.mrb[0].mxu0
      %v792 = vadd.f32 %v248, %v791
      %v793 = vpop.f32.mrb[0].mxu0
      %v794 = vpop.f32.mrb[0].mxu0
      %v795 = vadd.f32 %v248, %v794
      %v796 = vpop.f32.mrb[0].mxu0
      %797 = vmatprep.mubr.bf16.mxu0 0
      %798 = vmatmul.mubr.bf16.gmra.mrb[0].mxu0 %v513
      %v799 = vpop.f32.mrb[0].mxu0
      %v800 = vadd.f32 %v248, %v799
      %v801 = vpop.f32.mrb[0].mxu0
      %v802 = vpop.f32.mrb[0].mxu0
      %v803 = vadd.f32 %v248, %v802
      %v804 = vpop.f32.mrb[0].mxu0
      %805 = vmatprep.mubr.bf16.mxu0 0
      %806 = vmatmul.mubr.bf16.gmra.mrb[0].mxu0 %v516
      %v807 = vpop.f32.mrb[0].mxu0
      %v808 = vadd.f32 %v248, %v807
      %v809 = vpop.f32.mrb[0].mxu0
      %v810 = vpop.f32.mrb[0].mxu0
      %v811 = vadd.f32 %v248, %v810
      %v812 = vpop.f32.mrb[0].mxu0
      %813 = vdwg.mxu0
      %vm814 = vcmp.ge.f32.partialorder %v560, 0.0
      %vm815 = vcmp.ge.f32.partialorder %v563, 0.0
      %vm816 = vcmp.ge.f32.partialorder %v568, 0.0
      %vm817 = vcmp.ge.f32.partialorder %v571, 0.0
      %vm818 = vcmp.ge.f32.partialorder %v576, 0.0
      %vm819 = vcmp.ge.f32.partialorder %v579, 0.0
      %vm820 = vcmp.ge.f32.partialorder %v584, 0.0
      %vm821 = vcmp.ge.f32.partialorder %v587, 0.0
      %vm822 = vcmp.ge.f32.partialorder %v592, 0.0
      %vm823 = vcmp.ge.f32.partialorder %v595, 0.0
      %vm824 = vcmp.ge.f32.partialorder %v600, 0.0
      %vm825 = vcmp.ge.f32.partialorder %v603, 0.0
      %vm826 = vcmp.ge.f32.partialorder %v608, 0.0
      %vm827 = vcmp.ge.f32.partialorder %v611, 0.0
      %vm828 = vcmp.ge.f32.partialorder %v616, 0.0
      %vm829 = vcmp.ge.f32.partialorder %v619, 0.0
      %vm830 = vcmp.ge.f32.partialorder %v624, 0.0
      %vm831 = vcmp.ge.f32.partialorder %v627, 0.0
      %vm832 = vcmp.ge.f32.partialorder %v632, 0.0
      %vm833 = vcmp.ge.f32.partialorder %v635, 0.0
      %vm834 = vcmp.ge.f32.partialorder %v640, 0.0
      %vm835 = vcmp.ge.f32.partialorder %v643, 0.0
      %vm836 = vcmp.ge.f32.partialorder %v648, 0.0
      %vm837 = vcmp.ge.f32.partialorder %v651, 0.0
      %vm838 = vcmp.ge.f32.partialorder %v656, 0.0
      %vm839 = vcmp.ge.f32.partialorder %v659, 0.0
      %vm840 = vcmp.ge.f32.partialorder %v664, 0.0
      %vm841 = vcmp.ge.f32.partialorder %v667, 0.0
      %vm842 = vcmp.ge.f32.partialorder %v672, 0.0
      %vm843 = vcmp.ge.f32.partialorder %v675, 0.0
      %vm844 = vcmp.ge.f32.partialorder %v680, 0.0
      %vm845 = vcmp.ge.f32.partialorder %v683, 0.0
      %vm846 = vcmp.ge.f32.partialorder %v688, 0.0
      %vm847 = vcmp.ge.f32.partialorder %v691, 0.0
      %vm848 = vcmp.ge.f32.partialorder %v696, 0.0
      %vm849 = vcmp.ge.f32.partialorder %v699, 0.0
      %vm850 = vcmp.ge.f32.partialorder %v704, 0.0
      %vm851 = vcmp.ge.f32.partialorder %v707, 0.0
      %vm852 = vcmp.ge.f32.partialorder %v712, 0.0
      %vm853 = vcmp.ge.f32.partialorder %v715, 0.0
      %vm854 = vcmp.ge.f32.partialorder %v720, 0.0
      %vm855 = vcmp.ge.f32.partialorder %v723, 0.0
      %vm856 = vcmp.ge.f32.partialorder %v728, 0.0
      %vm857 = vcmp.ge.f32.partialorder %v731, 0.0
      %vm858 = vcmp.ge.f32.partialorder %v736, 0.0
      %vm859 = vcmp.ge.f32.partialorder %v739, 0.0
      %vm860 = vcmp.ge.f32.partialorder %v744, 0.0
      %vm861 = vcmp.ge.f32.partialorder %v747, 0.0
      %vm862 = vcmp.ge.f32.partialorder %v752, 0.0
      %vm863 = vcmp.ge.f32.partialorder %v755, 0.0
      %vm864 = vcmp.ge.f32.partialorder %v760, 0.0
      %vm865 = vcmp.ge.f32.partialorder %v763, 0.0
      %vm866 = vcmp.ge.f32.partialorder %v768, 0.0
      %vm867 = vcmp.ge.f32.partialorder %v771, 0.0
      %vm868 = vcmp.ge.f32.partialorder %v776, 0.0
      %vm869 = vcmp.ge.f32.partialorder %v779, 0.0
      %vm870 = vcmp.ge.f32.partialorder %v784, 0.0
      %vm871 = vcmp.ge.f32.partialorder %v787, 0.0
      %vm872 = vcmp.ge.f32.partialorder %v792, 0.0
      %vm873 = vcmp.ge.f32.partialorder %v795, 0.0
      %vm874 = vcmp.ge.f32.partialorder %v800, 0.0
      %vm875 = vcmp.ge.f32.partialorder %v803, 0.0
      %vm876 = vcmp.ge.f32.partialorder %v808, 0.0
      %vm877 = vcmp.ge.f32.partialorder %v811, 0.0
      %v878 = vmul.f32 %v560, 0.01
      %v879 = vmul.f32 %v563, 0.01
      %v880 = vmul.f32 %v568, 0.01
      %v881 = vmul.f32 %v571, 0.01
      %v882 = vmul.f32 %v576, 0.01
      %v883 = vmul.f32 %v579, 0.01
      %v884 = vmul.f32 %v584, 0.01
      %v885 = vmul.f32 %v587, 0.01
      %v886 = vmul.f32 %v592, 0.01
      %v887 = vmul.f32 %v595, 0.01
      %v888 = vmul.f32 %v600, 0.01
      %v889 = vmul.f32 %v603, 0.01
      %v890 = vmul.f32 %v608, 0.01
      %v891 = vmul.f32 %v611, 0.01
      %v892 = vmul.f32 %v616, 0.01
      %v893 = vmul.f32 %v619, 0.01
      %v894 = vmul.f32 %v624, 0.01
      %v895 = vmul.f32 %v627, 0.01
      %v896 = vmul.f32 %v632, 0.01
      %v897 = vmul.f32 %v635, 0.01
      %v898 = vmul.f32 %v640, 0.01
      %v899 = vmul.f32 %v643, 0.01
      %v900 = vmul.f32 %v648, 0.01
      %v901 = vmul.f32 %v651, 0.01
      %v902 = vmul.f32 %v656, 0.01
      %v903 = vmul.f32 %v659, 0.01
      %v904 = vmul.f32 %v664, 0.01
      %v905 = vmul.f32 %v667, 0.01
      %v906 = vmul.f32 %v672, 0.01
      %v907 = vmul.f32 %v675, 0.01
      %v908 = vmul.f32 %v680, 0.01
      %v909 = vmul.f32 %v683, 0.01
      %v910 = vmul.f32 %v688, 0.01
      %v911 = vmul.f32 %v691, 0.01
      %v912 = vmul.f32 %v696, 0.01
      %v913 = vmul.f32 %v699, 0.01
      %v914 = vmul.f32 %v704, 0.01
      %v915 = vmul.f32 %v707, 0.01
      %v916 = vmul.f32 %v712, 0.01
      %v917 = vmul.f32 %v715, 0.01
      %v918 = vmul.f32 %v720, 0.01
      %v919 = vmul.f32 %v723, 0.01
      %v920 = vmul.f32 %v728, 0.01
      %v921 = vmul.f32 %v731, 0.01
      %v922 = vmul.f32 %v736, 0.01
      %v923 = vmul.f32 %v739, 0.01
      %v924 = vmul.f32 %v744, 0.01
      %v925 = vmul.f32 %v747, 0.01
      %v926 = vmul.f32 %v752, 0.01
      %v927 = vmul.f32 %v755, 0.01
      %v928 = vmul.f32 %v760, 0.01
      %v929 = vmul.f32 %v763, 0.01
      %v930 = vmul.f32 %v768, 0.01
      %v931 = vmul.f32 %v771, 0.01
      %v932 = vmul.f32 %v776, 0.01
      %v933 = vmul.f32 %v779, 0.01
      %v934 = vmul.f32 %v784, 0.01
      %v935 = vmul.f32 %v787, 0.01
      %v936 = vmul.f32 %v792, 0.01
      %v937 = vmul.f32 %v795, 0.01
      %v938 = vmul.f32 %v800, 0.01
      %v939 = vmul.f32 %v803, 0.01
      %v940 = vmul.f32 %v808, 0.01
      %v941 = vmul.f32 %v811, 0.01
      %v942 = vsel %vm814, %v560, %v878
      %v943 = vsel %vm815, %v563, %v879
      %v944 = vsel %vm816, %v568, %v880
      %v945 = vsel %vm817, %v571, %v881
      %v946 = vsel %vm818, %v576, %v882
      %v947 = vsel %vm819, %v579, %v883
      %v948 = vsel %vm820, %v584, %v884
      %v949 = vsel %vm821, %v587, %v885
      %v950 = vsel %vm822, %v592, %v886
      %v951 = vsel %vm823, %v595, %v887
      %v952 = vsel %vm824, %v600, %v888
      %v953 = vsel %vm825, %v603, %v889
      %v954 = vsel %vm826, %v608, %v890
      %v955 = vsel %vm827, %v611, %v891
      %v956 = vsel %vm828, %v616, %v892
      %v957 = vsel %vm829, %v619, %v893
      %v958 = vsel %vm830, %v624, %v894
      %v959 = vsel %vm831, %v627, %v895
      %v960 = vsel %vm832, %v632, %v896
      %v961 = vsel %vm833, %v635, %v897
      %v962 = vsel %vm834, %v640, %v898
      %v963 = vsel %vm835, %v643, %v899
      %v964 = vsel %vm836, %v648, %v900
      %v965 = vsel %vm837, %v651, %v901
      %v966 = vsel %vm838, %v656, %v902
      %v967 = vsel %vm839, %v659, %v903
      %v968 = vsel %vm840, %v664, %v904
      %v969 = vsel %vm841, %v667, %v905
      %v970 = vsel %vm842, %v672, %v906
      %v971 = vsel %vm843, %v675, %v907
      %v972 = vsel %vm844, %v680, %v908
      %v973 = vsel %vm845, %v683, %v909
      %v974 = vsel %vm846, %v688, %v910
      %v975 = vsel %vm847, %v691, %v911
      %v976 = vsel %vm848, %v696, %v912
      %v977 = vsel %vm849, %v699, %v913
      %v978 = vsel %vm850, %v704, %v914
      %v979 = vsel %vm851, %v707, %v915
      %v980 = vsel %vm852, %v712, %v916
      %v981 = vsel %vm853, %v715, %v917
      %v982 = vsel %vm854, %v720, %v918
      %v983 = vsel %vm855, %v723, %v919
      %v984 = vsel %vm856, %v728, %v920
      %v985 = vsel %vm857, %v731, %v921
      %v986 = vsel %vm858, %v736, %v922
      %v987 = vsel %vm859, %v739, %v923
      %v988 = vsel %vm860, %v744, %v924
      %v989 = vsel %vm861, %v747, %v925
      %v990 = vsel %vm862, %v752, %v926
      %v991 = vsel %vm863, %v755, %v927
      %v992 = vsel %vm864, %v760, %v928
      %v993 = vsel %vm865, %v763, %v929
      %v994 = vsel %vm866, %v768, %v930
      %v995 = vsel %vm867, %v771, %v931
      %v996 = vsel %vm868, %v776, %v932
      %v997 = vsel %vm869, %v779, %v933
      %v998 = vsel %vm870, %v784, %v934
      %v999 = vsel %vm871, %v787, %v935
      %v1000 = vsel %vm872, %v792, %v936
      %v1001 = vsel %vm873, %v795, %v937
      %v1002 = vsel %vm874, %v800, %v938
      %v1003 = vsel %vm875, %v803, %v939
      %v1004 = vsel %vm876, %v808, %v940
      %v1005 = vsel %vm877, %v811, %v941
      %v1006 = vpack.c.bf16 %v943, %v942
      %v1007 = vpack.c.bf16 %v945, %v944
      %v1008 = vpack.c.bf16 %v947, %v946
      %v1009 = vpack.c.bf16 %v949, %v948
      %v1010 = vpack.c.bf16 %v951, %v950
      %v1011 = vpack.c.bf16 %v953, %v952
      %v1012 = vpack.c.bf16 %v955, %v954
      %v1013 = vpack.c.bf16 %v957, %v956
      %v1014 = vpack.c.bf16 %v959, %v958
      %v1015 = vpack.c.bf16 %v961, %v960
      %v1016 = vpack.c.bf16 %v963, %v962
      %v1017 = vpack.c.bf16 %v965, %v964
      %v1018 = vpack.c.bf16 %v967, %v966
      %v1019 = vpack.c.bf16 %v969, %v968
      %v1020 = vpack.c.bf16 %v971, %v970
      %v1021 = vpack.c.bf16 %v973, %v972
      %v1022 = vpack.c.bf16 %v975, %v974
      %v1023 = vpack.c.bf16 %v977, %v976
      %v1024 = vpack.c.bf16 %v979, %v978
      %v1025 = vpack.c.bf16 %v981, %v980
      %v1026 = vpack.c.bf16 %v983, %v982
      %v1027 = vpack.c.bf16 %v985, %v984
      %v1028 = vpack.c.bf16 %v987, %v986
      %v1029 = vpack.c.bf16 %v989, %v988
      %v1030 = vpack.c.bf16 %v991, %v990
      %v1031 = vpack.c.bf16 %v993, %v992
      %v1032 = vpack.c.bf16 %v995, %v994
      %v1033 = vpack.c.bf16 %v997, %v996
      %v1034 = vpack.c.bf16 %v999, %v998
      %v1035 = vpack.c.bf16 %v1001, %v1000
      %v1036 = vpack.c.bf16 %v1003, %v1002
      %v1037 = vpack.c.bf16 %v1005, %v1004
      %v1070 = vunpack.c.l.b16 %v1006
      %v1071 = vunpack.c.h.b16 %v1006
      %v1072 = vunpack.c.l.b16 %v1007
      %v1073 = vunpack.c.h.b16 %v1007
      %v1074 = vunpack.c.l.b16 %v1008
      %v1075 = vunpack.c.h.b16 %v1008
      %v1076 = vunpack.c.l.b16 %v1009
      %v1077 = vunpack.c.h.b16 %v1009
      %v1078 = vunpack.c.l.b16 %v1010
      %v1079 = vunpack.c.h.b16 %v1010
      %v1080 = vunpack.c.l.b16 %v1011
      %v1081 = vunpack.c.h.b16 %v1011
      %v1082 = vunpack.c.l.b16 %v1012
      %v1083 = vunpack.c.h.b16 %v1012
      %v1084 = vunpack.c.l.b16 %v1013
      %v1085 = vunpack.c.h.b16 %v1013
      %v1086 = vunpack.c.l.b16 %v1014
      %v1087 = vunpack.c.h.b16 %v1014
      %v1088 = vunpack.c.l.b16 %v1015
      %v1089 = vunpack.c.h.b16 %v1015
      %v1090 = vunpack.c.l.b16 %v1016
      %v1091 = vunpack.c.h.b16 %v1016
      %v1092 = vunpack.c.l.b16 %v1017
      %v1093 = vunpack.c.h.b16 %v1017
      %v1094 = vunpack.c.l.b16 %v1018
      %v1095 = vunpack.c.h.b16 %v1018
      %v1096 = vunpack.c.l.b16 %v1019
      %v1097 = vunpack.c.h.b16 %v1019
      %v1098 = vunpack.c.l.b16 %v1020
      %v1099 = vunpack.c.h.b16 %v1020
      %v1100 = vunpack.c.l.b16 %v1021
      %v1101 = vunpack.c.h.b16 %v1021
      %v1102 = vunpack.c.l.b16 %v1022
      %v1103 = vunpack.c.h.b16 %v1022
      %v1104 = vunpack.c.l.b16 %v1023
      %v1105 = vunpack.c.h.b16 %v1023
      %v1106 = vunpack.c.l.b16 %v1024
      %v1107 = vunpack.c.h.b16 %v1024
      %v1108 = vunpack.c.l.b16 %v1025
      %v1109 = vunpack.c.h.b16 %v1025
      %v1110 = vunpack.c.l.b16 %v1026
      %v1111 = vunpack.c.h.b16 %v1026
      %v1112 = vunpack.c.l.b16 %v1027
      %v1113 = vunpack.c.h.b16 %v1027
      %v1114 = vunpack.c.l.b16 %v1028
      %v1115 = vunpack.c.h.b16 %v1028
      %v1116 = vunpack.c.l.b16 %v1029
      %v1117 = vunpack.c.h.b16 %v1029
      %v1118 = vunpack.c.l.b16 %v1030
      %v1119 = vunpack.c.h.b16 %v1030
      %v1120 = vunpack.c.l.b16 %v1031
      %v1121 = vunpack.c.h.b16 %v1031
      %v1122 = vunpack.c.l.b16 %v1032
      %v1123 = vunpack.c.h.b16 %v1032
      %v1124 = vunpack.c.l.b16 %v1033
      %v1125 = vunpack.c.h.b16 %v1033
      %v1126 = vunpack.c.l.b16 %v1034
      %v1127 = vunpack.c.h.b16 %v1034
      %v1128 = vunpack.c.l.b16 %v1035
      %v1129 = vunpack.c.h.b16 %v1035
      %v1130 = vunpack.c.l.b16 %v1036
      %v1131 = vunpack.c.h.b16 %v1036
      %v1132 = vunpack.c.l.b16 %v1037
      %v1133 = vunpack.c.h.b16 %v1037
      %v1134 = vpack.c.b16 %v1070, %v1070
      %v1135 = vpack.c.b16 %v1071, %v1071
      %v1136 = vpack.c.b16 %v1072, %v1072
      %v1137 = vpack.c.b16 %v1073, %v1073
      %v1138 = vpack.c.b16 %v1074, %v1074
      %v1139 = vpack.c.b16 %v1075, %v1075
      %v1140 = vpack.c.b16 %v1076, %v1076
      %v1141 = vpack.c.b16 %v1077, %v1077
      %v1142 = vpack.c.b16 %v1078, %v1078
      %v1143 = vpack.c.b16 %v1079, %v1079
      %v1144 = vpack.c.b16 %v1080, %v1080
      %v1145 = vpack.c.b16 %v1081, %v1081
      %v1146 = vpack.c.b16 %v1082, %v1082
      %v1147 = vpack.c.b16 %v1083, %v1083
      %v1148 = vpack.c.b16 %v1084, %v1084
      %v1149 = vpack.c.b16 %v1085, %v1085
      %v1150 = vpack.c.b16 %v1086, %v1086
      %v1151 = vpack.c.b16 %v1087, %v1087
      %v1152 = vpack.c.b16 %v1088, %v1088
      %v1153 = vpack.c.b16 %v1089, %v1089
      %v1154 = vpack.c.b16 %v1090, %v1090
      %v1155 = vpack.c.b16 %v1091, %v1091
      %v1156 = vpack.c.b16 %v1092, %v1092
      %v1157 = vpack.c.b16 %v1093, %v1093
      %v1158 = vpack.c.b16 %v1094, %v1094
      %v1159 = vpack.c.b16 %v1095, %v1095
      %v1160 = vpack.c.b16 %v1096, %v1096
      %v1161 = vpack.c.b16 %v1097, %v1097
      %v1162 = vpack.c.b16 %v1098, %v1098
      %v1163 = vpack.c.b16 %v1099, %v1099
      %v1164 = vpack.c.b16 %v1100, %v1100
      %v1165 = vpack.c.b16 %v1101, %v1101
      %v1166 = vpack.c.b16 %v1102, %v1102
      %v1167 = vpack.c.b16 %v1103, %v1103
      %v1168 = vpack.c.b16 %v1104, %v1104
      %v1169 = vpack.c.b16 %v1105, %v1105
      %v1170 = vpack.c.b16 %v1106, %v1106
      %v1171 = vpack.c.b16 %v1107, %v1107
      %v1172 = vpack.c.b16 %v1108, %v1108
      %v1173 = vpack.c.b16 %v1109, %v1109
      %v1174 = vpack.c.b16 %v1110, %v1110
      %v1175 = vpack.c.b16 %v1111, %v1111
      %v1176 = vpack.c.b16 %v1112, %v1112
      %v1177 = vpack.c.b16 %v1113, %v1113
      %v1178 = vpack.c.b16 %v1114, %v1114
      %v1179 = vpack.c.b16 %v1115, %v1115
      %v1180 = vpack.c.b16 %v1116, %v1116
      %v1181 = vpack.c.b16 %v1117, %v1117
      %v1182 = vpack.c.b16 %v1118, %v1118
      %v1183 = vpack.c.b16 %v1119, %v1119
      %v1184 = vpack.c.b16 %v1120, %v1120
      %v1185 = vpack.c.b16 %v1121, %v1121
      %v1186 = vpack.c.b16 %v1122, %v1122
      %v1187 = vpack.c.b16 %v1123, %v1123
      %v1188 = vpack.c.b16 %v1124, %v1124
      %v1189 = vpack.c.b16 %v1125, %v1125
      %v1190 = vpack.c.b16 %v1126, %v1126
      %v1191 = vpack.c.b16 %v1127, %v1127
      %v1192 = vpack.c.b16 %v1128, %v1128
      %v1193 = vpack.c.b16 %v1129, %v1129
      %v1194 = vpack.c.b16 %v1130, %v1130
      %v1195 = vpack.c.b16 %v1131, %v1131
      %v1196 = vpack.c.b16 %v1132, %v1132
      %v1197 = vpack.c.b16 %v1133, %v1133
      %1262 = vst [vmem:[%s172] sm:$0xf] %v1134
      %1263 = vst [vmem:[%s172 + $0x4] sm:$0xf] %v1135
      %1264 = vst [vmem:[%s172 + $0x8] sm:$0xf] %v1136
      %1265 = vst [vmem:[%s172 + $0xc] sm:$0xf] %v1137
      %1266 = vst [vmem:[%s172 + $0x10] sm:$0xf] %v1138
      %1267 = vst [vmem:[%s172 + $0x14] sm:$0xf] %v1139
      %1268 = vst [vmem:[%s172 + $0x18] sm:$0xf] %v1140
      %1269 = vst [vmem:[%s172 + $0x1c] sm:$0xf] %v1141
      %1270 = vst [vmem:[%s172 + $0x20] sm:$0xf] %v1142
      %1271 = vst [vmem:[%s172 + $0x24] sm:$0xf] %v1143
      %1272 = vst [vmem:[%s172 + $0x28] sm:$0xf] %v1144
      %1273 = vst [vmem:[%s172 + $0x2c] sm:$0xf] %v1145
      %1274 = vst [vmem:[%s172 + $0x30] sm:$0xf] %v1146
      %1275 = vst [vmem:[%s172 + $0x34] sm:$0xf] %v1147
      %1276 = vst [vmem:[%s172 + $0x38] sm:$0xf] %v1148
      %1277 = vst [vmem:[%s172 + $0x3c] sm:$0xf] %v1149
      %1278 = vst [vmem:[%s172 + $0x40] sm:$0xf] %v1150
      %1279 = vst [vmem:[%s172 + $0x44] sm:$0xf] %v1151
      %1280 = vst [vmem:[%s172 + $0x48] sm:$0xf] %v1152
      %1281 = vst [vmem:[%s172 + $0x4c] sm:$0xf] %v1153
      %1282 = vst [vmem:[%s172 + $0x50] sm:$0xf] %v1154
      %1283 = vst [vmem:[%s172 + $0x54] sm:$0xf] %v1155
      %1284 = vst [vmem:[%s172 + $0x58] sm:$0xf] %v1156
      %1285 = vst [vmem:[%s172 + $0x5c] sm:$0xf] %v1157
      %1286 = vst [vmem:[%s172 + $0x60] sm:$0xf] %v1158
      %1287 = vst [vmem:[%s172 + $0x64] sm:$0xf] %v1159
      %1288 = vst [vmem:[%s172 + $0x68] sm:$0xf] %v1160
      %1289 = vst [vmem:[%s172 + $0x6c] sm:$0xf] %v1161
      %1290 = vst [vmem:[%s172 + $0x70] sm:$0xf] %v1162
      %1291 = vst [vmem:[%s172 + $0x74] sm:$0xf] %v1163
      %1292 = vst [vmem:[%s172 + $0x78] sm:$0xf] %v1164
      %1293 = vst [vmem:[%s172 + $0x7c] sm:$0xf] %v1165
      %1294 = vst [vmem:[%s172 + $0x80] sm:$0xf] %v1166
      %1295 = vst [vmem:[%s172 + $0x84] sm:$0xf] %v1167
      %1296 = vst [vmem:[%s172 + $0x88] sm:$0xf] %v1168
      %1297 = vst [vmem:[%s172 + $0x8c] sm:$0xf] %v1169
      %1298 = vst [vmem:[%s172 + $0x90] sm:$0xf] %v1170
      %1299 = vst [vmem:[%s172 + $0x94] sm:$0xf] %v1171
      %1300 = vst [vmem:[%s172 + $0x98] sm:$0xf] %v1172
      %1301 = vst [vmem:[%s172 + $0x9c] sm:$0xf] %v1173
      %1302 = vst [vmem:[%s172 + $0xa0] sm:$0xf] %v1174
      %1303 = vst [vmem:[%s172 + $0xa4] sm:$0xf] %v1175
      %1304 = vst [vmem:[%s172 + $0xa8] sm:$0xf] %v1176
      %1305 = vst [vmem:[%s172 + $0xac] sm:$0xf] %v1177
      %1306 = vst [vmem:[%s172 + $0xb0] sm:$0xf] %v1178
      %1307 = vst [vmem:[%s172 + $0xb4] sm:$0xf] %v1179
      %1308 = vst [vmem:[%s172 + $0xb8] sm:$0xf] %v1180
      %1309 = vst [vmem:[%s172 + $0xbc] sm:$0xf] %v1181
      %1310 = vst [vmem:[%s172 + $0xc0] sm:$0xf] %v1182
      %1311 = vst [vmem:[%s172 + $0xc4] sm:$0xf] %v1183
      %1312 = vst [vmem:[%s172 + $0xc8] sm:$0xf] %v1184
      %1313 = vst [vmem:[%s172 + $0xcc] sm:$0xf] %v1185
      %1314 = vst [vmem:[%s172 + $0xd0] sm:$0xf] %v1186
      %1315 = vst [vmem:[%s172 + $0xd4] sm:$0xf] %v1187
      %1316 = vst [vmem:[%s172 + $0xd8] sm:$0xf] %v1188
      %1317 = vst [vmem:[%s172 + $0xdc] sm:$0xf] %v1189
      %1318 = vst [vmem:[%s172 + $0xe0] sm:$0xf] %v1190
      %1319 = vst [vmem:[%s172 + $0xe4] sm:$0xf] %v1191
      %1320 = vst [vmem:[%s172 + $0xe8] sm:$0xf] %v1192
      %1321 = vst [vmem:[%s172 + $0xec] sm:$0xf] %v1193
      %1322 = vst [vmem:[%s172 + $0xf0] sm:$0xf] %v1194
      %1323 = vst [vmem:[%s172 + $0xf4] sm:$0xf] %v1195
      %1324 = vst [vmem:[%s172 + $0xf8] sm:$0xf] %v1196
      %1325 = vst [vmem:[%s172 + $0xfc] sm:$0xf] %v1197
      %s1326 = smul.u32 64, %s14
      %p1327 = scmp.lt.s32.totalorder %s1326, 127
      %s1328 = scalar_select %p1327, %s1326, 127
      %s1329 = smul.addr %s1328, 4
      %s1330 = scalar_lea.vmem %s3, %s1329
      // Predicated region
      $region33: #{encoder_forward.3} parent=31 // pred_check
        %p1331 = pneg %p100
      $region34: #{encoder_forward.3} parent=31 // pred_check_branch
        %1333 = sbr.rel (%p1331) target = $region36
      $region35: #{encoder_forward.3} parent=31 // pred_region
        %s1334 = smul.u32 64, %s14
      $region36: #{encoder_forward.3} parent=31 // pred_fallthru
        _
    $region32: #{encoder_forward.3} parent=5 // pred_fallthru
      _
    %p1335 = scmp.le.s32.totalorder 2, %s9
    // Predicated region
    $region37: #{encoder_forward.3} parent=5 // pred_check
      %p1336 = pneg %p1335
    $region38: #{encoder_forward.3} parent=5 // pred_check_branch
      %1338 = sbr.rel (%p1336) target = $region40
    $region39: #{encoder_forward.3} parent=5 // pred_region
      %s1339 = ssub.s32 %s9, 2
      // Predicated region
      $region41: #{encoder_forward.3} parent=39 // pred_check
        %p1340 = pneg %p106
      $region42: #{encoder_forward.3} parent=39 // pred_check_branch
        %1342 = sbr.rel (%p1340) target = $region44
      $region43: #{encoder_forward.3} parent=39 // pred_region
        %s1343 = smul.u32 64, %s15
        %p1344 = scmp.lt.s32.totalorder %s1343, 127
        %s1345 = scalar_select %p1344, %s1343, 127
        %s1346 = smul.addr %s1345, 4
        %s1347 = scalar_lea.vmem %s3, %s1346
      $region44: #{encoder_forward.3} parent=39 // pred_fallthru
        _
    $region40: #{encoder_forward.3} parent=5 // pred_fallthru
      _
  $region6: #{encoder_forward.3} parent=0 // loop_footer
    %s13 = sadd.s32 1, %s9
  $region7: #{encoder_forward.3} parent=0 // loop_footer_branch
    %8 = sbr.rel target = $region3
  $region8: #{encoder_forward.3} parent=0 // loop_exit
    _

// kernel: encoder_forward.4
$region0: #{encoder_forward.4}
  #allocation0 [shape = 'u32[]', space=smem, size = 0x4, offset = 0x4, fixed_abs, tag = 'smem constant byte address 0x4 - core index']
  #allocation1 [shape = 'u32[144,128]{1,0:T(1,128)}', space=vmem, size = 0x12000, scoped, tag = 'internal scratch']
  %s0 = inlined_call_operand.vmem [shape: bf16[256,576], index: 0, kind: input, shape index: {}]
  %s1 = inlined_call_operand.vmem [shape: bf16[576,128], index: 1, kind: input, shape index: {}]
  %s2 = inlined_call_operand.vmem [shape: f32[1,128], index: 2, kind: input, shape index: {}]
  %s3 = inlined_call_operand.vmem [shape: bf16[256,128], index: 3, kind: output, shape index: {}]
  %s4 = sld [smem:[#allocation0]]
  $region45: #{encoder_forward.4} parent=0
    _
  %s6 = ssub.s32 1, %s4
  %s7 = scalar_select 0, %s6, %s4
  loop: start=0, step=1, limit=4
  $region2: #{encoder_forward.4} parent=0 // loop_pre_header
    _
  $region3: #{encoder_forward.4} parent=0 // loop_header
    %s9 = sphi 0, %s13
    %p10 = scmp.ge.s32.totalorder %s9, 4
    %s19 = sphi 0, %s21
    %s22 = sphi 0, %s19
    %s23 = sphi 0, %s22
    %s39 = sphi 0, %s23
    %s43 = sphi 0, %s43
    %s45 = sphi 0, %s43
    %s46 = sphi 0, %s45
    %s60 = sphi 0, %s46
    %s64 = sphi 0, %s64
    %s66 = sphi 0, %s64
    %s67 = sphi 0, %s66
    %s81 = sphi 0, %s67
    %s87 = sphi 0, %s89
    %s90 = sphi 0, %s87
    %s91 = sphi 0, %s90
    %s107 = sphi 0, %s91
  $region4: #{encoder_forward.4} parent=0 // loop_header_branch
    %12 = sbr.rel (%p10) target = $region8
  $region5: #{encoder_forward.4} parent=0 // loop_body
    %s14 = ssub.s32 %s9, 1
    %s15 = ssub.s32 %s9, 2
    %s16 = sadd.s32 %s9, 1
    %s17 = ssub.s32 %s9, %s16
    %p18 = scmp.eq.s32.totalorder %s17, 0
    %s20 = sadd.s32 %s19, 1
    %s21 = scalar_select %p18, %s19, %s20
    %p24 = pneg %p18
    %p25 = scmp.eq.s32.totalorder %s9, 1
    %p26 = por %p24, %p25
    %p27 = scmp.ne.s32.totalorder %s19, %s22
    %p28 = scmp.eq.s32.totalorder %s9, 0
    %p29 = por %p27, %p28
    %p30 = scmp.ne.s32.totalorder %s19, %s22
    %p31 = scmp.eq.s32.totalorder %s14, 1
    %p32 = por %p30, %p31
    %p33 = scmp.ne.s32.totalorder %s22, %s23
    %p34 = scmp.eq.s32.totalorder %s14, 0
    %p35 = por %p33, %p34
    %p36 = scmp.ne.s32.totalorder %s22, %s23
    %p37 = scmp.eq.s32.totalorder %s15, 1
    %p38 = por %p36, %p37
    %p40 = scmp.ne.s32.totalorder %s23, %s39
    %p41 = scmp.eq.s32.totalorder %s15, 0
    %p42 = por %p40, %p41
    %s44 = sadd.s32 %s43, 1
    %p47 = scmp.eq.s32.totalorder %s9, 1
    %p48 = scmp.ne.s32.totalorder %s43, %s45
    %p49 = scmp.eq.s32.totalorder %s9, 0
    %p50 = por %p48, %p49
    %p51 = scmp.ne.s32.totalorder %s43, %s45
    %p52 = scmp.eq.s32.totalorder %s14, 1
    %p53 = por %p51, %p52
    %p54 = scmp.ne.s32.totalorder %s45, %s46
    %p55 = scmp.eq.s32.totalorder %s14, 0
    %p56 = por %p54, %p55
    %p57 = scmp.ne.s32.totalorder %s45, %s46
    %p58 = scmp.eq.s32.totalorder %s15, 1
    %p59 = por %p57, %p58
    %p61 = scmp.ne.s32.totalorder %s46, %s60
    %p62 = scmp.eq.s32.totalorder %s15, 0
    %p63 = por %p61, %p62
    %s65 = sadd.s32 %s64, 1
    %p68 = scmp.eq.s32.totalorder %s9, 1
    %p69 = scmp.ne.s32.totalorder %s64, %s66
    %p70 = scmp.eq.s32.totalorder %s9, 0
    %p71 = por %p69, %p70
    %p72 = scmp.ne.s32.totalorder %s64, %s66
    %p73 = scmp.eq.s32.totalorder %s14, 1
    %p74 = por %p72, %p73
    %p75 = scmp.ne.s32.totalorder %s66, %s67
    %p76 = scmp.eq.s32.totalorder %s14, 0
    %p77 = por %p75, %p76
    %p78 = scmp.ne.s32.totalorder %s66, %s67
    %p79 = scmp.eq.s32.totalorder %s15, 1
    %p80 = por %p78, %p79
    %p82 = scmp.ne.s32.totalorder %s67, %s81
    %p83 = scmp.eq.s32.totalorder %s15, 0
    %p84 = por %p82, %p83
    %s85 = ssub.s32 %s9, %s16
    %p86 = scmp.eq.s32.totalorder %s85, 0
    %s88 = sadd.s32 %s87, 1
    %s89 = scalar_select %p86, %s87, %s88
    %p92 = pneg %p86
    %p93 = scmp.eq.s32.totalorder %s9, 1
    %p94 = por %p92, %p93
    %p95 = scmp.ne.s32.totalorder %s87, %s90
    %p96 = scmp.eq.s32.totalorder %s9, 0
    %p97 = por %p95, %p96
    %p98 = scmp.ne.s32.totalorder %s87, %s90
    %p99 = scmp.eq.s32.totalorder %s14, 1
    %p100 = por %p98, %p99
    %p101 = scmp.ne.s32.totalorder %s90, %s91
    %p102 = scmp.eq.s32.totalorder %s14, 0
    %p103 = por %p101, %p102
    %p104 = scmp.ne.s32.totalorder %s90, %s91
    %p105 = scmp.eq.s32.totalorder %s15, 1
    %p106 = por %p104, %p105
    %p108 = scmp.ne.s32.totalorder %s91, %s107
    %p109 = scmp.eq.s32.totalorder %s15, 0
    %p110 = por %p108, %p109
    %p111 = scmp.le.s32.totalorder 1, %s9
    %p112 = scmp.lt.s32.totalorder %s9, 3
    %p113 = pnand %p111, %p112
    %p114 = pneg %p113
    // Predicated region
    $region9: #{encoder_forward.4} parent=5 // pred_check
      _
    $region10: #{encoder_forward.4} parent=5 // pred_check_branch
      %116 = sbr.rel (%p113) target = $region12
    $region11: #{encoder_forward.4} parent=5 // pred_region
      %s117 = ssub.s32 %s9, 1
      // Predicated region
      $region13: #{encoder_forward.4} parent=11 // pred_check
        %p118 = pneg %p56
      $region14: #{encoder_forward.4} parent=11 // pred_check_branch
        %120 = sbr.rel (%p118) target = $region16
      $region15: #{encoder_forward.4} parent=11 // pred_region
        _
      $region16: #{encoder_forward.4} parent=11 // pred_fallthru
        _
      // Predicated region
      $region17: #{encoder_forward.4} parent=11 // pred_check
        %p121 = pneg %p77
      $region18: #{encoder_forward.4} parent=11 // pred_check_branch
        %123 = sbr.rel (%p121) target = $region20
      $region19: #{encoder_forward.4} parent=11 // pred_region
        _
      $region20: #{encoder_forward.4} parent=11 // pred_fallthru
        _
    $region12: #{encoder_forward.4} parent=5 // pred_fallthru
      _
    %p124 = scmp.lt.s32.totalorder %s9, 2
    // Predicated region
    $region21: #{encoder_forward.4} parent=5 // pred_check
      %p125 = pneg %p124
    $region22: #{encoder_forward.4} parent=5 // pred_check_branch
      %127 = sbr.rel (%p125) target = $region24
    $region23: #{encoder_forward.4} parent=5 // pred_region
      // Predicated region
      $region25: #{encoder_forward.4} parent=23 // pred_check
        %p128 = pneg %p29
      $region26: #{encoder_forward.4} parent=23 // pred_check_branch
        %130 = sbr.rel (%p128) target = $region28
      $region27: #{encoder_forward.4} parent=23 // pred_region
        %s131 = smul.u32 16, %s9
        %p132 = scmp.lt.s32.totalorder %s131, 31
        %s133 = scalar_select %p132, %s131, 31
        %s134 = smul.addr %s133, 5
        %s135 = smul.addr %s134, 4
        %s136 = scalar_lea.vmem %s0, %s135
        %s137 = smul.u32 16, %s9
      $region28: #{encoder_forward.4} parent=23 // pred_fallthru
        _
    $region24: #{encoder_forward.4} parent=5 // pred_fallthru
      _
    %p138 = scmp.le.s32.totalorder 1, %s9
    %p139 = scmp.lt.s32.totalorder %s9, 3
    %p140 = pnand %p138, %p139
    %p141 = pneg %p140
    // Predicated region
    $region29: #{encoder_forward.4} parent=5 // pred_check
      _
    $region30: #{encoder_forward.4} parent=5 // pred_check_branch
      %143 = sbr.rel (%p140) target = $region32
    $region31: #{encoder_forward.4} parent=5 // pred_region
      %s144 = ssub.s32 %s9, 1
      %s145 = smul.u32 16, %s14
      %p146 = scmp.lt.s32.totalorder %s145, 31
      %s147 = scalar_select %p146, %s145, 31
      %s148 = smul.addr %s147, 5
      %s149 = smul.addr %s148, 4
      %s150 = scalar_lea.vmem %s0, %s149
      %p151 = pneg %p35
      %p152 = pneg %p32
      %p153 = pneg %p56
      %p154 = pneg %p53
      %p155 = pneg %p77
      %p156 = pneg %p74
      %p157 = pneg %p103
      %p158 = pneg %p100
      %s159 = smul.u32 16, %s14
      %p160 = scmp.lt.s32.totalorder %s159, 31
      %s161 = scalar_select %p160, %s159, 31
      %s162 = smul.addr %s161, 4
      %s163 = scalar_lea.vmem %s3, %s162
      %s164 = smul.u32 16, %s14
      %p165 = scmp.lt.s32.totalorder %s164, 31
      %s166 = scalar_select %p165, %s164, 31
      %s167 = smul.addr %s166, 5
      %s168 = smul.addr %s167, 4
      %s169 = scalar_lea.vmem %s0, %s168
      %s170 = smul.u32 16, %s14
      %s171 = smul.u32 16, %s14
      %p172 = scmp.lt.s32.totalorder %s171, 31
      %s173 = scalar_select %p172, %s171, 31
      %s174 = smul.addr %s173, 4
      %s175 = scalar_lea.vmem %s3, %s174
      %s176 = smul.u32 16, %s14
      %v178 = vld [vmem:[%s169] sm:$0xff]
      %v179 = vld [vmem:[%s169 + $0x8] sm:$0xff]
      %v180 = vld [vmem:[%s169 + $0x10] sm:$0xf]
      %v181 = vld [vmem:[%s169 + $0x14] sm:$0xff]
      %v182 = vld [vmem:[%s169 + $0x1c] sm:$0xff]
      %v183 = vld [vmem:[%s169 + $0x24] sm:$0xf]
      %v184 = vld [vmem:[%s169 + $0x28] sm:$0xff]
      %v185 = vld [vmem:[%s169 + $0x30] sm:$0xff]
      %v186 = vld [vmem:[%s169 + $0x38] sm:$0xf]
      %v187 = vld [vmem:[%s169 + $0x3c] sm:$0xff]
      %v188 = vld [vmem:[%s169 + $0x44] sm:$0xff]
      %v189 = vld [vmem:[%s169 + $0x4c] sm:$0xf]
      %v190 = vld [vmem:[%s169 + $0x50] sm:$0xff]
      %v191 = vld [vmem:[%s169 + $0x58] sm:$0xff]
      %v192 = vld [vmem:[%s169 + $0x60] sm:$0xf]
      %v193 = vld [vmem:[%s169 + $0x64] sm:$0xff]
      %v194 = vld [vmem:[%s169 + $0x6c] sm:$0xff]
      %v195 = vld [vmem:[%s169 + $0x74] sm:$0xf]
      %v196 = vld [vmem:[%s169 + $0x78] sm:$0xff]
      %v197 = vld [vmem:[%s169 + $0x80] sm:$0xff]
      %v198 = vld [vmem:[%s169 + $0x88] sm:$0xf]
      %v199 = vld [vmem:[%s169 + $0x8c] sm:$0xff]
      %v200 = vld [vmem:[%s169 + $0x94] sm:$0xff]
      %v201 = vld [vmem:[%s169 + $0x9c] sm:$0xf]
      %v202 = vld [vmem:[%s169 + $0xa0] sm:$0xff]
      %v203 = vld [vmem:[%s169 + $0xa8] sm:$0xff]
      %v204 = vld [vmem:[%s169 + $0xb0] sm:$0xf]
      %v205 = vld [vmem:[%s169 + $0xb4] sm:$0xff]
      %v206 = vld [vmem:[%s169 + $0xbc] sm:$0xff]
      %v207 = vld [vmem:[%s169 + $0xc4] sm:$0xf]
      %v208 = vld [vmem:[%s169 + $0xc8] sm:$0xff]
      %v209 = vld [vmem:[%s169 + $0xd0] sm:$0xff]
      %v210 = vld [vmem:[%s169 + $0xd8] sm:$0xf]
      %v211 = vld [vmem:[%s169 + $0xdc] sm:$0xff]
      %v212 = vld [vmem:[%s169 + $0xe4] sm:$0xff]
      %v213 = vld [vmem:[%s169 + $0xec] sm:$0xf]
      %v214 = vld [vmem:[%s169 + $0xf0] sm:$0xff]
      %v215 = vld [vmem:[%s169 + $0xf8] sm:$0xff]
      %v216 = vld [vmem:[%s169 + $0x100] sm:$0xf]
      %v217 = vld [vmem:[%s169 + $0x104] sm:$0xff]
      %v218 = vld [vmem:[%s169 + $0x10c] sm:$0xff]
      %v219 = vld [vmem:[%s169 + $0x114] sm:$0xf]
      %v220 = vld [vmem:[%s169 + $0x118] sm:$0xff]
      %v221 = vld [vmem:[%s169 + $0x120] sm:$0xff]
      %v222 = vld [vmem:[%s169 + $0x128] sm:$0xf]
      %v223 = vld [vmem:[%s169 + $0x12c] sm:$0xff]
      %v224 = vld [vmem:[%s169 + $0x134] sm:$0xff]
      %v225 = vld [vmem:[%s169 + $0x13c] sm:$0xf]
      %v226 = vld [vmem:[%s1] sm:$0xf]
      %v227 = vld [vmem:[%s1 + $0x4] sm:$0xf]
      %v228 = vld [vmem:[%s1 + $0x8] sm:$0xf]
      %v229 = vld [vmem:[%s1 + $0xc] sm:$0xf]
      %v230 = vld [vmem:[%s1 + $0x10] sm:$0xf]
      %v231 = vld [vmem:[%s1 + $0x14] sm:$0xf]
      %v232 = vld [vmem:[%s1 + $0x18] sm:$0xf]
      %v233 = vld [vmem:[%s1 + $0x1c] sm:$0xf]
      %v234 = vld [vmem:[%s1 + $0x20] sm:$0xf]
      %v235 = vld [vmem:[%s1 + $0x24] sm:$0xf]
      %v236 = vld [vmem:[%s1 + $0x28] sm:$0xf]
      %v237 = vld [vmem:[%s1 + $0x2c] sm:$0xf]
      %v238 = vld [vmem:[%s1 + $0x30] sm:$0xf]
      %v239 = vld [vmem:[%s1 + $0x34] sm:$0xf]
      %v240 = vld [vmem:[%s1 + $0x38] sm:$0xf]
      %v241 = vld [vmem:[%s1 + $0x3c] sm:$0xf]
      %v242 = vld [vmem:[%s1 + $0x40] sm:$0xf]
      %v243 = vld [vmem:[%s1 + $0x44] sm:$0xf]
      %v244 = vld [vmem:[%s1 + $0x48] sm:$0xf]
      %v245 = vld [vmem:[%s1 + $0x4c] sm:$0xf]
      %v246 = vld [vmem:[%s1 + $0x50] sm:$0xf]
      %v247 = vld [vmem:[%s1 + $0x54] sm:$0xf]
      %v248 = vld [vmem:[%s1 + $0x58] sm:$0xf]
      %v249 = vld [vmem:[%s1 + $0x5c] sm:$0xf]
      %v250 = vld [vmem:[%s1 + $0x60] sm:$0xf]
      %v251 = vld [vmem:[%s1 + $0x64] sm:$0xf]
      %v252 = vld [vmem:[%s1 + $0x68] sm:$0xf]
      %v253 = vld [vmem:[%s1 + $0x6c] sm:$0xf]
      %v254 = vld [vmem:[%s1 + $0x70] sm:$0xf]
      %v255 = vld [vmem:[%s1 + $0x74] sm:$0xf]
      %v256 = vld [vmem:[%s1 + $0x78] sm:$0xf]
      %v257 = vld [vmem:[%s1 + $0x7c] sm:$0xf]
      %v258 = vld [vmem:[%s1 + $0x80] sm:$0xf]
      %v259 = vld [vmem:[%s1 + $0x84] sm:$0xf]
      %v260 = vld [vmem:[%s1 + $0x88] sm:$0xf]
      %v261 = vld [vmem:[%s1 + $0x8c] sm:$0xf]
      %v262 = vld [vmem:[%s1 + $0x90] sm:$0xf]
      %v263 = vld [vmem:[%s1 + $0x94] sm:$0xf]
      %v264 = vld [vmem:[%s1 + $0x98] sm:$0xf]
      %v265 = vld [vmem:[%s1 + $0x9c] sm:$0xf]
      %v266 = vld [vmem:[%s1 + $0xa0] sm:$0xf]
      %v267 = vld [vmem:[%s1 + $0xa4] sm:$0xf]
      %v268 = vld [vmem:[%s1 + $0xa8] sm:$0xf]
      %v269 = vld [vmem:[%s1 + $0xac] sm:$0xf]
      %v270 = vld [vmem:[%s1 + $0xb0] sm:$0xf]
      %v271 = vld [vmem:[%s1 + $0xb4] sm:$0xf]
      %v272 = vld [vmem:[%s1 + $0xb8] sm:$0xf]
      %v273 = vld [vmem:[%s1 + $0xbc] sm:$0xf]
      %v274 = vld [vmem:[%s1 + $0xc0] sm:$0xf]
      %v275 = vld [vmem:[%s1 + $0xc4] sm:$0xf]
      %v276 = vld [vmem:[%s1 + $0xc8] sm:$0xf]
      %v277 = vld [vmem:[%s1 + $0xcc] sm:$0xf]
      %v278 = vld [vmem:[%s1 + $0xd0] sm:$0xf]
      %v279 = vld [vmem:[%s1 + $0xd4] sm:$0xf]
      %v280 = vld [vmem:[%s1 + $0xd8] sm:$0xf]
      %v281 = vld [vmem:[%s1 + $0xdc] sm:$0xf]
      %v282 = vld [vmem:[%s1 + $0xe0] sm:$0xf]
      %v283 = vld [vmem:[%s1 + $0xe4] sm:$0xf]
      %v284 = vld [vmem:[%s1 + $0xe8] sm:$0xf]
      %v285 = vld [vmem:[%s1 + $0xec] sm:$0xf]
      %v286 = vld [vmem:[%s1 + $0xf0] sm:$0xf]
      %v287 = vld [vmem:[%s1 + $0xf4] sm:$0xf]
      %v288 = vld [vmem:[%s1 + $0xf8] sm:$0xf]
      %v289 = vld [vmem:[%s1 + $0xfc] sm:$0xf]
      %v290 = vld [vmem:[%s1 + $0x100] sm:$0xf]
      %v291 = vld [vmem:[%s1 + $0x104] sm:$0xf]
      %v292 = vld [vmem:[%s1 + $0x108] sm:$0xf]
      %v293 = vld [vmem:[%s1 + $0x10c] sm:$0xf]
      %v294 = vld [vmem:[%s1 + $0x110] sm:$0xf]
      %v295 = vld [vmem:[%s1 + $0x114] sm:$0xf]
      %v296 = vld [vmem:[%s1 + $0x118] sm:$0xf]
      %v297 = vld [vmem:[%s1 + $0x11c] sm:$0xf]
      %v298 = vld [vmem:[%s2] sm:$0x1]
      %v300 = vlaneseq
      %v301 = vshrl.u32 %v300, 7
      %v302 = vsub.s32 0, %v301
      %v303 = vrot.slane %v298, %v302
      %v353 = vunpack.c.l.b16 %v178
      %v354 = vunpack.c.h.b16 %v178
      %v355 = vunpack.c.l.b16 %v179
      %v356 = vunpack.c.h.b16 %v179
      %v357 = vunpack.c.l.b16 %v180
      %v358 = vunpack.c.l.b16 %v181
      %v359 = vunpack.c.h.b16 %v181
      %v360 = vunpack.c.l.b16 %v182
      %v361 = vunpack.c.h.b16 %v182
      %v362 = vunpack.c.l.b16 %v183
      %v363 = vunpack.c.l.b16 %v184
      %v364 = vunpack.c.h.b16 %v184
      %v365 = vunpack.c.l.b16 %v185
      %v366 = vunpack.c.h.b16 %v185
      %v367 = vunpack.c.l.b16 %v186
      %v368 = vunpack.c.l.b16 %v187
      %v369 = vunpack.c.h.b16 %v187
      %v370 = vunpack.c.l.b16 %v188
      %v371 = vunpack.c.h.b16 %v188
      %v372 = vunpack.c.l.b16 %v189
      %v373 = vunpack.c.l.b16 %v190
      %v374 = vunpack.c.h.b16 %v190
      %v375 = vunpack.c.l.b16 %v191
      %v376 = vunpack.c.h.b16 %v191
      %v377 = vunpack.c.l.b16 %v192
      %v378 = vunpack.c.l.b16 %v193
      %v379 = vunpack.c.h.b16 %v193
      %v380 = vunpack.c.l.b16 %v194
      %v381 = vunpack.c.h.b16 %v194
      %v382 = vunpack.c.l.b16 %v195
      %v383 = vunpack.c.l.b16 %v196
      %v384 = vunpack.c.h.b16 %v196
      %v385 = vunpack.c.l.b16 %v197
      %v386 = vunpack.c.h.b16 %v197
      %v387 = vunpack.c.l.b16 %v198
      %v388 = vunpack.c.l.b16 %v199
      %v389 = vunpack.c.h.b16 %v199
      %v390 = vunpack.c.l.b16 %v200
      %v391 = vunpack.c.h.b16 %v200
      %v392 = vunpack.c.l.b16 %v201
      %v393 = vunpack.c.l.b16 %v202
      %v394 = vunpack.c.h.b16 %v202
      %v395 = vunpack.c.l.b16 %v203
      %v396 = vunpack.c.h.b16 %v203
      %v397 = vunpack.c.l.b16 %v204
      %v398 = vunpack.c.l.b16 %v205
      %v399 = vunpack.c.h.b16 %v205
      %v400 = vunpack.c.l.b16 %v206
      %v401 = vunpack.c.h.b16 %v206
      %v402 = vunpack.c.l.b16 %v207
      %v403 = vunpack.c.l.b16 %v208
      %v404 = vunpack.c.h.b16 %v208
      %v405 = vunpack.c.l.b16 %v209
      %v406 = vunpack.c.h.b16 %v209
      %v407 = vunpack.c.l.b16 %v210
      %v408 = vunpack.c.l.b16 %v211
      %v409 = vunpack.c.h.b16 %v211
      %v410 = vunpack.c.l.b16 %v212
      %v411 = vunpack.c.h.b16 %v212
      %v412 = vunpack.c.l.b16 %v213
      %v413 = vunpack.c.l.b16 %v214
      %v414 = vunpack.c.h.b16 %v214
      %v415 = vunpack.c.l.b16 %v215
      %v416 = vunpack.c.h.b16 %v215
      %v417 = vunpack.c.l.b16 %v216
      %v418 = vunpack.c.l.b16 %v217
      %v419 = vunpack.c.h.b16 %v217
      %v420 = vunpack.c.l.b16 %v218
      %v421 = vunpack.c.h.b16 %v218
      %v422 = vunpack.c.l.b16 %v219
      %v423 = vunpack.c.l.b16 %v220
      %v424 = vunpack.c.h.b16 %v220
      %v425 = vunpack.c.l.b16 %v221
      %v426 = vunpack.c.h.b16 %v221
      %v427 = vunpack.c.l.b16 %v222
      %v428 = vunpack.c.l.b16 %v223
      %v429 = vunpack.c.h.b16 %v223
      %v430 = vunpack.c.l.b16 %v224
      %v431 = vunpack.c.h.b16 %v224
      %v432 = vunpack.c.l.b16 %v225
      %v433 = vpack.c.b16 %v358, %v353
      %v434 = vpack.c.b16 %v359, %v354
      %v435 = vpack.c.b16 %v360, %v355
      %v436 = vpack.c.b16 %v361, %v356
      %v437 = vpack.c.b16 %v362, %v357
      %v438 = vpack.c.b16 %v368, %v363
      %v439 = vpack.c.b16 %v369, %v364
      %v440 = vpack.c.b16 %v370, %v365
      %v441 = vpack.c.b16 %v371, %v366
      %v442 = vpack.c.b16 %v372, %v367
      %v443 = vpack.c.b16 %v378, %v373
      %v444 = vpack.c.b16 %v379, %v374
      %v445 = vpack.c.b16 %v380, %v375
      %v446 = vpack.c.b16 %v381, %v376
      %v447 = vpack.c.b16 %v382, %v377
      %v448 = vpack.c.b16 %v388, %v383
      %v449 = vpack.c.b16 %v389, %v384
      %v450 = vpack.c.b16 %v390, %v385
      %v451 = vpack.c.b16 %v391, %v386
      %v452 = vpack.c.b16 %v392, %v387
      %v453 = vpack.c.b16 %v398, %v393
      %v454 = vpack.c.b16 %v399, %v394
      %v455 = vpack.c.b16 %v400, %v395
      %v456 = vpack.c.b16 %v401, %v396
      %v457 = vpack.c.b16 %v402, %v397
      %v458 = vpack.c.b16 %v408, %v403
      %v459 = vpack.c.b16 %v409, %v404
      %v460 = vpack.c.b16 %v410, %v405
      %v461 = vpack.c.b16 %v411, %v406
      %v462 = vpack.c.b16 %v412, %v407
      %v463 = vpack.c.b16 %v418, %v413
      %v464 = vpack.c.b16 %v419, %v414
      %v465 = vpack.c.b16 %v420, %v415
      %v466 = vpack.c.b16 %v421, %v416
      %v467 = vpack.c.b16 %v422, %v417
      %v468 = vpack.c.b16 %v428, %v423
      %v469 = vpack.c.b16 %v429, %v424
      %v470 = vpack.c.b16 %v430, %v425
      %v471 = vpack.c.b16 %v431, %v426
      %v472 = vpack.c.b16 %v432, %v427
      %v577 = vunpack.c.l.b16 %v226
      %v578 = vunpack.c.l.b16 %v227
      %v579 = vunpack.c.l.b16 %v228
      %v580 = vunpack.c.l.b16 %v229
      %v581 = vunpack.c.l.b16 %v230
      %v582 = vunpack.c.l.b16 %v231
      %v583 = vunpack.c.l.b16 %v232
      %v584 = vunpack.c.l.b16 %v233
      %v585 = vunpack.c.l.b16 %v234
      %v586 = vunpack.c.l.b16 %v235
      %v587 = vunpack.c.l.b16 %v236
      %v588 = vunpack.c.l.b16 %v237
      %v589 = vunpack.c.l.b16 %v238
      %v590 = vunpack.c.l.b16 %v239
      %v591 = vunpack.c.l.b16 %v240
      %v592 = vunpack.c.l.b16 %v241
      %v593 = vunpack.c.l.b16 %v242
      %v594 = vunpack.c.l.b16 %v243
      %v595 = vunpack.c.l.b16 %v244
      %v596 = vunpack.c.l.b16 %v245
      %v597 = vunpack.c.l.b16 %v246
      %v598 = vunpack.c.l.b16 %v247
      %v599 = vunpack.c.l.b16 %v248
      %v600 = vunpack.c.l.b16 %v249
      %v601 = vunpack.c.l.b16 %v250
      %v602 = vunpack.c.l.b16 %v251
      %v603 = vunpack.c.l.b16 %v252
      %v604 = vunpack.c.l.b16 %v253
      %v605 = vunpack.c.l.b16 %v254
      %v606 = vunpack.c.l.b16 %v255
      %v607 = vunpack.c.l.b16 %v256
      %v608 = vunpack.c.l.b16 %v257
      %v609 = vunpack.c.l.b16 %v258
      %v610 = vunpack.c.l.b16 %v259
      %v611 = vunpack.c.l.b16 %v260
      %v612 = vunpack.c.l.b16 %v261
      %v613 = vunpack.c.l.b16 %v262
      %v614 = vunpack.c.l.b16 %v263
      %v615 = vunpack.c.l.b16 %v264
      %v616 = vunpack.c.l.b16 %v265
      %v617 = vunpack.c.l.b16 %v266
      %v618 = vunpack.c.l.b16 %v267
      %v619 = vunpack.c.l.b16 %v268
      %v620 = vunpack.c.l.b16 %v269
      %v621 = vunpack.c.l.b16 %v270
      %v622 = vunpack.c.l.b16 %v271
      %v623 = vunpack.c.l.b16 %v272
      %v624 = vunpack.c.l.b16 %v273
      %v625 = vunpack.c.l.b16 %v274
      %v626 = vunpack.c.l.b16 %v275
      %v627 = vunpack.c.l.b16 %v276
      %v628 = vunpack.c.l.b16 %v277
      %v629 = vunpack.c.l.b16 %v278
      %v630 = vunpack.c.l.b16 %v279
      %v631 = vunpack.c.l.b16 %v280
      %v632 = vunpack.c.l.b16 %v281
      %v633 = vunpack.c.l.b16 %v282
      %v634 = vunpack.c.l.b16 %v283
      %v635 = vunpack.c.l.b16 %v284
      %v636 = vunpack.c.l.b16 %v285
      %v637 = vunpack.c.l.b16 %v286
      %v638 = vunpack.c.l.b16 %v287
      %v639 = vunpack.c.l.b16 %v288
      %v640 = vunpack.c.l.b16 %v289
      %v641 = vunpack.c.l.b16 %v290
      %v642 = vunpack.c.l.b16 %v291
      %v643 = vunpack.c.l.b16 %v292
      %v644 = vunpack.c.l.b16 %v293
      %v645 = vunpack.c.l.b16 %v294
      %v646 = vunpack.c.l.b16 %v295
      %v647 = vunpack.c.l.b16 %v296
      %v648 = vunpack.c.l.b16 %v297
      %v649 = vpack.c.b16 %v578, %v577
      %v650 = vpack.c.b16 %v580, %v579
      %v651 = vpack.c.b16 %v582, %v581
      %v652 = vpack.c.b16 %v584, %v583
      %v653 = vpack.c.b16 %v586, %v585
      %v654 = vpack.c.b16 %v588, %v587
      %v655 = vpack.c.b16 %v590, %v589
      %v656 = vpack.c.b16 %v592, %v591
      %v657 = vpack.c.b16 %v594, %v593
      %v658 = vpack.c.b16 %v596, %v595
      %v659 = vpack.c.b16 %v598, %v597
      %v660 = vpack.c.b16 %v600, %v599
      %v661 = vpack.c.b16 %v602, %v601
      %v662 = vpack.c.b16 %v604, %v603
      %v663 = vpack.c.b16 %v606, %v605
      %v664 = vpack.c.b16 %v608, %v607
      %v665 = vpack.c.b16 %v610, %v609
      %v666 = vpack.c.b16 %v612, %v611
      %v667 = vpack.c.b16 %v614, %v613
      %v668 = vpack.c.b16 %v616, %v615
      %v669 = vpack.c.b16 %v618, %v617
      %v670 = vpack.c.b16 %v620, %v619
      %v671 = vpack.c.b16 %v622, %v621
      %v672 = vpack.c.b16 %v624, %v623
      %v673 = vpack.c.b16 %v626, %v625
      %v674 = vpack.c.b16 %v628, %v627
      %v675 = vpack.c.b16 %v630, %v629
      %v676 = vpack.c.b16 %v632, %v631
      %v677 = vpack.c.b16 %v634, %v633
      %v678 = vpack.c.b16 %v636, %v635
      %v679 = vpack.c.b16 %v638, %v637
      %v680 = vpack.c.b16 %v640, %v639
      %v681 = vpack.c.b16 %v642, %v641
      %v682 = vpack.c.b16 %v644, %v643
      %v683 = vpack.c.b16 %v646, %v645
      %v684 = vpack.c.b16 %v648, %v647
      %vm721 = vcmask 523264
      %v723 = vsel %vm721, %v437, 0
      %v726 = vsel %vm721, %v442, 0
      %v729 = vsel %vm721, %v447, 0
      %v732 = vsel %vm721, %v452, 0
      %v735 = vsel %vm721, %v457, 0
      %v738 = vsel %vm721, %v462, 0
      %v741 = vsel %vm721, %v467, 0
      %v744 = vsel %vm721, %v472, 0
      %746 = vmatprep.subr.bf16.mxu0 0
      %747 = vmatpush1.bf16.msra.mxu0 %v649
      %748 = vmatprep.subr.bf16.mxu0 0
      %749 = vmatpush1.bf16.msra.mxu0 %v650
      %750 = vmatprep.subr.bf16.mxu0 0
      %751 = vmatpush1.bf16.msra.mxu0 %v651
      %752 = vmatprep.subr.bf16.mxu0 0
      %753 = vmatpush1.bf16.msra.mxu0 %v652
      %754 = vmatprep.subr.bf16.mxu0 0
      %755 = vmatpush1.bf16.msra.mxu0 %v653
      %756 = vmatprep.subr.bf16.mxu0 0
      %757 = vmatpush1.bf16.msra.mxu0 %v654
      %758 = vmatprep.subr.bf16.mxu0 0
      %759 = vmatpush1.bf16.msra.mxu0 %v655
      %760 = vmatprep.subr.bf16.mxu0 0
      %761 = vmatpush1.bf16.msra.mxu0 %v656
      %762 = vmatprep.subr.bf16.mxu0 0
      %763 = vmatpush1.bf16.msra.mxu0 %v657
      %764 = vmatprep.subr.bf16.mxu0 0
      %765 = vmatpush1.bf16.msra.mxu0 %v658
      %766 = vmatprep.subr.bf16.mxu0 0
      %767 = vmatpush1.bf16.msra.mxu0 %v659
      %768 = vmatprep.subr.bf16.mxu0 0
      %769 = vmatpush1.bf16.msra.mxu0 %v660
      %770 = vmatprep.subr.bf16.mxu0 0
      %771 = vmatpush1.bf16.msra.mxu0 %v661
      %772 = vmatprep.subr.bf16.mxu0 0
      %773 = vmatpush1.bf16.msra.mxu0 %v662
      %774 = vmatprep.subr.bf16.mxu0 0
      %775 = vmatpush1.bf16.msra.mxu0 %v663
      %776 = vmatprep.subr.bf16.mxu0 0
      %777 = vmatpush1.bf16.msra.mxu0 %v664
      %778 = vmatprep.mubr.bf16.mxu0 %v434
      %779 = vmatmul.mubr.bf16.gmra.mrb[0].mxu0 %v433
      %v780 = vpop.f32.mrb[0].mxu0
      %v781 = vadd.f32 %v303, %v780
      %v782 = vpop.f32.mrb[0].mxu0
      %v783 = vpop.f32.mrb[0].mxu0
      %v784 = vadd.f32 %v303, %v783
      %v785 = vpop.f32.mrb[0].mxu0
      %786 = vmatprep.mubr.bf16.mxu0 %v439
      %787 = vmatmul.mubr.bf16.gmra.mrb[0].mxu0 %v438
      %v788 = vpop.f32.mrb[0].mxu0
      %v789 = vadd.f32 %v303, %v788
      %v790 = vpop.f32.mrb[0].mxu0
      %v791 = vpop.f32.mrb[0].mxu0
      %v792 = vadd.f32 %v303, %v791
      %v793 = vpop.f32.mrb[0].mxu0
      %794 = vmatprep.mubr.bf16.mxu0 %v444
      %795 = vmatmul.mubr.bf16.gmra.mrb[0].mxu0 %v443
      %v796 = vpop.f32.mrb[0].mxu0
      %v797 = vadd.f32 %v303, %v796
      %v798 = vpop.f32.mrb[0].mxu0
      %v799 = vpop.f32.mrb[0].mxu0
      %v800 = vadd.f32 %v303, %v799
      %v801 = vpop.f32.mrb[0].mxu0
      %802 = vmatprep.mubr.bf16.mxu0 %v449
      %803 = vmatmul.mubr.bf16.gmra.mrb[0].mxu0 %v448
      %v804 = vpop.f32.mrb[0].mxu0
      %v805 = vadd.f32 %v303, %v804
      %v806 = vpop.f32.mrb[0].mxu0
      %v807 = vpop.f32.mrb[0].mxu0
      %v808 = vadd.f32 %v303, %v807
      %v809 = vpop.f32.mrb[0].mxu0
      %810 = vmatprep.mubr.bf16.mxu0 %v454
      %811 = vmatmul.mubr.bf16.gmra.mrb[0].mxu0 %v453
      %v812 = vpop.f32.mrb[0].mxu0
      %v813 = vadd.f32 %v303, %v812
      %v814 = vpop.f32.mrb[0].mxu0
      %v815 = vpop.f32.mrb[0].mxu0
      %v816 = vadd.f32 %v303, %v815
      %v817 = vpop.f32.mrb[0].mxu0
      %818 = vmatprep.mubr.bf16.mxu0 %v459
      %819 = vmatmul.mubr.bf16.gmra.mrb[0].mxu0 %v458
      %v820 = vpop.f32.mrb[0].mxu0
      %v821 = vadd.f32 %v303, %v820
      %v822 = vpop.f32.mrb[0].mxu0
      %v823 = vpop.f32.mrb[0].mxu0
      %v824 = vadd.f32 %v303, %v823
      %v825 = vpop.f32.mrb[0].mxu0
      %826 = vmatprep.mubr.bf16.mxu0 %v464
      %827 = vmatmul.mubr.bf16.gmra.mrb[0].mxu0 %v463
      %v828 = vpop.f32.mrb[0].mxu0
      %v829 = vadd.f32 %v303, %v828
      %v830 = vpop.f32.mrb[0].mxu0
      %v831 = vpop.f32.mrb[0].mxu0
      %v832 = vadd.f32 %v303, %v831
      %v833 = vpop.f32.mrb[0].mxu0
      %834 = vmatprep.mubr.bf16.mxu0 %v469
      %835 = vmatmul.mubr.bf16.gmra.mrb[0].mxu0 %v468
      %v836 = vpop.f32.mrb[0].mxu0
      %v837 = vadd.f32 %v303, %v836
      %v838 = vpop.f32.mrb[0].mxu0
      %v839 = vpop.f32.mrb[0].mxu0
      %v840 = vadd.f32 %v303, %v839
      %v841 = vpop.f32.mrb[0].mxu0
      %842 = vdwg.mxu0
      %843 = vmatprep.subr.bf16.mxu0 0
      %844 = vmatpush1.bf16.msra.mxu0 %v665
      %845 = vmatprep.subr.bf16.mxu0 0
      %846 = vmatpush1.bf16.msra.mxu0 %v666
      %847 = vmatprep.subr.bf16.mxu0 0
      %848 = vmatpush1.bf16.msra.mxu0 %v667
      %849 = vmatprep.subr.bf16.mxu0 0
      %850 = vmatpush1.bf16.msra.mxu0 %v668
      %851 = vmatprep.subr.bf16.mxu0 0
      %852 = vmatpush1.bf16.msra.mxu0 %v669
      %853 = vmatprep.subr.bf16.mxu0 0
      %854 = vmatpush1.bf16.msra.mxu0 %v670
      %855 = vmatprep.subr.bf16.mxu0 0
      %856 = vmatpush1.bf16.msra.mxu0 %v671
      %857 = vmatprep.subr.bf16.mxu0 0
      %858 = vmatpush1.bf16.msra.mxu0 %v672
      %859 = vmatprep.subr.bf16.mxu0 0
      %860 = vmatpush1.bf16.msra.mxu0 %v673
      %861 = vmatprep.subr.bf16.mxu0 0
      %862 = vmatpush1.bf16.msra.mxu0 %v674
      %863 = vmatprep.subr.bf16.mxu0 0
      %864 = vmatpush1.bf16.msra.mxu0 %v675
      %865 = vmatprep.subr.bf16.mxu0 0
      %866 = vmatpush1.bf16.msra.mxu0 %v676
      %867 = vmatprep.subr.bf16.mxu0 0
      %868 = vmatpush1.bf16.msra.mxu0 %v677
      %869 = vmatprep.subr.bf16.mxu0 0
      %870 = vmatpush1.bf16.msra.mxu0 %v678
      %871 = vmatprep.subr.bf16.mxu0 0
      %872 = vmatpush1.bf16.msra.mxu0 %v679
      %873 = vmatprep.subr.bf16.mxu0 0
      %874 = vmatpush1.bf16.msra.mxu0 %v680
      %875 = vmatprep.mubr.bf16.mxu0 %v436
      %876 = vmatmul.mubr.bf16.gmra.mrb[0].mxu0 %v435
      %v877 = vpop.f32.mrb[0].mxu0
      %v878 = vadd.f32 %v781, %v877
      %v879 = vpop.f32.mrb[0].mxu0
      %v880 = vpop.f32.mrb[0].mxu0
      %v881 = vadd.f32 %v784, %v880
      %v882 = vpop.f32.mrb[0].mxu0
      %883 = vmatprep.mubr.bf16.mxu0 %v441
      %884 = vmatmul.mubr.bf16.gmra.mrb[0].mxu0 %v440
      %v885 = vpop.f32.mrb[0].mxu0
      %v886 = vadd.f32 %v789, %v885
      %v887 = vpop.f32.mrb[0].mxu0
      %v888 = vpop.f32.mrb[0].mxu0
      %v889 = vadd.f32 %v792, %v888
      %v890 = vpop.f32.mrb[0].mxu0
      %891 = vmatprep.mubr.bf16.mxu0 %v446
      %892 = vmatmul.mubr.bf16.gmra.mrb[0].mxu0 %v445
      %v893 = vpop.f32.mrb[0].mxu0
      %v894 = vadd.f32 %v797, %v893
      %v895 = vpop.f32.mrb[0].mxu0
      %v896 = vpop.f32.mrb[0].mxu0
      %v897 = vadd.f32 %v800, %v896
      %v898 = vpop.f32.mrb[0].mxu0
      %899 = vmatprep.mubr.bf16.mxu0 %v451
      %900 = vmatmul.mubr.bf16.gmra.mrb[0].mxu0 %v450
      %v901 = vpop.f32.mrb[0].mxu0
      %v902 = vadd.f32 %v805, %v901
      %v903 = vpop.f32.mrb[0].mxu0
      %v904 = vpop.f32.mrb[0].mxu0
      %v905 = vadd.f32 %v808, %v904
      %v906 = vpop.f32.mrb[0].mxu0
      %907 = vmatprep.mubr.bf16.mxu0 %v456
      %908 = vmatmul.mubr.bf16.gmra.mrb[0].mxu0 %v455
      %v909 = vpop.f32.mrb[0].mxu0
      %v910 = vadd.f32 %v813, %v909
      %v911 = vpop.f32.mrb[0].mxu0
      %v912 = vpop.f32.mrb[0].mxu0
      %v913 = vadd.f32 %v816, %v912
      %v914 = vpop.f32.mrb[0].mxu0
      %915 = vmatprep.mubr.bf16.mxu0 %v461
      %916 = vmatmul.mubr.bf16.gmra.mrb[0].mxu0 %v460
      %v917 = vpop.f32.mrb[0].mxu0
      %v918 = vadd.f32 %v821, %v917
      %v919 = vpop.f32.mrb[0].mxu0
      %v920 = vpop.f32.mrb[0].mxu0
      %v921 = vadd.f32 %v824, %v920
      %v922 = vpop.f32.mrb[0].mxu0
      %923 = vmatprep.mubr.bf16.mxu0 %v466
      %924 = vmatmul.mubr.bf16.gmra.mrb[0].mxu0 %v465
      %v925 = vpop.f32.mrb[0].mxu0
      %v926 = vadd.f32 %v829, %v925
      %v927 = vpop.f32.mrb[0].mxu0
      %v928 = vpop.f32.mrb[0].mxu0
      %v929 = vadd.f32 %v832, %v928
      %v930 = vpop.f32.mrb[0].mxu0
      %931 = vmatprep.mubr.bf16.mxu0 %v471
      %932 = vmatmul.mubr.bf16.gmra.mrb[0].mxu0 %v470
      %v933 = vpop.f32.mrb[0].mxu0
      %v934 = vadd.f32 %v837, %v933
      %v935 = vpop.f32.mrb[0].mxu0
      %v936 = vpop.f32.mrb[0].mxu0
      %v937 = vadd.f32 %v840, %v936
      %v938 = vpop.f32.mrb[0].mxu0
      %939 = vdwg.mxu0
      %940 = vmatprep.subr.bf16.mxu0 0
      %941 = vmatpush1.bf16.msra.mxu0 %v681
      %942 = vmatprep.subr.bf16.mxu0 0
      %943 = vmatpush1.bf16.msra.mxu0 %v682
      %944 = vmatprep.subr.bf16.mxu0 0
      %945 = vmatpush1.bf16.msra.mxu0 %v683
      %946 = vmatprep.subr.bf16.mxu0 0
      %947 = vmatpush1.bf16.msra.mxu0 %v684
      %948 = vmatprep.subr.bf16.mxu0 0
      %949 = vmatpush1.bf16.msra.mxu0 0
      %950 = vmatprep.subr.bf16.mxu0 0
      %951 = vmatpush1.bf16.msra.mxu0 0
      %952 = vmatprep.subr.bf16.mxu0 0
      %953 = vmatpush1.bf16.msra.mxu0 0
      %954 = vmatprep.subr.bf16.mxu0 0
      %955 = vmatpush1.bf16.msra.mxu0 0
      %956 = vmatprep.subr.bf16.mxu0 0
      %957 = vmatpush1.bf16.msra.mxu0 0
      %958 = vmatprep.subr.bf16.mxu0 0
      %959 = vmatpush1.bf16.msra.mxu0 0
      %960 = vmatprep.subr.bf16.mxu0 0
      %961 = vmatpush1.bf16.msra.mxu0 0
      %962 = vmatprep.subr.bf16.mxu0 0
      %963 = vmatpush1.bf16.msra.mxu0 0
      %964 = vmatprep.subr.bf16.mxu0 0
      %965 = vmatpush1.bf16.msra.mxu0 0
      %966 = vmatprep.subr.bf16.mxu0 0
      %967 = vmatpush1.bf16.msra.mxu0 0
      %968 = vmatprep.subr.bf16.mxu0 0
      %969 = vmatpush1.bf16.msra.mxu0 0
      %970 = vmatprep.subr.bf16.mxu0 0
      %971 = vmatpush1.bf16.msra.mxu0 0
      %972 = vmatprep.mubr.bf16.mxu0 0
      %973 = vmatmul.mubr.bf16.gmra.mrb[0].mxu0 %v723
      %v974 = vpop.f32.mrb[0].mxu0
      %v975 = vadd.f32 %v878, %v974
      %v976 = vpop.f32.mrb[0].mxu0
      %v977 = vpop.f32.mrb[0].mxu0
      %v978 = vadd.f32 %v881, %v977
      %v979 = vpop.f32.mrb[0].mxu0
      %980 = vmatprep.mubr.bf16.mxu0 0
      %981 = vmatmul.mubr.bf16.gmra.mrb[0].mxu0 %v726
      %v982 = vpop.f32.mrb[0].mxu0
      %v983 = vadd.f32 %v886, %v982
      %v984 = vpop.f32.mrb[0].mxu0
      %v985 = vpop.f32.mrb[0].mxu0
      %v986 = vadd.f32 %v889, %v985
      %v987 = vpop.f32.mrb[0].mxu0
      %988 = vmatprep.mubr.bf16.mxu0 0
      %989 = vmatmul.mubr.bf16.gmra.mrb[0].mxu0 %v729
      %v990 = vpop.f32.mrb[0].mxu0
      %v991 = vadd.f32 %v894, %v990
      %v992 = vpop.f32.mrb[0].mxu0
      %v993 = vpop.f32.mrb[0].mxu0
      %v994 = vadd.f32 %v897, %v993
      %v995 = vpop.f32.mrb[0].mxu0
      %996 = vmatprep.mubr.bf16.mxu0 0
      %997 = vmatmul.mubr.bf16.gmra.mrb[0].mxu0 %v732
      %v998 = vpop.f32.mrb[0].mxu0
      %v999 = vadd.f32 %v902, %v998
      %v1000 = vpop.f32.mrb[0].mxu0
      %v1001 = vpop.f32.mrb[0].mxu0
      %v1002 = vadd.f32 %v905, %v1001
      %v1003 = vpop.f32.mrb[0].mxu0
      %1004 = vmatprep.mubr.bf16.mxu0 0
      %1005 = vmatmul.mubr.bf16.gmra.mrb[0].mxu0 %v735
      %v1006 = vpop.f32.mrb[0].mxu0
      %v1007 = vadd.f32 %v910, %v1006
      %v1008 = vpop.f32.mrb[0].mxu0
      %v1009 = vpop.f32.mrb[0].mxu0
      %v1010 = vadd.f32 %v913, %v1009
      %v1011 = vpop.f32.mrb[0].mxu0
      %1012 = vmatprep.mubr.bf16.mxu0 0
      %1013 = vmatmul.mubr.bf16.gmra.mrb[0].mxu0 %v738
      %v1014 = vpop.f32.mrb[0].mxu0
      %v1015 = vadd.f32 %v918, %v1014
      %v1016 = vpop.f32.mrb[0].mxu0
      %v1017 = vpop.f32.mrb[0].mxu0
      %v1018 = vadd.f32 %v921, %v1017
      %v1019 = vpop.f32.mrb[0].mxu0
      %1020 = vmatprep.mubr.bf16.mxu0 0
      %1021 = vmatmul.mubr.bf16.gmra.mrb[0].mxu0 %v741
      %v1022 = vpop.f32.mrb[0].mxu0
      %v1023 = vadd.f32 %v926, %v1022
      %v1024 = vpop.f32.mrb[0].mxu0
      %v1025 = vpop.f32.mrb[0].mxu0
      %v1026 = vadd.f32 %v929, %v1025
      %v1027 = vpop.f32.mrb[0].mxu0
      %1028 = vmatprep.mubr.bf16.mxu0 0
      %1029 = vmatmul.mubr.bf16.gmra.mrb[0].mxu0 %v744
      %v1030 = vpop.f32.mrb[0].mxu0
      %v1031 = vadd.f32 %v934, %v1030
      %v1032 = vpop.f32.mrb[0].mxu0
      %v1033 = vpop.f32.mrb[0].mxu0
      %v1034 = vadd.f32 %v937, %v1033
      %v1035 = vpop.f32.mrb[0].mxu0
      %1036 = vdwg.mxu0
      %vm1037 = vcmp.ge.f32.partialorder %v975, 0.0
      %vm1038 = vcmp.ge.f32.partialorder %v978, 0.0
      %vm1039 = vcmp.ge.f32.partialorder %v983, 0.0
      %vm1040 = vcmp.ge.f32.partialorder %v986, 0.0
      %vm1041 = vcmp.ge.f32.partialorder %v991, 0.0
      %vm1042 = vcmp.ge.f32.partialorder %v994, 0.0
      %vm1043 = vcmp.ge.f32.partialorder %v999, 0.0
      %vm1044 = vcmp.ge.f32.partialorder %v1002, 0.0
      %vm1045 = vcmp.ge.f32.partialorder %v1007, 0.0
      %vm1046 = vcmp.ge.f32.partialorder %v1010, 0.0
      %vm1047 = vcmp.ge.f32.partialorder %v1015, 0.0
      %vm1048 = vcmp.ge.f32.partialorder %v1018, 0.0
      %vm1049 = vcmp.ge.f32.partialorder %v1023, 0.0
      %vm1050 = vcmp.ge.f32.partialorder %v1026, 0.0
      %vm1051 = vcmp.ge.f32.partialorder %v1031, 0.0
      %vm1052 = vcmp.ge.f32.partialorder %v1034, 0.0
      %v1053 = vmul.f32 %v975, 0.01
      %v1054 = vmul.f32 %v978, 0.01
      %v1055 = vmul.f32 %v983, 0.01
      %v1056 = vmul.f32 %v986, 0.01
      %v1057 = vmul.f32 %v991, 0.01
      %v1058 = vmul.f32 %v994, 0.01
      %v1059 = vmul.f32 %v999, 0.01
      %v1060 = vmul.f32 %v1002, 0.01
      %v1061 = vmul.f32 %v1007, 0.01
      %v1062 = vmul.f32 %v1010, 0.01
      %v1063 = vmul.f32 %v1015, 0.01
      %v1064 = vmul.f32 %v1018, 0.01
      %v1065 = vmul.f32 %v1023, 0.01
      %v1066 = vmul.f32 %v1026, 0.01
      %v1067 = vmul.f32 %v1031, 0.01
      %v1068 = vmul.f32 %v1034, 0.01
      %v1069 = vsel %vm1037, %v975, %v1053
      %v1070 = vsel %vm1038, %v978, %v1054
      %v1071 = vsel %vm1039, %v983, %v1055
      %v1072 = vsel %vm1040, %v986, %v1056
      %v1073 = vsel %vm1041, %v991, %v1057
      %v1074 = vsel %vm1042, %v994, %v1058
      %v1075 = vsel %vm1043, %v999, %v1059
      %v1076 = vsel %vm1044, %v1002, %v1060
      %v1077 = vsel %vm1045, %v1007, %v1061
      %v1078 = vsel %vm1046, %v1010, %v1062
      %v1079 = vsel %vm1047, %v1015, %v1063
      %v1080 = vsel %vm1048, %v1018, %v1064
      %v1081 = vsel %vm1049, %v1023, %v1065
      %v1082 = vsel %vm1050, %v1026, %v1066
      %v1083 = vsel %vm1051, %v1031, %v1067
      %v1084 = vsel %vm1052, %v1034, %v1068
      %v1085 = vpack.c.bf16 %v1070, %v1069
      %v1086 = vpack.c.bf16 %v1072, %v1071
      %v1087 = vpack.c.bf16 %v1074, %v1073
      %v1088 = vpack.c.bf16 %v1076, %v1075
      %v1089 = vpack.c.bf16 %v1078, %v1077
      %v1090 = vpack.c.bf16 %v1080, %v1079
      %v1091 = vpack.c.bf16 %v1082, %v1081
      %v1092 = vpack.c.bf16 %v1084, %v1083
      %v1101 = vunpack.c.l.b16 %v1085
      %v1102 = vunpack.c.h.b16 %v1085
      %v1103 = vunpack.c.l.b16 %v1086
      %v1104 = vunpack.c.h.b16 %v1086
      %v1105 = vunpack.c.l.b16 %v1087
      %v1106 = vunpack.c.h.b16 %v1087
      %v1107 = vunpack.c.l.b16 %v1088
      %v1108 = vunpack.c.h.b16 %v1088
      %v1109 = vunpack.c.l.b16 %v1089
      %v1110 = vunpack.c.h.b16 %v1089
      %v1111 = vunpack.c.l.b16 %v1090
      %v1112 = vunpack.c.h.b16 %v1090
      %v1113 = vunpack.c.l.b16 %v1091
      %v1114 = vunpack.c.h.b16 %v1091
      %v1115 = vunpack.c.l.b16 %v1092
      %v1116 = vunpack.c.h.b16 %v1092
      %v1117 = vpack.c.b16 %v1101, %v1101
      %v1118 = vpack.c.b16 %v1102, %v1102
      %v1119 = vpack.c.b16 %v1103, %v1103
      %v1120 = vpack.c.b16 %v1104, %v1104
      %v1121 = vpack.c.b16 %v1105, %v1105
      %v1122 = vpack.c.b16 %v1106, %v1106
      %v1123 = vpack.c.b16 %v1107, %v1107
      %v1124 = vpack.c.b16 %v1108, %v1108
      %v1125 = vpack.c.b16 %v1109, %v1109
      %v1126 = vpack.c.b16 %v1110, %v1110
      %v1127 = vpack.c.b16 %v1111, %v1111
      %v1128 = vpack.c.b16 %v1112, %v1112
      %v1129 = vpack.c.b16 %v1113, %v1113
      %v1130 = vpack.c.b16 %v1114, %v1114
      %v1131 = vpack.c.b16 %v1115, %v1115
      %v1132 = vpack.c.b16 %v1116, %v1116
      %1149 = vst [vmem:[%s175] sm:$0xf] %v1117
      %1150 = vst [vmem:[%s175 + $0x4] sm:$0xf] %v1118
      %1151 = vst [vmem:[%s175 + $0x8] sm:$0xf] %v1119
      %1152 = vst [vmem:[%s175 + $0xc] sm:$0xf] %v1120
      %1153 = vst [vmem:[%s175 + $0x10] sm:$0xf] %v1121
      %1154 = vst [vmem:[%s175 + $0x14] sm:$0xf] %v1122
      %1155 = vst [vmem:[%s175 + $0x18] sm:$0xf] %v1123
      %1156 = vst [vmem:[%s175 + $0x1c] sm:$0xf] %v1124
      %1157 = vst [vmem:[%s175 + $0x20] sm:$0xf] %v1125
      %1158 = vst [vmem:[%s175 + $0x24] sm:$0xf] %v1126
      %1159 = vst [vmem:[%s175 + $0x28] sm:$0xf] %v1127
      %1160 = vst [vmem:[%s175 + $0x2c] sm:$0xf] %v1128
      %1161 = vst [vmem:[%s175 + $0x30] sm:$0xf] %v1129
      %1162 = vst [vmem:[%s175 + $0x34] sm:$0xf] %v1130
      %1163 = vst [vmem:[%s175 + $0x38] sm:$0xf] %v1131
      %1164 = vst [vmem:[%s175 + $0x3c] sm:$0xf] %v1132
      %s1165 = smul.u32 16, %s14
      %p1166 = scmp.lt.s32.totalorder %s1165, 31
      %s1167 = scalar_select %p1166, %s1165, 31
      %s1168 = smul.addr %s1167, 4
      %s1169 = scalar_lea.vmem %s3, %s1168
      // Predicated region
      $region33: #{encoder_forward.4} parent=31 // pred_check
        %p1170 = pneg %p100
      $region34: #{encoder_forward.4} parent=31 // pred_check_branch
        %1172 = sbr.rel (%p1170) target = $region36
      $region35: #{encoder_forward.4} parent=31 // pred_region
        %s1173 = smul.u32 16, %s14
      $region36: #{encoder_forward.4} parent=31 // pred_fallthru
        _
    $region32: #{encoder_forward.4} parent=5 // pred_fallthru
      _
    %p1174 = scmp.le.s32.totalorder 2, %s9
    // Predicated region
    $region37: #{encoder_forward.4} parent=5 // pred_check
      %p1175 = pneg %p1174
    $region38: #{encoder_forward.4} parent=5 // pred_check_branch
      %1177 = sbr.rel (%p1175) target = $region40
    $region39: #{encoder_forward.4} parent=5 // pred_region
      %s1178 = ssub.s32 %s9, 2
      // Predicated region
      $region41: #{encoder_forward.4} parent=39 // pred_check
        %p1179 = pneg %p106
      $region42: #{encoder_forward.4} parent=39 // pred_check_branch
        %1181 = sbr.rel (%p1179) target = $region44
      $region43: #{encoder_forward.4} parent=39 // pred_region
        %s1182 = smul.u32 16, %s15
        %p1183 = scmp.lt.s32.totalorder %s1182, 31
        %s1184 = scalar_select %p1183, %s1182, 31
        %s1185 = smul.addr %s1184, 4
        %s1186 = scalar_lea.vmem %s3, %s1185
      $region44: #{encoder_forward.4} parent=39 // pred_fallthru
        _
    $region40: #{encoder_forward.4} parent=5 // pred_fallthru
      _
  $region6: #{encoder_forward.4} parent=0 // loop_footer
    %s13 = sadd.s32 1, %s9
  $region7: #{encoder_forward.4} parent=0 // loop_footer_branch
    %8 = sbr.rel target = $region3
  $region8: #{encoder_forward.4} parent=0 // loop_exit
    _

// kernel: encoder_forward.5
$region0: #{encoder_forward.5}
  #allocation0 [shape = 'u32[]', space=smem, size = 0x4, offset = 0x4, fixed_abs, tag = 'smem constant byte address 0x4 - core index']
  #allocation1 [shape = 'u32[144,128]{1,0:T(1,128)}', space=vmem, size = 0x12000, scoped, tag = 'internal scratch']
  %s0 = inlined_call_operand.vmem [shape: bf16[64,1152], index: 0, kind: input, shape index: {}]
  %s1 = inlined_call_operand.vmem [shape: bf16[1152,128], index: 1, kind: input, shape index: {}]
  %s2 = inlined_call_operand.vmem [shape: f32[1,128], index: 2, kind: input, shape index: {}]
  %s3 = inlined_call_operand.vmem [shape: f32[64,128], index: 3, kind: output, shape index: {}]
  %s4 = sld [smem:[#allocation0]]
  $region45: #{encoder_forward.5} parent=0
    _
  %s6 = ssub.s32 1, %s4
  %s7 = scalar_select 0, %s6, %s4
  loop: start=0, step=1, limit=4
  $region2: #{encoder_forward.5} parent=0 // loop_pre_header
    _
  $region3: #{encoder_forward.5} parent=0 // loop_header
    %s9 = sphi 0, %s13
    %p10 = scmp.ge.s32.totalorder %s9, 4
    %s19 = sphi 0, %s21
    %s22 = sphi 0, %s19
    %s23 = sphi 0, %s22
    %s39 = sphi 0, %s23
    %s43 = sphi 0, %s43
    %s45 = sphi 0, %s43
    %s46 = sphi 0, %s45
    %s60 = sphi 0, %s46
    %s64 = sphi 0, %s64
    %s66 = sphi 0, %s64
    %s67 = sphi 0, %s66
    %s81 = sphi 0, %s67
    %s87 = sphi 0, %s89
    %s90 = sphi 0, %s87
    %s91 = sphi 0, %s90
    %s107 = sphi 0, %s91
  $region4: #{encoder_forward.5} parent=0 // loop_header_branch
    %12 = sbr.rel (%p10) target = $region8
  $region5: #{encoder_forward.5} parent=0 // loop_body
    %s14 = ssub.s32 %s9, 1
    %s15 = ssub.s32 %s9, 2
    %s16 = sadd.s32 %s9, 1
    %s17 = ssub.s32 %s9, %s16
    %p18 = scmp.eq.s32.totalorder %s17, 0
    %s20 = sadd.s32 %s19, 1
    %s21 = scalar_select %p18, %s19, %s20
    %p24 = pneg %p18
    %p25 = scmp.eq.s32.totalorder %s9, 1
    %p26 = por %p24, %p25
    %p27 = scmp.ne.s32.totalorder %s19, %s22
    %p28 = scmp.eq.s32.totalorder %s9, 0
    %p29 = por %p27, %p28
    %p30 = scmp.ne.s32.totalorder %s19, %s22
    %p31 = scmp.eq.s32.totalorder %s14, 1
    %p32 = por %p30, %p31
    %p33 = scmp.ne.s32.totalorder %s22, %s23
    %p34 = scmp.eq.s32.totalorder %s14, 0
    %p35 = por %p33, %p34
    %p36 = scmp.ne.s32.totalorder %s22, %s23
    %p37 = scmp.eq.s32.totalorder %s15, 1
    %p38 = por %p36, %p37
    %p40 = scmp.ne.s32.totalorder %s23, %s39
    %p41 = scmp.eq.s32.totalorder %s15, 0
    %p42 = por %p40, %p41
    %s44 = sadd.s32 %s43, 1
    %p47 = scmp.eq.s32.totalorder %s9, 1
    %p48 = scmp.ne.s32.totalorder %s43, %s45
    %p49 = scmp.eq.s32.totalorder %s9, 0
    %p50 = por %p48, %p49
    %p51 = scmp.ne.s32.totalorder %s43, %s45
    %p52 = scmp.eq.s32.totalorder %s14, 1
    %p53 = por %p51, %p52
    %p54 = scmp.ne.s32.totalorder %s45, %s46
    %p55 = scmp.eq.s32.totalorder %s14, 0
    %p56 = por %p54, %p55
    %p57 = scmp.ne.s32.totalorder %s45, %s46
    %p58 = scmp.eq.s32.totalorder %s15, 1
    %p59 = por %p57, %p58
    %p61 = scmp.ne.s32.totalorder %s46, %s60
    %p62 = scmp.eq.s32.totalorder %s15, 0
    %p63 = por %p61, %p62
    %s65 = sadd.s32 %s64, 1
    %p68 = scmp.eq.s32.totalorder %s9, 1
    %p69 = scmp.ne.s32.totalorder %s64, %s66
    %p70 = scmp.eq.s32.totalorder %s9, 0
    %p71 = por %p69, %p70
    %p72 = scmp.ne.s32.totalorder %s64, %s66
    %p73 = scmp.eq.s32.totalorder %s14, 1
    %p74 = por %p72, %p73
    %p75 = scmp.ne.s32.totalorder %s66, %s67
    %p76 = scmp.eq.s32.totalorder %s14, 0
    %p77 = por %p75, %p76
    %p78 = scmp.ne.s32.totalorder %s66, %s67
    %p79 = scmp.eq.s32.totalorder %s15, 1
    %p80 = por %p78, %p79
    %p82 = scmp.ne.s32.totalorder %s67, %s81
    %p83 = scmp.eq.s32.totalorder %s15, 0
    %p84 = por %p82, %p83
    %s85 = ssub.s32 %s9, %s16
    %p86 = scmp.eq.s32.totalorder %s85, 0
    %s88 = sadd.s32 %s87, 1
    %s89 = scalar_select %p86, %s87, %s88
    %p92 = pneg %p86
    %p93 = scmp.eq.s32.totalorder %s9, 1
    %p94 = por %p92, %p93
    %p95 = scmp.ne.s32.totalorder %s87, %s90
    %p96 = scmp.eq.s32.totalorder %s9, 0
    %p97 = por %p95, %p96
    %p98 = scmp.ne.s32.totalorder %s87, %s90
    %p99 = scmp.eq.s32.totalorder %s14, 1
    %p100 = por %p98, %p99
    %p101 = scmp.ne.s32.totalorder %s90, %s91
    %p102 = scmp.eq.s32.totalorder %s14, 0
    %p103 = por %p101, %p102
    %p104 = scmp.ne.s32.totalorder %s90, %s91
    %p105 = scmp.eq.s32.totalorder %s15, 1
    %p106 = por %p104, %p105
    %p108 = scmp.ne.s32.totalorder %s91, %s107
    %p109 = scmp.eq.s32.totalorder %s15, 0
    %p110 = por %p108, %p109
    %p111 = scmp.le.s32.totalorder 1, %s9
    %p112 = scmp.lt.s32.totalorder %s9, 3
    %p113 = pnand %p111, %p112
    %p114 = pneg %p113
    // Predicated region
    $region9: #{encoder_forward.5} parent=5 // pred_check
      _
    $region10: #{encoder_forward.5} parent=5 // pred_check_branch
      %116 = sbr.rel (%p113) target = $region12
    $region11: #{encoder_forward.5} parent=5 // pred_region
      %s117 = ssub.s32 %s9, 1
      // Predicated region
      $region13: #{encoder_forward.5} parent=11 // pred_check
        %p118 = pneg %p56
      $region14: #{encoder_forward.5} parent=11 // pred_check_branch
        %120 = sbr.rel (%p118) target = $region16
      $region15: #{encoder_forward.5} parent=11 // pred_region
        _
      $region16: #{encoder_forward.5} parent=11 // pred_fallthru
        _
      // Predicated region
      $region17: #{encoder_forward.5} parent=11 // pred_check
        %p121 = pneg %p77
      $region18: #{encoder_forward.5} parent=11 // pred_check_branch
        %123 = sbr.rel (%p121) target = $region20
      $region19: #{encoder_forward.5} parent=11 // pred_region
        _
      $region20: #{encoder_forward.5} parent=11 // pred_fallthru
        _
    $region12: #{encoder_forward.5} parent=5 // pred_fallthru
      _
    %p124 = scmp.lt.s32.totalorder %s9, 2
    // Predicated region
    $region21: #{encoder_forward.5} parent=5 // pred_check
      %p125 = pneg %p124
    $region22: #{encoder_forward.5} parent=5 // pred_check_branch
      %127 = sbr.rel (%p125) target = $region24
    $region23: #{encoder_forward.5} parent=5 // pred_region
      // Predicated region
      $region25: #{encoder_forward.5} parent=23 // pred_check
        %p128 = pneg %p29
      $region26: #{encoder_forward.5} parent=23 // pred_check_branch
        %130 = sbr.rel (%p128) target = $region28
      $region27: #{encoder_forward.5} parent=23 // pred_region
        %s131 = smul.u32 4, %s9
        %p132 = scmp.lt.s32.totalorder %s131, 7
        %s133 = scalar_select %p132, %s131, 7
        %s134 = smul.addr %s133, 9
        %s135 = smul.addr %s134, 4
        %s136 = scalar_lea.vmem %s0, %s135
        %s137 = smul.u32 4, %s9
      $region28: #{encoder_forward.5} parent=23 // pred_fallthru
        _
    $region24: #{encoder_forward.5} parent=5 // pred_fallthru
      _
    %p138 = scmp.le.s32.totalorder 1, %s9
    %p139 = scmp.lt.s32.totalorder %s9, 3
    %p140 = pnand %p138, %p139
    %p141 = pneg %p140
    // Predicated region
    $region29: #{encoder_forward.5} parent=5 // pred_check
      _
    $region30: #{encoder_forward.5} parent=5 // pred_check_branch
      %143 = sbr.rel (%p140) target = $region32
    $region31: #{encoder_forward.5} parent=5 // pred_region
      %s144 = ssub.s32 %s9, 1
      %s145 = smul.u32 4, %s14
      %p146 = scmp.lt.s32.totalorder %s145, 7
      %s147 = scalar_select %p146, %s145, 7
      %s148 = smul.addr %s147, 9
      %s149 = smul.addr %s148, 4
      %s150 = scalar_lea.vmem %s0, %s149
      %p151 = pneg %p35
      %p152 = pneg %p32
      %p153 = pneg %p56
      %p154 = pneg %p53
      %p155 = pneg %p77
      %p156 = pneg %p74
      %p157 = pneg %p103
      %p158 = pneg %p100
      %s159 = smul.u32 4, %s14
      %p160 = scmp.lt.s32.totalorder %s159, 7
      %s161 = scalar_select %p160, %s159, 7
      %s162 = smul.addr %s161, 8
      %s163 = scalar_lea.vmem %s3, %s162
      %s164 = smul.u32 4, %s14
      %p165 = scmp.lt.s32.totalorder %s164, 7
      %s166 = scalar_select %p165, %s164, 7
      %s167 = smul.addr %s166, 9
      %s168 = smul.addr %s167, 4
      %s169 = scalar_lea.vmem %s0, %s168
      %s170 = smul.u32 4, %s14
      %s171 = smul.u32 4, %s14
      %p172 = scmp.lt.s32.totalorder %s171, 7
      %s173 = scalar_select %p172, %s171, 7
      %s174 = smul.addr %s173, 8
      %s175 = scalar_lea.vmem %s3, %s174
      %s176 = smul.u32 4, %s14
      %v178 = vld [vmem:[%s169] sm:$0xff]
      %v179 = vld [vmem:[%s169 + $0x8] sm:$0xff]
      %v180 = vld [vmem:[%s169 + $0x10] sm:$0xff]
      %v181 = vld [vmem:[%s169 + $0x18] sm:$0xff]
      %v182 = vld [vmem:[%s169 + $0x20] sm:$0xf]
      %v183 = vld [vmem:[%s169 + $0x24] sm:$0xff]
      %v184 = vld [vmem:[%s169 + $0x2c] sm:$0xff]
      %v185 = vld [vmem:[%s169 + $0x34] sm:$0xff]
      %v186 = vld [vmem:[%s169 + $0x3c] sm:$0xff]
      %v187 = vld [vmem:[%s169 + $0x44] sm:$0xf]
      %v188 = vld [vmem:[%s169 + $0x48] sm:$0xff]
      %v189 = vld [vmem:[%s169 + $0x50] sm:$0xff]
      %v190 = vld [vmem:[%s169 + $0x58] sm:$0xff]
      %v191 = vld [vmem:[%s169 + $0x60] sm:$0xff]
      %v192 = vld [vmem:[%s169 + $0x68] sm:$0xf]
      %v193 = vld [vmem:[%s169 + $0x6c] sm:$0xff]
      %v194 = vld [vmem:[%s169 + $0x74] sm:$0xff]
      %v195 = vld [vmem:[%s169 + $0x7c] sm:$0xff]
      %v196 = vld [vmem:[%s169 + $0x84] sm:$0xff]
      %v197 = vld [vmem:[%s169 + $0x8c] sm:$0xf]
      %v198 = vld [vmem:[%s1] sm:$0xf]
      %v199 = vld [vmem:[%s1 + $0x4] sm:$0xf]
      %v200 = vld [vmem:[%s1 + $0x8] sm:$0xf]
      %v201 = vld [vmem:[%s1 + $0xc] sm:$0xf]
      %v202 = vld [vmem:[%s1 + $0x10] sm:$0xf]
      %v203 = vld [vmem:[%s1 + $0x14] sm:$0xf]
      %v204 = vld [vmem:[%s1 + $0x18] sm:$0xf]
      %v205 = vld [vmem:[%s1 + $0x1c] sm:$0xf]
      %v206 = vld [vmem:[%s1 + $0x20] sm:$0xf]
      %v207 = vld [vmem:[%s1 + $0x24] sm:$0xf]
      %v208 = vld [vmem:[%s1 + $0x28] sm:$0xf]
      %v209 = vld [vmem:[%s1 + $0x2c] sm:$0xf]
      %v210 = vld [vmem:[%s1 + $0x30] sm:$0xf]
      %v211 = vld [vmem:[%s1 + $0x34] sm:$0xf]
      %v212 = vld [vmem:[%s1 + $0x38] sm:$0xf]
      %v213 = vld [vmem:[%s1 + $0x3c] sm:$0xf]
      %v214 = vld [vmem:[%s1 + $0x40] sm:$0xf]
      %v215 = vld [vmem:[%s1 + $0x44] sm:$0xf]
      %v216 = vld [vmem:[%s1 + $0x48] sm:$0xf]
      %v217 = vld [vmem:[%s1 + $0x4c] sm:$0xf]
      %v218 = vld [vmem:[%s1 + $0x50] sm:$0xf]
      %v219 = vld [vmem:[%s1 + $0x54] sm:$0xf]
      %v220 = vld [vmem:[%s1 + $0x58] sm:$0xf]
      %v221 = vld [vmem:[%s1 + $0x5c] sm:$0xf]
      %v222 = vld [vmem:[%s1 + $0x60] sm:$0xf]
      %v223 = vld [vmem:[%s1 + $0x64] sm:$0xf]
      %v224 = vld [vmem:[%s1 + $0x68] sm:$0xf]
      %v225 = vld [vmem:[%s1 + $0x6c] sm:$0xf]
      %v226 = vld [vmem:[%s1 + $0x70] sm:$0xf]
      %v227 = vld [vmem:[%s1 + $0x74] sm:$0xf]
      %v228 = vld [vmem:[%s1 + $0x78] sm:$0xf]
      %v229 = vld [vmem:[%s1 + $0x7c] sm:$0xf]
      %v230 = vld [vmem:[%s1 + $0x80] sm:$0xf]
      %v231 = vld [vmem:[%s1 + $0x84] sm:$0xf]
      %v232 = vld [vmem:[%s1 + $0x88] sm:$0xf]
      %v233 = vld [vmem:[%s1 + $0x8c] sm:$0xf]
      %v234 = vld [vmem:[%s1 + $0x90] sm:$0xf]
      %v235 = vld [vmem:[%s1 + $0x94] sm:$0xf]
      %v236 = vld [vmem:[%s1 + $0x98] sm:$0xf]
      %v237 = vld [vmem:[%s1 + $0x9c] sm:$0xf]
      %v238 = vld [vmem:[%s1 + $0xa0] sm:$0xf]
      %v239 = vld [vmem:[%s1 + $0xa4] sm:$0xf]
      %v240 = vld [vmem:[%s1 + $0xa8] sm:$0xf]
      %v241 = vld [vmem:[%s1 + $0xac] sm:$0xf]
      %v242 = vld [vmem:[%s1 + $0xb0] sm:$0xf]
      %v243 = vld [vmem:[%s1 + $0xb4] sm:$0xf]
      %v244 = vld [vmem:[%s1 + $0xb8] sm:$0xf]
      %v245 = vld [vmem:[%s1 + $0xbc] sm:$0xf]
      %v246 = vld [vmem:[%s1 + $0xc0] sm:$0xf]
      %v247 = vld [vmem:[%s1 + $0xc4] sm:$0xf]
      %v248 = vld [vmem:[%s1 + $0xc8] sm:$0xf]
      %v249 = vld [vmem:[%s1 + $0xcc] sm:$0xf]
      %v250 = vld [vmem:[%s1 + $0xd0] sm:$0xf]
      %v251 = vld [vmem:[%s1 + $0xd4] sm:$0xf]
      %v252 = vld [vmem:[%s1 + $0xd8] sm:$0xf]
      %v253 = vld [vmem:[%s1 + $0xdc] sm:$0xf]
      %v254 = vld [vmem:[%s1 + $0xe0] sm:$0xf]
      %v255 = vld [vmem:[%s1 + $0xe4] sm:$0xf]
      %v256 = vld [vmem:[%s1 + $0xe8] sm:$0xf]
      %v257 = vld [vmem:[%s1 + $0xec] sm:$0xf]
      %v258 = vld [vmem:[%s1 + $0xf0] sm:$0xf]
      %v259 = vld [vmem:[%s1 + $0xf4] sm:$0xf]
      %v260 = vld [vmem:[%s1 + $0xf8] sm:$0xf]
      %v261 = vld [vmem:[%s1 + $0xfc] sm:$0xf]
      %v262 = vld [vmem:[%s1 + $0x100] sm:$0xf]
      %v263 = vld [vmem:[%s1 + $0x104] sm:$0xf]
      %v264 = vld [vmem:[%s1 + $0x108] sm:$0xf]
      %v265 = vld [vmem:[%s1 + $0x10c] sm:$0xf]
      %v266 = vld [vmem:[%s1 + $0x110] sm:$0xf]
      %v267 = vld [vmem:[%s1 + $0x114] sm:$0xf]
      %v268 = vld [vmem:[%s1 + $0x118] sm:$0xf]
      %v269 = vld [vmem:[%s1 + $0x11c] sm:$0xf]
      %v270 = vld [vmem:[%s1 + $0x120] sm:$0xf]
      %v271 = vld [vmem:[%s1 + $0x124] sm:$0xf]
      %v272 = vld [vmem:[%s1 + $0x128] sm:$0xf]
      %v273 = vld [vmem:[%s1 + $0x12c] sm:$0xf]
      %v274 = vld [vmem:[%s1 + $0x130] sm:$0xf]
      %v275 = vld [vmem:[%s1 + $0x134] sm:$0xf]
      %v276 = vld [vmem:[%s1 + $0x138] sm:$0xf]
      %v277 = vld [vmem:[%s1 + $0x13c] sm:$0xf]
      %v278 = vld [vmem:[%s1 + $0x140] sm:$0xf]
      %v279 = vld [vmem:[%s1 + $0x144] sm:$0xf]
      %v280 = vld [vmem:[%s1 + $0x148] sm:$0xf]
      %v281 = vld [vmem:[%s1 + $0x14c] sm:$0xf]
      %v282 = vld [vmem:[%s1 + $0x150] sm:$0xf]
      %v283 = vld [vmem:[%s1 + $0x154] sm:$0xf]
      %v284 = vld [vmem:[%s1 + $0x158] sm:$0xf]
      %v285 = vld [vmem:[%s1 + $0x15c] sm:$0xf]
      %v286 = vld [vmem:[%s1 + $0x160] sm:$0xf]
      %v287 = vld [vmem:[%s1 + $0x164] sm:$0xf]
      %v288 = vld [vmem:[%s1 + $0x168] sm:$0xf]
      %v289 = vld [vmem:[%s1 + $0x16c] sm:$0xf]
      %v290 = vld [vmem:[%s1 + $0x170] sm:$0xf]
      %v291 = vld [vmem:[%s1 + $0x174] sm:$0xf]
      %v292 = vld [vmem:[%s1 + $0x178] sm:$0xf]
      %v293 = vld [vmem:[%s1 + $0x17c] sm:$0xf]
      %v294 = vld [vmem:[%s1 + $0x180] sm:$0xf]
      %v295 = vld [vmem:[%s1 + $0x184] sm:$0xf]
      %v296 = vld [vmem:[%s1 + $0x188] sm:$0xf]
      %v297 = vld [vmem:[%s1 + $0x18c] sm:$0xf]
      %v298 = vld [vmem:[%s1 + $0x190] sm:$0xf]
      %v299 = vld [vmem:[%s1 + $0x194] sm:$0xf]
      %v300 = vld [vmem:[%s1 + $0x198] sm:$0xf]
      %v301 = vld [vmem:[%s1 + $0x19c] sm:$0xf]
      %v302 = vld [vmem:[%s1 + $0x1a0] sm:$0xf]
      %v303 = vld [vmem:[%s1 + $0x1a4] sm:$0xf]
      %v304 = vld [vmem:[%s1 + $0x1a8] sm:$0xf]
      %v305 = vld [vmem:[%s1 + $0x1ac] sm:$0xf]
      %v306 = vld [vmem:[%s1 + $0x1b0] sm:$0xf]
      %v307 = vld [vmem:[%s1 + $0x1b4] sm:$0xf]
      %v308 = vld [vmem:[%s1 + $0x1b8] sm:$0xf]
      %v309 = vld [vmem:[%s1 + $0x1bc] sm:$0xf]
      %v310 = vld [vmem:[%s1 + $0x1c0] sm:$0xf]
      %v311 = vld [vmem:[%s1 + $0x1c4] sm:$0xf]
      %v312 = vld [vmem:[%s1 + $0x1c8] sm:$0xf]
      %v313 = vld [vmem:[%s1 + $0x1cc] sm:$0xf]
      %v314 = vld [vmem:[%s1 + $0x1d0] sm:$0xf]
      %v315 = vld [vmem:[%s1 + $0x1d4] sm:$0xf]
      %v316 = vld [vmem:[%s1 + $0x1d8] sm:$0xf]
      %v317 = vld [vmem:[%s1 + $0x1dc] sm:$0xf]
      %v318 = vld [vmem:[%s1 + $0x1e0] sm:$0xf]
      %v319 = vld [vmem:[%s1 + $0x1e4] sm:$0xf]
      %v320 = vld [vmem:[%s1 + $0x1e8] sm:$0xf]
      %v321 = vld [vmem:[%s1 + $0x1ec] sm:$0xf]
      %v322 = vld [vmem:[%s1 + $0x1f0] sm:$0xf]
      %v323 = vld [vmem:[%s1 + $0x1f4] sm:$0xf]
      %v324 = vld [vmem:[%s1 + $0x1f8] sm:$0xf]
      %v325 = vld [vmem:[%s1 + $0x1fc] sm:$0xf]
      %v326 = vld [vmem:[%s1 + $0x200] sm:$0xf]
      %v327 = vld [vmem:[%s1 + $0x204] sm:$0xf]
      %v328 = vld [vmem:[%s1 + $0x208] sm:$0xf]
      %v329 = vld [vmem:[%s1 + $0x20c] sm:$0xf]
      %v330 = vld [vmem:[%s1 + $0x210] sm:$0xf]
      %v331 = vld [vmem:[%s1 + $0x214] sm:$0xf]
      %v332 = vld [vmem:[%s1 + $0x218] sm:$0xf]
      %v333 = vld [vmem:[%s1 + $0x21c] sm:$0xf]
      %v334 = vld [vmem:[%s1 + $0x220] sm:$0xf]
      %v335 = vld [vmem:[%s1 + $0x224] sm:$0xf]
      %v336 = vld [vmem:[%s1 + $0x228] sm:$0xf]
      %v337 = vld [vmem:[%s1 + $0x22c] sm:$0xf]
      %v338 = vld [vmem:[%s1 + $0x230] sm:$0xf]
      %v339 = vld [vmem:[%s1 + $0x234] sm:$0xf]
      %v340 = vld [vmem:[%s1 + $0x238] sm:$0xf]
      %v341 = vld [vmem:[%s1 + $0x23c] sm:$0xf]
      %v342 = vld [vmem:[%s2] sm:$0x1]
      %v344 = vlaneseq
      %v345 = vshrl.u32 %v344, 7
      %v346 = vsub.s32 0, %v345
      %v347 = vrot.slane %v342, %v346
      %v369 = vunpack.c.l.b16 %v178
      %v370 = vunpack.c.h.b16 %v178
      %v371 = vunpack.c.l.b16 %v179
      %v372 = vunpack.c.h.b16 %v179
      %v373 = vunpack.c.l.b16 %v180
      %v374 = vunpack.c.h.b16 %v180
      %v375 = vunpack.c.l.b16 %v181
      %v376 = vunpack.c.h.b16 %v181
      %v377 = vunpack.c.l.b16 %v182
      %v378 = vunpack.c.l.b16 %v183
      %v379 = vunpack.c.h.b16 %v183
      %v380 = vunpack.c.l.b16 %v184
      %v381 = vunpack.c.h.b16 %v184
      %v382 = vunpack.c.l.b16 %v185
      %v383 = vunpack.c.h.b16 %v185
      %v384 = vunpack.c.l.b16 %v186
      %v385 = vunpack.c.h.b16 %v186
      %v386 = vunpack.c.l.b16 %v187
      %v387 = vunpack.c.l.b16 %v188
      %v388 = vunpack.c.h.b16 %v188
      %v389 = vunpack.c.l.b16 %v189
      %v390 = vunpack.c.h.b16 %v189
      %v391 = vunpack.c.l.b16 %v190
      %v392 = vunpack.c.h.b16 %v190
      %v393 = vunpack.c.l.b16 %v191
      %v394 = vunpack.c.h.b16 %v191
      %v395 = vunpack.c.l.b16 %v192
      %v396 = vunpack.c.l.b16 %v193
      %v397 = vunpack.c.h.b16 %v193
      %v398 = vunpack.c.l.b16 %v194
      %v399 = vunpack.c.h.b16 %v194
      %v400 = vunpack.c.l.b16 %v195
      %v401 = vunpack.c.h.b16 %v195
      %v402 = vunpack.c.l.b16 %v196
      %v403 = vunpack.c.h.b16 %v196
      %v404 = vunpack.c.l.b16 %v197
      %v405 = vpack.c.b16 %v378, %v369
      %v406 = vpack.c.b16 %v379, %v370
      %v407 = vpack.c.b16 %v380, %v371
      %v408 = vpack.c.b16 %v381, %v372
      %v409 = vpack.c.b16 %v382, %v373
      %v410 = vpack.c.b16 %v383, %v374
      %v411 = vpack.c.b16 %v384, %v375
      %v412 = vpack.c.b16 %v385, %v376
      %v413 = vpack.c.b16 %v386, %v377
      %v414 = vpack.c.b16 %v396, %v387
      %v415 = vpack.c.b16 %v397, %v388
      %v416 = vpack.c.b16 %v398, %v389
      %v417 = vpack.c.b16 %v399, %v390
      %v418 = vpack.c.b16 %v400, %v391
      %v419 = vpack.c.b16 %v401, %v392
      %v420 = vpack.c.b16 %v402, %v393
      %v421 = vpack.c.b16 %v403, %v394
      %v422 = vpack.c.b16 %v404, %v395
      %v585 = vunpack.c.l.b16 %v198
      %v586 = vunpack.c.l.b16 %v199
      %v587 = vunpack.c.l.b16 %v200
      %v588 = vunpack.c.l.b16 %v201
      %v589 = vunpack.c.l.b16 %v202
      %v590 = vunpack.c.l.b16 %v203
      %v591 = vunpack.c.l.b16 %v204
      %v592 = vunpack.c.l.b16 %v205
      %v593 = vunpack.c.l.b16 %v206
      %v594 = vunpack.c.l.b16 %v207
      %v595 = vunpack.c.l.b16 %v208
      %v596 = vunpack.c.l.b16 %v209
      %v597 = vunpack.c.l.b16 %v210
      %v598 = vunpack.c.l.b16 %v211
      %v599 = vunpack.c.l.b16 %v212
      %v600 = vunpack.c.l.b16 %v213
      %v601 = vunpack.c.l.b16 %v214
      %v602 = vunpack.c.l.b16 %v215
      %v603 = vunpack.c.l.b16 %v216
      %v604 = vunpack.c.l.b16 %v217
      %v605 = vunpack.c.l.b16 %v218
      %v606 = vunpack.c.l.b16 %v219
      %v607 = vunpack.c.l.b16 %v220
      %v608 = vunpack.c.l.b16 %v221
      %v609 = vunpack.c.l.b16 %v222
      %v610 = vunpack.c.l.b16 %v223
      %v611 = vunpack.c.l.b16 %v224
      %v612 = vunpack.c.l.b16 %v225
      %v613 = vunpack.c.l.b16 %v226
      %v614 = vunpack.c.l.b16 %v227
      %v615 = vunpack.c.l.b16 %v228
      %v616 = vunpack.c.l.b16 %v229
      %v617 = vunpack.c.l.b16 %v230
      %v618 = vunpack.c.l.b16 %v231
      %v619 = vunpack.c.l.b16 %v232
      %v620 = vunpack.c.l.b16 %v233
      %v621 = vunpack.c.l.b16 %v234
      %v622 = vunpack.c.l.b16 %v235
      %v623 = vunpack.c.l.b16 %v236
      %v624 = vunpack.c.l.b16 %v237
      %v625 = vunpack.c.l.b16 %v238
      %v626 = vunpack.c.l.b16 %v239
      %v627 = vunpack.c.l.b16 %v240
      %v628 = vunpack.c.l.b16 %v241
      %v629 = vunpack.c.l.b16 %v242
      %v630 = vunpack.c.l.b16 %v243
      %v631 = vunpack.c.l.b16 %v244
      %v632 = vunpack.c.l.b16 %v245
      %v633 = vunpack.c.l.b16 %v246
      %v634 = vunpack.c.l.b16 %v247
      %v635 = vunpack.c.l.b16 %v248
      %v636 = vunpack.c.l.b16 %v249
      %v637 = vunpack.c.l.b16 %v250
      %v638 = vunpack.c.l.b16 %v251
      %v639 = vunpack.c.l.b16 %v252
      %v640 = vunpack.c.l.b16 %v253
      %v641 = vunpack.c.l.b16 %v254
      %v642 = vunpack.c.l.b16 %v255
      %v643 = vunpack.c.l.b16 %v256
      %v644 = vunpack.c.l.b16 %v257
      %v645 = vunpack.c.l.b16 %v258
      %v646 = vunpack.c.l.b16 %v259
      %v647 = vunpack.c.l.b16 %v260
      %v648 = vunpack.c.l.b16 %v261
      %v649 = vunpack.c.l.b16 %v262
      %v650 = vunpack.c.l.b16 %v263
      %v651 = vunpack.c.l.b16 %v264
      %v652 = vunpack.c.l.b16 %v265
      %v653 = vunpack.c.l.b16 %v266
      %v654 = vunpack.c.l.b16 %v267
      %v655 = vunpack.c.l.b16 %v268
      %v656 = vunpack.c.l.b16 %v269
      %v657 = vunpack.c.l.b16 %v270
      %v658 = vunpack.c.l.b16 %v271
      %v659 = vunpack.c.l.b16 %v272
      %v660 = vunpack.c.l.b16 %v273
      %v661 = vunpack.c.l.b16 %v274
      %v662 = vunpack.c.l.b16 %v275
      %v663 = vunpack.c.l.b16 %v276
      %v664 = vunpack.c.l.b16 %v277
      %v665 = vunpack.c.l.b16 %v278
      %v666 = vunpack.c.l.b16 %v279
      %v667 = vunpack.c.l.b16 %v280
      %v668 = vunpack.c.l.b16 %v281
      %v669 = vunpack.c.l.b16 %v282
      %v670 = vunpack.c.l.b16 %v283
      %v671 = vunpack.c.l.b16 %v284
      %v672 = vunpack.c.l.b16 %v285
      %v673 = vunpack.c.l.b16 %v286
      %v674 = vunpack.c.l.b16 %v287
      %v675 = vunpack.c.l.b16 %v288
      %v676 = vunpack.c.l.b16 %v289
      %v677 = vunpack.c.l.b16 %v290
      %v678 = vunpack.c.l.b16 %v291
      %v679 = vunpack.c.l.b16 %v292
      %v680 = vunpack.c.l.b16 %v293
      %v681 = vunpack.c.l.b16 %v294
      %v682 = vunpack.c.l.b16 %v295
      %v683 = vunpack.c.l.b16 %v296
      %v684 = vunpack.c.l.b16 %v297
      %v685 = vunpack.c.l.b16 %v298
      %v686 = vunpack.c.l.b16 %v299
      %v687 = vunpack.c.l.b16 %v300
      %v688 = vunpack.c.l.b16 %v301
      %v689 = vunpack.c.l.b16 %v302
      %v690 = vunpack.c.l.b16 %v303
      %v691 = vunpack.c.l.b16 %v304
      %v692 = vunpack.c.l.b16 %v305
      %v693 = vunpack.c.l.b16 %v306
      %v694 = vunpack.c.l.b16 %v307
      %v695 = vunpack.c.l.b16 %v308
      %v696 = vunpack.c.l.b16 %v309
      %v697 = vunpack.c.l.b16 %v310
      %v698 = vunpack.c.l.b16 %v311
      %v699 = vunpack.c.l.b16 %v312
      %v700 = vunpack.c.l.b16 %v313
      %v701 = vunpack.c.l.b16 %v314
      %v702 = vunpack.c.l.b16 %v315
      %v703 = vunpack.c.l.b16 %v316
      %v704 = vunpack.c.l.b16 %v317
      %v705 = vunpack.c.l.b16 %v318
      %v706 = vunpack.c.l.b16 %v319
      %v707 = vunpack.c.l.b16 %v320
      %v708 = vunpack.c.l.b16 %v321
      %v709 = vunpack.c.l.b16 %v322
      %v710 = vunpack.c.l.b16 %v323
      %v711 = vunpack.c.l.b16 %v324
      %v712 = vunpack.c.l.b16 %v325
      %v713 = vunpack.c.l.b16 %v326
      %v714 = vunpack.c.l.b16 %v327
      %v715 = vunpack.c.l.b16 %v328
      %v716 = vunpack.c.l.b16 %v329
      %v717 = vunpack.c.l.b16 %v330
      %v718 = vunpack.c.l.b16 %v331
      %v719 = vunpack.c.l.b16 %v332
      %v720 = vunpack.c.l.b16 %v333
      %v721 = vunpack.c.l.b16 %v334
      %v722 = vunpack.c.l.b16 %v335
      %v723 = vunpack.c.l.b16 %v336
      %v724 = vunpack.c.l.b16 %v337
      %v725 = vunpack.c.l.b16 %v338
      %v726 = vunpack.c.l.b16 %v339
      %v727 = vunpack.c.l.b16 %v340
      %v728 = vunpack.c.l.b16 %v341
      %v729 = vpack.c.b16 %v586, %v585
      %v730 = vpack.c.b16 %v588, %v587
      %v731 = vpack.c.b16 %v590, %v589
      %v732 = vpack.c.b16 %v592, %v591
      %v733 = vpack.c.b16 %v594, %v593
      %v734 = vpack.c.b16 %v596, %v595
      %v735 = vpack.c.b16 %v598, %v597
      %v736 = vpack.c.b16 %v600, %v599
      %v737 = vpack.c.b16 %v602, %v601
      %v738 = vpack.c.b16 %v604, %v603
      %v739 = vpack.c.b16 %v606, %v605
      %v740 = vpack.c.b16 %v608, %v607
      %v741 = vpack.c.b16 %v610, %v609
      %v742 = vpack.c.b16 %v612, %v611
      %v743 = vpack.c.b16 %v614, %v613
      %v744 = vpack.c.b16 %v616, %v615
      %v745 = vpack.c.b16 %v618, %v617
      %v746 = vpack.c.b16 %v620, %v619
      %v747 = vpack.c.b16 %v622, %v621
      %v748 = vpack.c.b16 %v624, %v623
      %v749 = vpack.c.b16 %v626, %v625
      %v750 = vpack.c.b16 %v628, %v627
      %v751 = vpack.c.b16 %v630, %v629
      %v752 = vpack.c.b16 %v632, %v631
      %v753 = vpack.c.b16 %v634, %v633
      %v754 = vpack.c.b16 %v636, %v635
      %v755 = vpack.c.b16 %v638, %v637
      %v756 = vpack.c.b16 %v640, %v639
      %v757 = vpack.c.b16 %v642, %v641
      %v758 = vpack.c.b16 %v644, %v643
      %v759 = vpack.c.b16 %v646, %v645
      %v760 = vpack.c.b16 %v648, %v647
      %v761 = vpack.c.b16 %v650, %v649
      %v762 = vpack.c.b16 %v652, %v651
      %v763 = vpack.c.b16 %v654, %v653
      %v764 = vpack.c.b16 %v656, %v655
      %v765 = vpack.c.b16 %v658, %v657
      %v766 = vpack.c.b16 %v660, %v659
      %v767 = vpack.c.b16 %v662, %v661
      %v768 = vpack.c.b16 %v664, %v663
      %v769 = vpack.c.b16 %v666, %v665
      %v770 = vpack.c.b16 %v668, %v667
      %v771 = vpack.c.b16 %v670, %v669
      %v772 = vpack.c.b16 %v672, %v671
      %v773 = vpack.c.b16 %v674, %v673
      %v774 = vpack.c.b16 %v676, %v675
      %v775 = vpack.c.b16 %v678, %v677
      %v776 = vpack.c.b16 %v680, %v679
      %v777 = vpack.c.b16 %v682, %v681
      %v778 = vpack.c.b16 %v684, %v683
      %v779 = vpack.c.b16 %v686, %v685
      %v780 = vpack.c.b16 %v688, %v687
      %v781 = vpack.c.b16 %v690, %v689
      %v782 = vpack.c.b16 %v692, %v691
      %v783 = vpack.c.b16 %v694, %v693
      %v784 = vpack.c.b16 %v696, %v695
      %v785 = vpack.c.b16 %v698, %v697
      %v786 = vpack.c.b16 %v700, %v699
      %v787 = vpack.c.b16 %v702, %v701
      %v788 = vpack.c.b16 %v704, %v703
      %v789 = vpack.c.b16 %v706, %v705
      %v790 = vpack.c.b16 %v708, %v707
      %v791 = vpack.c.b16 %v710, %v709
      %v792 = vpack.c.b16 %v712, %v711
      %v793 = vpack.c.b16 %v714, %v713
      %v794 = vpack.c.b16 %v716, %v715
      %v795 = vpack.c.b16 %v718, %v717
      %v796 = vpack.c.b16 %v720, %v719
      %v797 = vpack.c.b16 %v722, %v721
      %v798 = vpack.c.b16 %v724, %v723
      %v799 = vpack.c.b16 %v726, %v725
      %v800 = vpack.c.b16 %v728, %v727
      %873 = vmatprep.subr.bf16.mxu0 0
      %874 = vmatpush1.bf16.msra.mxu0 %v729
      %875 = vmatprep.subr.bf16.mxu0 0
      %876 = vmatpush1.bf16.msra.mxu0 %v730
      %877 = vmatprep.subr.bf16.mxu0 0
      %878 = vmatpush1.bf16.msra.mxu0 %v731
      %879 = vmatprep.subr.bf16.mxu0 0
      %880 = vmatpush1.bf16.msra.mxu0 %v732
      %881 = vmatprep.subr.bf16.mxu0 0
      %882 = vmatpush1.bf16.msra.mxu0 %v733
      %883 = vmatprep.subr.bf16.mxu0 0
      %884 = vmatpush1.bf16.msra.mxu0 %v734
      %885 = vmatprep.subr.bf16.mxu0 0
      %886 = vmatpush1.bf16.msra.mxu0 %v735
      %887 = vmatprep.subr.bf16.mxu0 0
      %888 = vmatpush1.bf16.msra.mxu0 %v736
      %889 = vmatprep.subr.bf16.mxu0 0
      %890 = vmatpush1.bf16.msra.mxu0 %v737
      %891 = vmatprep.subr.bf16.mxu0 0
      %892 = vmatpush1.bf16.msra.mxu0 %v738
      %893 = vmatprep.subr.bf16.mxu0 0
      %894 = vmatpush1.bf16.msra.mxu0 %v739
      %895 = vmatprep.subr.bf16.mxu0 0
      %896 = vmatpush1.bf16.msra.mxu0 %v740
      %897 = vmatprep.subr.bf16.mxu0 0
      %898 = vmatpush1.bf16.msra.mxu0 %v741
      %899 = vmatprep.subr.bf16.mxu0 0
      %900 = vmatpush1.bf16.msra.mxu0 %v742
      %901 = vmatprep.subr.bf16.mxu0 0
      %902 = vmatpush1.bf16.msra.mxu0 %v743
      %903 = vmatprep.subr.bf16.mxu0 0
      %904 = vmatpush1.bf16.msra.mxu0 %v744
      %905 = vmatprep.mubr.bf16.mxu0 %v406
      %906 = vmatmul.mubr.bf16.gmra.mrb[0].mxu0 %v405
      %v907 = vpop.f32.mrb[0].mxu0
      %v908 = vadd.f32 %v347, %v907
      %v909 = vpop.f32.mrb[0].mxu0
      %v910 = vpop.f32.mrb[0].mxu0
      %v911 = vadd.f32 %v347, %v910
      %v912 = vpop.f32.mrb[0].mxu0
      %913 = vmatprep.mubr.bf16.mxu0 %v415
      %914 = vmatmul.mubr.bf16.gmra.mrb[0].mxu0 %v414
      %v915 = vpop.f32.mrb[0].mxu0
      %v916 = vadd.f32 %v347, %v915
      %v917 = vpop.f32.mrb[0].mxu0
      %v918 = vpop.f32.mrb[0].mxu0
      %v919 = vadd.f32 %v347, %v918
      %v920 = vpop.f32.mrb[0].mxu0
      %921 = vdwg.mxu0
      %922 = vmatprep.subr.bf16.mxu0 0
      %923 = vmatpush1.bf16.msra.mxu0 %v745
      %924 = vmatprep.subr.bf16.mxu0 0
      %925 = vmatpush1.bf16.msra.mxu0 %v746
      %926 = vmatprep.subr.bf16.mxu0 0
      %927 = vmatpush1.bf16.msra.mxu0 %v747
      %928 = vmatprep.subr.bf16.mxu0 0
      %929 = vmatpush1.bf16.msra.mxu0 %v748
      %930 = vmatprep.subr.bf16.mxu0 0
      %931 = vmatpush1.bf16.msra.mxu0 %v749
      %932 = vmatprep.subr.bf16.mxu0 0
      %933 = vmatpush1.bf16.msra.mxu0 %v750
      %934 = vmatprep.subr.bf16.mxu0 0
      %935 = vmatpush1.bf16.msra.mxu0 %v751
      %936 = vmatprep.subr.bf16.mxu0 0
      %937 = vmatpush1.bf16.msra.mxu0 %v752
      %938 = vmatprep.subr.bf16.mxu0 0
      %939 = vmatpush1.bf16.msra.mxu0 %v753
      %940 = vmatprep.subr.bf16.mxu0 0
      %941 = vmatpush1.bf16.msra.mxu0 %v754
      %942 = vmatprep.subr.bf16.mxu0 0
      %943 = vmatpush1.bf16.msra.mxu0 %v755
      %944 = vmatprep.subr.bf16.mxu0 0
      %945 = vmatpush1.bf16.msra.mxu0 %v756
      %946 = vmatprep.subr.bf16.mxu0 0
      %947 = vmatpush1.bf16.msra.mxu0 %v757
      %948 = vmatprep.subr.bf16.mxu0 0
      %949 = vmatpush1.bf16.msra.mxu0 %v758
      %950 = vmatprep.subr.bf16.mxu0 0
      %951 = vmatpush1.bf16.msra.mxu0 %v759
      %952 = vmatprep.subr.bf16.mxu0 0
      %953 = vmatpush1.bf16.msra.mxu0 %v760
      %954 = vmatprep.mubr.bf16.mxu0 %v408
      %955 = vmatmul.mubr.bf16.gmra.mrb[0].mxu0 %v407
      %v956 = vpop.f32.mrb[0].mxu0
      %v957 = vadd.f32 %v908, %v956
      %v958 = vpop.f32.mrb[0].mxu0
      %v959 = vpop.f32.mrb[0].mxu0
      %v960 = vadd.f32 %v911, %v959
      %v961 = vpop.f32.mrb[0].mxu0
      %962 = vmatprep.mubr.bf16.mxu0 %v417
      %963 = vmatmul.mubr.bf16.gmra.mrb[0].mxu0 %v416
      %v964 = vpop.f32.mrb[0].mxu0
      %v965 = vadd.f32 %v916, %v964
      %v966 = vpop.f32.mrb[0].mxu0
      %v967 = vpop.f32.mrb[0].mxu0
      %v968 = vadd.f32 %v919, %v967
      %v969 = vpop.f32.mrb[0].mxu0
      %970 = vdwg.mxu0
      %971 = vmatprep.subr.bf16.mxu0 0
      %972 = vmatpush1.bf16.msra.mxu0 %v761
      %973 = vmatprep.subr.bf16.mxu0 0
      %974 = vmatpush1.bf16.msra.mxu0 %v762
      %975 = vmatprep.subr.bf16.mxu0 0
      %976 = vmatpush1.bf16.msra.mxu0 %v763
      %977 = vmatprep.subr.bf16.mxu0 0
      %978 = vmatpush1.bf16.msra.mxu0 %v764
      %979 = vmatprep.subr.bf16.mxu0 0
      %980 = vmatpush1.bf16.msra.mxu0 %v765
      %981 = vmatprep.subr.bf16.mxu0 0
      %982 = vmatpush1.bf16.msra.mxu0 %v766
      %983 = vmatprep.subr.bf16.mxu0 0
      %984 = vmatpush1.bf16.msra.mxu0 %v767
      %985 = vmatprep.subr.bf16.mxu0 0
      %986 = vmatpush1.bf16.msra.mxu0 %v768
      %987 = vmatprep.subr.bf16.mxu0 0
      %988 = vmatpush1.bf16.msra.mxu0 %v769
      %989 = vmatprep.subr.bf16.mxu0 0
      %990 = vmatpush1.bf16.msra.mxu0 %v770
      %991 = vmatprep.subr.bf16.mxu0 0
      %992 = vmatpush1.bf16.msra.mxu0 %v771
      %993 = vmatprep.subr.bf16.mxu0 0
      %994 = vmatpush1.bf16.msra.mxu0 %v772
      %995 = vmatprep.subr.bf16.mxu0 0
      %996 = vmatpush1.bf16.msra.mxu0 %v773
      %997 = vmatprep.subr.bf16.mxu0 0
      %998 = vmatpush1.bf16.msra.mxu0 %v774
      %999 = vmatprep.subr.bf16.mxu0 0
      %1000 = vmatpush1.bf16.msra.mxu0 %v775
      %1001 = vmatprep.subr.bf16.mxu0 0
      %1002 = vmatpush1.bf16.msra.mxu0 %v776
      %1003 = vmatprep.mubr.bf16.mxu0 %v410
      %1004 = vmatmul.mubr.bf16.gmra.mrb[0].mxu0 %v409
      %v1005 = vpop.f32.mrb[0].mxu0
      %v1006 = vadd.f32 %v957, %v1005
      %v1007 = vpop.f32.mrb[0].mxu0
      %v1008 = vpop.f32.mrb[0].mxu0
      %v1009 = vadd.f32 %v960, %v1008
      %v1010 = vpop.f32.mrb[0].mxu0
      %1011 = vmatprep.mubr.bf16.mxu0 %v419
      %1012 = vmatmul.mubr.bf16.gmra.mrb[0].mxu0 %v418
      %v1013 = vpop.f32.mrb[0].mxu0
      %v1014 = vadd.f32 %v965, %v1013
      %v1015 = vpop.f32.mrb[0].mxu0
      %v1016 = vpop.f32.mrb[0].mxu0
      %v1017 = vadd.f32 %v968, %v1016
      %v1018 = vpop.f32.mrb[0].mxu0
      %1019 = vdwg.mxu0
      %1020 = vmatprep.subr.bf16.mxu0 0
      %1021 = vmatpush1.bf16.msra.mxu0 %v777
      %1022 = vmatprep.subr.bf16.mxu0 0
      %1023 = vmatpush1.bf16.msra.mxu0 %v778
      %1024 = vmatprep.subr.bf16.mxu0 0
      %1025 = vmatpush1.bf16.msra.mxu0 %v779
      %1026 = vmatprep.subr.bf16.mxu0 0
      %1027 = vmatpush1.bf16.msra.mxu0 %v780
      %1028 = vmatprep.subr.bf16.mxu0 0
      %1029 = vmatpush1.bf16.msra.mxu0 %v781
      %1030 = vmatprep.subr.bf16.mxu0 0
      %1031 = vmatpush1.bf16.msra.mxu0 %v782
      %1032 = vmatprep.subr.bf16.mxu0 0
      %1033 = vmatpush1.bf16.msra.mxu0 %v783
      %1034 = vmatprep.subr.bf16.mxu0 0
      %1035 = vmatpush1.bf16.msra.mxu0 %v784
      %1036 = vmatprep.subr.bf16.mxu0 0
      %1037 = vmatpush1.bf16.msra.mxu0 %v785
      %1038 = vmatprep.subr.bf16.mxu0 0
      %1039 = vmatpush1.bf16.msra.mxu0 %v786
      %1040 = vmatprep.subr.bf16.mxu0 0
      %1041 = vmatpush1.bf16.msra.mxu0 %v787
      %1042 = vmatprep.subr.bf16.mxu0 0
      %1043 = vmatpush1.bf16.msra.mxu0 %v788
      %1044 = vmatprep.subr.bf16.mxu0 0
      %1045 = vmatpush1.bf16.msra.mxu0 %v789
      %1046 = vmatprep.subr.bf16.mxu0 0
      %1047 = vmatpush1.bf16.msra.mxu0 %v790
      %1048 = vmatprep.subr.bf16.mxu0 0
      %1049 = vmatpush1.bf16.msra.mxu0 %v791
      %1050 = vmatprep.subr.bf16.mxu0 0
      %1051 = vmatpush1.bf16.msra.mxu0 %v792
      %1052 = vmatprep.mubr.bf16.mxu0 %v412
      %1053 = vmatmul.mubr.bf16.gmra.mrb[0].mxu0 %v411
      %v1054 = vpop.f32.mrb[0].mxu0
      %v1055 = vadd.f32 %v1006, %v1054
      %v1056 = vpop.f32.mrb[0].mxu0
      %v1057 = vpop.f32.mrb[0].mxu0
      %v1058 = vadd.f32 %v1009, %v1057
      %v1059 = vpop.f32.mrb[0].mxu0
      %1060 = vmatprep.mubr.bf16.mxu0 %v421
      %1061 = vmatmul.mubr.bf16.gmra.mrb[0].mxu0 %v420
      %v1062 = vpop.f32.mrb[0].mxu0
      %v1063 = vadd.f32 %v1014, %v1062
      %v1064 = vpop.f32.mrb[0].mxu0
      %v1065 = vpop.f32.mrb[0].mxu0
      %v1066 = vadd.f32 %v1017, %v1065
      %v1067 = vpop.f32.mrb[0].mxu0
      %1068 = vdwg.mxu0
      %1069 = vmatprep.subr.bf16.mxu0 0
      %1070 = vmatpush1.bf16.msra.mxu0 %v793
      %1071 = vmatprep.subr.bf16.mxu0 0
      %1072 = vmatpush1.bf16.msra.mxu0 %v794
      %1073 = vmatprep.subr.bf16.mxu0 0
      %1074 = vmatpush1.bf16.msra.mxu0 %v795
      %1075 = vmatprep.subr.bf16.mxu0 0
      %1076 = vmatpush1.bf16.msra.mxu0 %v796
      %1077 = vmatprep.subr.bf16.mxu0 0
      %1078 = vmatpush1.bf16.msra.mxu0 %v797
      %1079 = vmatprep.subr.bf16.mxu0 0
      %1080 = vmatpush1.bf16.msra.mxu0 %v798
      %1081 = vmatprep.subr.bf16.mxu0 0
      %1082 = vmatpush1.bf16.msra.mxu0 %v799
      %1083 = vmatprep.subr.bf16.mxu0 0
      %1084 = vmatpush1.bf16.msra.mxu0 %v800
      %1085 = vmatprep.subr.bf16.mxu0 0
      %1086 = vmatpush1.bf16.msra.mxu0 0
      %1087 = vmatprep.subr.bf16.mxu0 0
      %1088 = vmatpush1.bf16.msra.mxu0 0
      %1089 = vmatprep.subr.bf16.mxu0 0
      %1090 = vmatpush1.bf16.msra.mxu0 0
      %1091 = vmatprep.subr.bf16.mxu0 0
      %1092 = vmatpush1.bf16.msra.mxu0 0
      %1093 = vmatprep.subr.bf16.mxu0 0
      %1094 = vmatpush1.bf16.msra.mxu0 0
      %1095 = vmatprep.subr.bf16.mxu0 0
      %1096 = vmatpush1.bf16.msra.mxu0 0
      %1097 = vmatprep.subr.bf16.mxu0 0
      %1098 = vmatpush1.bf16.msra.mxu0 0
      %1099 = vmatprep.subr.bf16.mxu0 0
      %1100 = vmatpush1.bf16.msra.mxu0 0
      %1101 = vmatprep.mubr.bf16.mxu0 0
      %1102 = vmatmul.mubr.bf16.gmra.mrb[0].mxu0 %v413
      %v1103 = vpop.f32.mrb[0].mxu0
      %v1104 = vadd.f32 %v1055, %v1103
      %v1105 = vpop.f32.mrb[0].mxu0
      %v1106 = vpop.f32.mrb[0].mxu0
      %v1107 = vadd.f32 %v1058, %v1106
      %v1108 = vpop.f32.mrb[0].mxu0
      %1109 = vmatprep.mubr.bf16.mxu0 0
      %1110 = vmatmul.mubr.bf16.gmra.mrb[0].mxu0 %v422
      %v1111 = vpop.f32.mrb[0].mxu0
      %v1112 = vadd.f32 %v1063, %v1111
      %v1113 = vpop.f32.mrb[0].mxu0
      %v1114 = vpop.f32.mrb[0].mxu0
      %v1115 = vadd.f32 %v1066, %v1114
      %v1116 = vpop.f32.mrb[0].mxu0
      %1117 = vdwg.mxu0
      %1118 = vst [vmem:[%s175] sm:$0xff] %v1104
      %1119 = vst [vmem:[%s175 + $0x8] sm:$0xff] %v1107
      %1120 = vst [vmem:[%s175 + $0x10] sm:$0xff] %v1112
      %1121 = vst [vmem:[%s175 + $0x18] sm:$0xff] %v1115
      %s1122 = smul.u32 4, %s14
      %p1123 = scmp.lt.s32.totalorder %s1122, 7
      %s1124 = scalar_select %p1123, %s1122, 7
      %s1125 = smul.addr %s1124, 8
      %s1126 = scalar_lea.vmem %s3, %s1125
      // Predicated region
      $region33: #{encoder_forward.5} parent=31 // pred_check
        %p1127 = pneg %p100
      $region34: #{encoder_forward.5} parent=31 // pred_check_branch
        %1129 = sbr.rel (%p1127) target = $region36
      $region35: #{encoder_forward.5} parent=31 // pred_region
        %s1130 = smul.u32 4, %s14
      $region36: #{encoder_forward.5} parent=31 // pred_fallthru
        _
    $region32: #{encoder_forward.5} parent=5 // pred_fallthru
      _
    %p1131 = scmp.le.s32.totalorder 2, %s9
    // Predicated region
    $region37: #{encoder_forward.5} parent=5 // pred_check
      %p1132 = pneg %p1131
    $region38: #{encoder_forward.5} parent=5 // pred_check_branch
      %1134 = sbr.rel (%p1132) target = $region40
    $region39: #{encoder_forward.5} parent=5 // pred_region
      %s1135 = ssub.s32 %s9, 2
      // Predicated region
      $region41: #{encoder_forward.5} parent=39 // pred_check
        %p1136 = pneg %p106
      $region42: #{encoder_forward.5} parent=39 // pred_check_branch
        %1138 = sbr.rel (%p1136) target = $region44
      $region43: #{encoder_forward.5} parent=39 // pred_region
        %s1139 = smul.u32 4, %s15
        %p1140 = scmp.lt.s32.totalorder %s1139, 7
        %s1141 = scalar_select %p1140, %s1139, 7
        %s1142 = smul.addr %s1141, 8
        %s1143 = scalar_lea.vmem %s3, %s1142
      $region44: #{encoder_forward.5} parent=39 // pred_fallthru
        _
    $region40: #{encoder_forward.5} parent=5 // pred_fallthru
      _
  $region6: #{encoder_forward.5} parent=0 // loop_footer
    %s13 = sadd.s32 1, %s9
  $region7: #{encoder_forward.5} parent=0 // loop_footer_branch
    %8 = sbr.rel target = $region3
  $region8: #{encoder_forward.5} parent=0 // loop_exit
    _

</llo_original>
